<compile_context>
chip_gen: v7x
topology: tpu7x:2x2x1
jax: 0.10.0
libtpu: 0.0.40
codegen_flags: <defaults>
</compile_context>

<pallas_src>
import functools

import jax
import jax.numpy as jnp
import numpy as np
from jax.experimental import pallas as pl
from jax.experimental.pallas import tpu as pltpu


# ---------------------------------------------------------------------------
# Helpers
# ---------------------------------------------------------------------------
@functools.lru_cache(maxsize=None)
def _vmem_limit_bytes():
    """Generation-aware VMEM budget: ~3/4 of physical capacity, capped at 100 MiB."""
    try:
        cap = int(pltpu.get_tpu_info().vmem_capacity_bytes)
    except Exception:
        cap = 64 * 1024 * 1024  # conservative fallback (v7x-sized)
    return int(min(cap * 3 // 4, 100 * 1024 * 1024))


def _pick_tile(n, pref, minimum=128):
    """Largest power-of-two-stepped tile <= pref that divides n, else full n."""
    if n <= pref:
        return n
    t = pref
    while t >= minimum:
        if n % t == 0:
            return t
        t //= 2
    return n


# ---------------------------------------------------------------------------
# Kernels
# ---------------------------------------------------------------------------
def _hidden_head_kernel(adj_ref, x_ref, wb_ref, wcat_ref, hw_ref, acc_ref, *,
                        contract_adj_rows, compute_bf16):
    """Pass 1: accumulate hidden = agg_h @ (X @ Wb) over adjacency tiles; on the
    last grid step apply relu and the concatenated head weight:
        hw = relu(hidden) @ [Wm | Ws].

    contract_adj_rows=True  : agg_h = adj.T (contract adj dim 0)   [side 1]
    contract_adj_rows=False : agg_h = adj   (contract adj dim 1)   [side 2]
    """
    t = pl.program_id(0)

    @pl.when(t == 0)
    def _():
        acc_ref[...] = jnp.zeros_like(acc_ref)

    xw = jnp.dot(x_ref[...], wb_ref[...], preferred_element_type=jnp.float32)
    if compute_bf16:
        xw = xw.astype(jnp.bfloat16)          # bf16 x bf16 on the native MXU path
    cdim = 0 if contract_adj_rows else 1      # no adj.T materialization
    acc_ref[...] += jax.lax.dot_general(
        adj_ref[...], xw, (((cdim,), (0,)), ((), ())),
        preferred_element_type=jnp.float32)

    @pl.when(t == pl.num_programs(0) - 1)
    def _():
        hidden = jnp.maximum(acc_ref[...], 0.0)
        hw_ref[...] = jnp.dot(hidden, wcat_ref[...],
                              preferred_element_type=jnp.float32)


def _reparam_kernel(adj_ref, hw_ref, noise_ref, z_ref, *,
                    contract_adj_rows, h2, compute_bf16):
    """Pass 2: one row-tile of Z = noise * exp(logstd) + mean, where
    [mean | logstd] = agg_z @ hw.

    contract_adj_rows=False : agg_z = adj   (Z rows ~ adj rows)    [side 1]
    contract_adj_rows=True  : agg_z = adj.T (Z rows ~ adj cols)    [side 2]
    """
    hw = hw_ref[...]
    if compute_bf16:
        hw = hw.astype(jnp.bfloat16)
    cdim = 0 if contract_adj_rows else 1
    agg = jax.lax.dot_general(
        adj_ref[...], hw, (((cdim,), (0,)), ((), ())),
        preferred_element_type=jnp.float32)
    mean = agg[:, :h2]          # lane-aligned when h2 % 128 == 0
    logstd = agg[:, h2:]
    z_ref[...] = noise_ref[...] * jnp.exp(logstd) + mean


def _decode_kernel(z1_ref, z2_ref, out_ref, *, scale):
    """A_pred[i, j] = exp(-scale * 0.5 * ||Z1_i - Z2_j||^2) for one (tm, tn) tile.

    Squared norms are computed in-tile (d is small; XLU filler under MXU/EUP work)."""
    z1 = z1_ref[...]
    z2 = z2_ref[...]
    cross = jax.lax.dot_general(z1, z2, (((1,), (1,)), ((), ())),
                                preferred_element_type=jnp.float32)   # Z1 @ Z2^T
    n1 = jnp.sum(z1 * z1, axis=-1, keepdims=True)                     # (tm, 1)
    n2 = jnp.sum(z2 * z2, axis=-1)[None, :]                           # (1, tn)
    d2 = jnp.maximum(n1 + n2 - 2.0 * cross, 0.0)                      # guard negatives
    out_ref[...] = jnp.exp((-0.5 * scale) * d2).astype(out_ref.dtype)


# ---------------------------------------------------------------------------
# Pallas call wrappers
# ---------------------------------------------------------------------------
def encode_side(adj, x, w_base, w_cat, noise, *, side, tile_rows=512):
    """One encoder side as two pipelined pallas_calls (adj streamed by tiles).

    side=1: hidden = relu(adj.T @ (X @ Wb)); [mean|logstd] = adj   @ (hidden @ Wcat)
    side=2: hidden = relu(adj   @ (X @ Wb)); [mean|logstd] = adj.T @ (hidden @ Wcat)
    Z = noise * exp(logstd) + mean
    """
    assert side in (1, 2)
    n1, n2 = adj.shape
    in_dim = x.shape[1]
    h1 = w_base.shape[1]
    c2 = w_cat.shape[1]
    h2 = c2 // 2
    compute_bf16 = adj.dtype == jnp.bfloat16
    adj_elem_bytes = 2 if compute_bf16 else 4
    vmem_limit = _vmem_limit_bytes()

    if side == 1:
        red_n, hid_n, z_n = n1, n2, n1   # reduce over adj rows, Z rows = adj rows
    else:
        red_n, hid_n, z_n = n2, n1, n2   # reduce over adj cols, Z rows = adj cols
    assert x.shape[0] == red_n and noise.shape == (z_n, h2)

    # ---------- pass 1: hw = relu(agg_h @ (X @ Wb)) @ [Wm | Ws] ----------------
    tr = _pick_tile(red_n, tile_rows)
    grid1 = (red_n // tr,)
    if side == 1:
        adj_spec1 = pl.BlockSpec((tr, n2), lambda t: (t, 0))         # row tiles
    else:
        adj_spec1 = pl.BlockSpec((n1, tr), lambda t: (0, t))         # column tiles
    flops1 = 2 * (red_n * in_dim * h1 + red_n * hid_n * h1 + hid_n * h1 * c2)
    bytes1 = (n1 * n2 * adj_elem_bytes
              + 4 * (x.size + w_base.size + w_cat.size + hid_n * c2))

    hw = pl.pallas_call(
        functools.partial(_hidden_head_kernel,
                          contract_adj_rows=(side == 1),
                          compute_bf16=compute_bf16),
        out_shape=jax.ShapeDtypeStruct((hid_n, c2), jnp.float32),
        grid_spec=pltpu.PrefetchScalarGridSpec(
            num_scalar_prefetch=0,
            grid=grid1,
            in_specs=[
                adj_spec1,
                pl.BlockSpec((tr, in_dim), lambda t: (t, 0)),
                pl.BlockSpec((in_dim, h1), lambda t: (0, 0)),
                pl.BlockSpec((h1, c2), lambda t: (0, 0)),
            ],
            out_specs=pl.BlockSpec((hid_n, c2), lambda t: (0, 0)),
            scratch_shapes=[pltpu.VMEM((hid_n, h1), jnp.float32)],
        ),
        compiler_params=pltpu.CompilerParams(
            dimension_semantics=("arbitrary",),        # reduction axis
            vmem_limit_bytes=vmem_limit),
        cost_estimate=pl.CostEstimate(flops=int(flops1), transcendentals=0,
                                      bytes_accessed=int(bytes1)),
    )(adj, x, w_base, w_cat)

    # ---------- pass 2: Z = noise * exp(logstd) + mean  (parallel row tiles) ----
    tz = _pick_tile(z_n, tile_rows)
    grid2 = (z_n // tz,)
    if side == 1:
        adj_spec2 = pl.BlockSpec((tz, n2), lambda i: (i, 0))
    else:
        adj_spec2 = pl.BlockSpec((n1, tz), lambda i: (0, i))
    flops2 = 2 * z_n * hid_n * c2 + 2 * z_n * h2
    bytes2 = (n1 * n2 * adj_elem_bytes
              + 4 * (hid_n * c2 + noise.size + z_n * h2))

    z = pl.pallas_call(
        functools.partial(_reparam_kernel,
                          contract_adj_rows=(side == 2),
                          h2=h2,
                          compute_bf16=compute_bf16),
        out_shape=jax.ShapeDtypeStruct((z_n, h2), jnp.float32),
        grid_spec=pltpu.PrefetchScalarGridSpec(
            num_scalar_prefetch=0,
            grid=grid2,
            in_specs=[
                adj_spec2,
                pl.BlockSpec((hid_n, c2), lambda i: (0, 0)),
                pl.BlockSpec((tz, h2), lambda i: (i, 0)),
            ],
            out_specs=pl.BlockSpec((tz, h2), lambda i: (i, 0)),
        ),
        compiler_params=pltpu.CompilerParams(
            dimension_semantics=("parallel",),          # megacore-splittable
            vmem_limit_bytes=vmem_limit),
        cost_estimate=pl.CostEstimate(flops=int(flops2),
                                      transcendentals=int(z_n * h2),
                                      bytes_accessed=int(bytes2)),
    )(adj, hw, noise)
    return z


def distance_decode(z1, z2, scale=1.0, *, tile_m=512, tile_n=1024,
                    out_dtype=jnp.float32):
    """Tiled pairwise-distance decoder with large lane-dense output tiles.

    out_dtype=jnp.bfloat16 halves HBM write bytes (values are in (0, 1]) if the
    consumer does not strictly need f32.
    """
    n1_rows, d = z1.shape
    n2_rows, d_2 = z2.shape
    assert d == d_2, "Z1 / Z2 feature dims must match for cdist"

    tm = _pick_tile(n1_rows, tile_m)
    tn = _pick_tile(n2_rows, tile_n)
    grid = (n1_rows // tm, n2_rows // tn)

    out_bytes = n1_rows * n2_rows * np.dtype(out_dtype).itemsize
    flops = 2 * n1_rows * n2_rows * d + 6 * n1_rows * n2_rows
    bytes_accessed = 4 * (z1.size + z2.size) + out_bytes

    return pl.pallas_call(
        functools.partial(_decode_kernel, scale=float(scale)),
        out_shape=jax.ShapeDtypeStruct((n1_rows, n2_rows), out_dtype),
        grid_spec=pltpu.PrefetchScalarGridSpec(
            num_scalar_prefetch=0,
            grid=grid,
            in_specs=[
                pl.BlockSpec((tm, d), lambda i, j: (i, 0)),
                pl.BlockSpec((tn, d), lambda i, j: (j, 0)),
            ],
            out_specs=pl.BlockSpec((tm, tn), lambda i, j: (i, j)),
        ),
        compiler_params=pltpu.CompilerParams(
            dimension_semantics=("parallel", "parallel"),
            vmem_limit_bytes=_vmem_limit_bytes()),
        cost_estimate=pl.CostEstimate(flops=int(flops),
                                      transcendentals=int(n1_rows * n2_rows),
                                      bytes_accessed=int(bytes_accessed)),
    )(z1, z2)


# ---------------------------------------------------------------------------
# VBGAE parameters + forward
# ---------------------------------------------------------------------------
def glorot_init(key, in_dim, out_dim):
    r = np.sqrt(6.0 / (in_dim + out_dim))
    return jax.random.uniform(key, (in_dim, out_dim), jnp.float32, -r, r)


def init_vbgae_params(key, input_dim1, input_dim2,
                      hidden1_dim1, hidden2_dim1, hidden1_dim2, hidden2_dim2):
    ks = jax.random.split(key, 6)
    p = {
        "w_base1":   glorot_init(ks[0], input_dim1,   hidden1_dim1),
        "w_mean1":   glorot_init(ks[1], hidden1_dim1, hidden2_dim1),
        "w_logstd1": glorot_init(ks[2], hidden1_dim1, hidden2_dim1),
        "w_base2":   glorot_init(ks[3], input_dim2,   hidden1_dim2),
        "w_mean2":   glorot_init(ks[4], hidden1_dim2, hidden2_dim2),
        "w_logstd2": glorot_init(ks[5], hidden1_dim2, hidden2_dim2),
    }
    # Concatenated head weights precomputed once (no per-forward concat / HBM copy).
    p["w_cat1"] = jnp.concatenate([p["w_mean1"], p["w_logstd1"]], axis=1)
    p["w_cat2"] = jnp.concatenate([p["w_mean2"], p["w_logstd2"]], axis=1)
    return p


def vbgae_forward(params, adj, X1, X2, noise1, noise2, scale=1.0,
                  cast_adj_bf16=True, tile_rows=512, a_pred_dtype=jnp.float32):
    # bf16 is exact for a strictly 0/1 adjacency (halves DMA bytes of the biggest
    # operand). For a normalized adjacency, pass cast_adj_bf16=False.
    adj_in = adj.astype(jnp.bfloat16) if cast_adj_bf16 else adj
    Z1 = encode_side(adj_in, X1, params["w_base1"], params["w_cat1"], noise1,
                     side=1, tile_rows=tile_rows)                     # (N1, h2_1)
    Z2 = encode_side(adj_in, X2, params["w_base2"], params["w_cat2"], noise2,
                     side=2, tile_rows=tile_rows)                     # (N2, h2_2)
    A_pred = distance_decode(Z1, Z2, scale, out_dtype=a_pred_dtype)   # (N1, N2)
    return A_pred, Z1, Z2


# ---------------------------------------------------------------------------
# Pure-JAX reference for a correctness check
# ---------------------------------------------------------------------------
def vbgae_reference(params, adj, X1, X2, noise1, noise2, scale=1.0):
    mm = functools.partial(jnp.matmul, precision=jax.lax.Precision.HIGHEST)
    adj_t = adj.T
    h1 = jnp.maximum(mm(adj_t, mm(X1, params["w_base1"])), 0.0)
    m1 = mm(adj, mm(h1, params["w_mean1"]))
    s1 = mm(adj, mm(h1, params["w_logstd1"]))
    Z1 = noise1 * jnp.exp(s1) + m1
    h2 = jnp.maximum(mm(adj, mm(X2, params["w_base2"])), 0.0)
    m2 = mm(adj_t, mm(h2, params["w_mean2"]))
    s2 = mm(adj_t, mm(h2, params["w_logstd2"]))
    Z2 = noise2 * jnp.exp(s2) + m2
    d2 = jnp.sum((Z1[:, None, :] - Z2[None, :, :]) ** 2, axis=-1)
    A_pred = jnp.exp(-scale * 0.5 * d2)
    return A_pred, Z1, Z2


if __name__ == "__main__":
    # Small, deterministic, lane-dense problem (all hot dims multiples of 128).
    N1, N2 = 256, 128
    input_dim1, input_dim2 = 64, 32
    hidden1_dim1, hidden2_dim1 = 128, 128
    hidden1_dim2, hidden2_dim2 = 128, 128   # hidden2 dims must match for cdist
    scale = 0.01

    key = jax.random.PRNGKey(0)
    k_adj, k_x1, k_x2, k_n1, k_n2, k_param = jax.random.split(key, 6)

    adj = (jax.random.uniform(k_adj, (N1, N2)) > 0.85).astype(jnp.float32)  # 0/1 mask
    X1 = 0.01 * jax.random.normal(k_x1, (N1, input_dim1), jnp.float32)
    X2 = 0.01 * jax.random.normal(k_x2, (N2, input_dim2), jnp.float32)
    noise1 = jax.random.normal(k_n1, (N1, hidden2_dim1), jnp.float32)
    noise2 = jax.random.normal(k_n2, (N2, hidden2_dim2), jnp.float32)

    params = init_vbgae_params(k_param, input_dim1, input_dim2,
                               hidden1_dim1, hidden2_dim1,
                               hidden1_dim2, hidden2_dim2)

    fwd = jax.jit(vbgae_forward,
                  static_argnames=("scale", "cast_adj_bf16", "tile_rows",
                                   "a_pred_dtype"))
    # tile_rows=128 exercises both the multi-step reduction grid and the parallel
    # Z grid even at these small shapes (defaults are tuned for larger graphs).
    A_pred, Z1, Z2 = fwd(params, adj, X1, X2, noise1, noise2,
                         scale=scale, cast_adj_bf16=True, tile_rows=128)
    jax.block_until_ready((A_pred, Z1, Z2))

    A_ref, Z1_ref, Z2_ref = vbgae_reference(params, adj, X1, X2,
                                            noise1, noise2, scale)

    # The kernel runs the adjacency matmuls with bf16 operands on the MXU (f32
    # accumulation); the reference uses f32 HIGHEST precision, so expect ~0.2-1%
    # relative error. Tolerances are set accordingly.
    z1_ref_np = np.asarray(Z1_ref)
    z2_ref_np = np.asarray(Z2_ref)
    np.testing.assert_allclose(np.asarray(Z1), z1_ref_np, rtol=5e-2,
                               atol=5e-2 * float(np.abs(z1_ref_np).max()))
    np.testing.assert_allclose(np.asarray(Z2), z2_ref_np, rtol=5e-2,
                               atol=5e-2 * float(np.abs(z2_ref_np).max()))
    np.testing.assert_allclose(np.asarray(A_pred), np.asarray(A_ref),
                               rtol=5e-2, atol=2e-2)

    assert A_pred.shape == (N1, N2)
    assert Z1.shape == (N1, hidden2_dim1) and Z2.shape == (N2, hidden2_dim2)
    print("KERNEL_OK")
</pallas_src>

<mosaic_0001>
module attributes {stable_mosaic.version = 11 : i64} {
  func.func @_reparam_kernel(%arg0: i32, %arg1: memref<256x128xbf16, #tpu.memory_space<vmem>>, %arg2: memref<256x256xf32, #tpu.memory_space<vmem>>, %arg3: memref<128x128xf32, #tpu.memory_space<vmem>>, %arg4: memref<128x128xf32, #tpu.memory_space<vmem>>) attributes {dimension_semantics = [#tpu.dimension_semantics<parallel>], iteration_bounds = array<i64: 1>, scalar_prefetch = 0 : i64, scratch_operands = 0 : i64, tpu.core_type = #tpu.core_type<tc>, window_params = [{transform_indices = @transform_0, window_bounds = array<i64: 256, 128>}, {pipeline_mode = #tpu.pipeline_mode<synchronous>, transform_indices = @transform_1, window_bounds = array<i64: 256, 256>}, {transform_indices = @transform_2, window_bounds = array<i64: 128, 128>}, {transform_indices = @transform_3, window_bounds = array<i64: 128, 128>}]} {
    %c0 = arith.constant 0 : index
    %c0_0 = arith.constant 0 : index
    %0 = vector.load %arg2[%c0, %c0_0] : memref<256x256xf32, #tpu.memory_space<vmem>>, vector<256x256xf32>
    %1 = arith.truncf %0 : vector<256x256xf32> to vector<256x256xbf16>
    %c0_1 = arith.constant 0 : index
    %c0_2 = arith.constant 0 : index
    %2 = vector.load %arg1[%c0_1, %c0_2] : memref<256x128xbf16, #tpu.memory_space<vmem>>, vector<256x128xbf16>
    %cst = arith.constant dense<0.000000e+00> : vector<128x256xf32>
    %3 = tpu.matmul %2, %1, %cst {dimension_numbers = #tpu.dot_dimension_numbers<[0], [0], [1], [1], [0, 1, 1, 1], [], []>} : vector<256x128xbf16>, vector<256x256xbf16>, vector<128x256xf32> -> vector<128x256xf32>
    %4 = vector.extract_strided_slice %3 {offsets = [0, 0], sizes = [128, 128], strides = [1, 1]} : vector<128x256xf32> to vector<128x128xf32>
    %5 = vector.extract_strided_slice %3 {offsets = [0, 128], sizes = [128, 128], strides = [1, 1]} : vector<128x256xf32> to vector<128x128xf32>
    %c0_3 = arith.constant 0 : index
    %c0_4 = arith.constant 0 : index
    %6 = vector.load %arg3[%c0_3, %c0_4] : memref<128x128xf32, #tpu.memory_space<vmem>>, vector<128x128xf32>
    %7 = math.exp %5 : vector<128x128xf32>
    %8 = arith.mulf %6, %7 : vector<128x128xf32>
    %9 = arith.addf %8, %4 : vector<128x128xf32>
    %c0_5 = arith.constant 0 : index
    %c0_6 = arith.constant 0 : index
    %10 = vector.load %arg4[%c0_5, %c0_6] : memref<128x128xf32, #tpu.memory_space<vmem>>, vector<128x128xf32>
    tpu.vector_store %arg4[%c0_5, %c0_6], %9 {strides = array<i32>} : memref<128x128xf32, #tpu.memory_space<vmem>>, vector<128x128xf32>,
    return
  }
  func.func @transform_0(%arg0: i32) -> (i32, i32) {
    %c0_i32 = arith.constant 0 : i32
    %c0_i32_0 = arith.constant 0 : i32
    return %c0_i32, %arg0 : i32, i32
  }
  func.func @transform_1(%arg0: i32) -> (i32, i32) {
    %c0_i32 = arith.constant 0 : i32
    %c0_i32_0 = arith.constant 0 : i32
    %c0_i32_1 = arith.constant 0 : i32
    return %c0_i32, %c0_i32_0 : i32, i32
  }
  func.func @transform_2(%arg0: i32) -> (i32, i32) {
    %c0_i32 = arith.constant 0 : i32
    %c0_i32_0 = arith.constant 0 : i32
    return %arg0, %c0_i32 : i32, i32
  }
  func.func @transform_3(%arg0: i32) -> (i32, i32) {
    %c0_i32 = arith.constant 0 : i32
    %c0_i32_0 = arith.constant 0 : i32
    return %arg0, %c0_i32 : i32, i32
  }
}

module attributes {stable_mosaic.version = 11 : i64} {
  func.func @_hidden_head_kernel(%arg0: i32, %arg1: memref<256x128xbf16, #tpu.memory_space<vmem>>, %arg2: memref<128x32xf32, #tpu.memory_space<vmem>>, %arg3: memref<32x128xf32, #tpu.memory_space<vmem>>, %arg4: memref<128x256xf32, #tpu.memory_space<vmem>>, %arg5: memref<256x256xf32, #tpu.memory_space<vmem>>, %arg6: memref<256x128xf32, #tpu.memory_space<vmem>>) attributes {dimension_semantics = [#tpu.dimension_semantics<arbitrary>], iteration_bounds = array<i64: 1>, scalar_prefetch = 0 : i64, scratch_operands = 1 : i64, tpu.core_type = #tpu.core_type<tc>, window_params = [{transform_indices = @transform_0, window_bounds = array<i64: 256, 128>}, {transform_indices = @transform_1, window_bounds = array<i64: 128, 32>}, {pipeline_mode = #tpu.pipeline_mode<synchronous>, transform_indices = @transform_2, window_bounds = array<i64: 32, 128>}, {pipeline_mode = #tpu.pipeline_mode<synchronous>, transform_indices = @transform_3, window_bounds = array<i64: 128, 256>}, {pipeline_mode = #tpu.pipeline_mode<synchronous>, transform_indices = @transform_4, window_bounds = array<i64: 256, 256>}]} {
    %c0_i32 = arith.constant 0 : i32
    %0 = arith.cmpi eq, %arg0, %c0_i32 : i32
    %1 = arith.extui %0 : i1 to i32
    %c0_i32_0 = arith.constant 0 : i32
    %2 = arith.cmpi ne, %1, %c0_i32_0 : i32
    scf.if %2 {
      %cst_13 = arith.constant 0.000000e+00 : f32
      %15 = vector.broadcast %cst_13 : f32 to vector<256x128xf32>
      %c0_14 = arith.constant 0 : index
      %c0_15 = arith.constant 0 : index
      %16 = vector.load %arg6[%c0_14, %c0_15] : memref<256x128xf32, #tpu.memory_space<vmem>>, vector<256x128xf32>
      tpu.vector_store %arg6[%c0_14, %c0_15], %15 {strides = array<i32>} : memref<256x128xf32, #tpu.memory_space<vmem>>, vector<256x128xf32>,
    } else {
    }
    %c0 = arith.constant 0 : index
    %c0_1 = arith.constant 0 : index
    %3 = vector.load %arg2[%c0, %c0_1] : memref<128x32xf32, #tpu.memory_space<vmem>>, vector<128x32xf32>
    %c0_2 = arith.constant 0 : index
    %c0_3 = arith.constant 0 : index
    %4 = vector.load %arg3[%c0_2, %c0_3] : memref<32x128xf32, #tpu.memory_space<vmem>>, vector<32x128xf32>
    %cst = arith.constant dense<0.000000e+00> : vector<128x128xf32>
    %5 = tpu.matmul %3, %4, %cst {dimension_numbers = #tpu.dot_dimension_numbers<[1], [0], [0], [1], [0, 0, 1, 1], [], []>} : vector<128x32xf32>, vector<32x128xf32>, vector<128x128xf32> -> vector<128x128xf32>
    %6 = arith.truncf %5 : vector<128x128xf32> to vector<128x128xbf16>
    %c0_4 = arith.constant 0 : index
    %c0_5 = arith.constant 0 : index
    %7 = vector.load %arg6[%c0_4, %c0_5] : memref<256x128xf32, #tpu.memory_space<vmem>>, vector<256x128xf32>
    %c0_6 = arith.constant 0 : index
    %c0_7 = arith.constant 0 : index
    %8 = vector.load %arg1[%c0_6, %c0_7] : memref<256x128xbf16, #tpu.memory_space<vmem>>, vector<256x128xbf16>
    %cst_8 = arith.constant dense<0.000000e+00> : vector<256x128xf32>
    %9 = tpu.matmul %8, %6, %cst_8 {dimension_numbers = #tpu.dot_dimension_numbers<[1], [0], [0], [1], [0, 0, 1, 1], [], []>} : vector<256x128xbf16>, vector<128x128xbf16>, vector<256x128xf32> -> vector<256x128xf32>
    %10 = arith.addf %7, %9 : vector<256x128xf32>
    %c0_9 = arith.constant 0 : index
    %c0_10 = arith.constant 0 : index
    %11 = vector.load %arg6[%c0_9, %c0_10] : memref<256x128xf32, #tpu.memory_space<vmem>>, vector<256x128xf32>
    tpu.vector_store %arg6[%c0_9, %c0_10], %10 {strides = array<i32>} : memref<256x128xf32, #tpu.memory_space<vmem>>, vector<256x128xf32>,
    %c0_i32_11 = arith.constant 0 : i32
    %12 = arith.cmpi eq, %arg0, %c0_i32_11 : i32
    %13 = arith.extui %12 : i1 to i32
    %c0_i32_12 = arith.constant 0 : i32
    %14 = arith.cmpi ne, %13, %c0_i32_12 : i32
    scf.if %14 {
      %c0_13 = arith.constant 0 : index
      %c0_14 = arith.constant 0 : index
      %15 = vector.load %arg6[%c0_13, %c0_14] : memref<256x128xf32, #tpu.memory_space<vmem>>, vector<256x128xf32>
      %cst_15 = arith.constant 0.000000e+00 : f32
      %16 = vector.broadcast %cst_15 : f32 to vector<256x128xf32>
      %17 = arith.maximumf %15, %16 : vector<256x128xf32>
      %c0_16 = arith.constant 0 : index
      %c0_17 = arith.constant 0 : index
      %18 = vector.load %arg4[%c0_16, %c0_17] : memref<128x256xf32, #tpu.memory_space<vmem>>, vector<128x256xf32>
      %cst_18 = arith.constant dense<0.000000e+00> : vector<256x256xf32>
      %19 = tpu.matmul %17, %18, %cst_18 {dimension_numbers = #tpu.dot_dimension_numbers<[1], [0], [0], [1], [0, 0, 1, 1], [], []>} : vector<256x128xf32>, vector<128x256xf32>, vector<256x256xf32> -> vector<256x256xf32>
      %c0_19 = arith.constant 0 : index
      %c0_20 = arith.constant 0 : index
      %20 = vector.load %arg5[%c0_19, %c0_20] : memref<256x256xf32, #tpu.memory_space<vmem>>, vector<256x256xf32>
      tpu.vector_store %arg5[%c0_19, %c0_20], %19 {strides = array<i32>} : memref<256x256xf32, #tpu.memory_space<vmem>>, vector<256x256xf32>,
    } else {
    }
    return
  }
  func.func @transform_0(%arg0: i32) -> (i32, i32) {
    %c0_i32 = arith.constant 0 : i32
    %c0_i32_0 = arith.constant 0 : i32
    return %c0_i32, %arg0 : i32, i32
  }
  func.func @transform_1(%arg0: i32) -> (i32, i32) {
    %c0_i32 = arith.constant 0 : i32
    %c0_i32_0 = arith.constant 0 : i32
    return %arg0, %c0_i32 : i32, i32
  }
  func.func @transform_2(%arg0: i32) -> (i32, i32) {
    %c0_i32 = arith.constant 0 : i32
    %c0_i32_0 = arith.constant 0 : i32
    %c0_i32_1 = arith.constant 0 : i32
    return %c0_i32, %c0_i32_0 : i32, i32
  }
  func.func @transform_3(%arg0: i32) -> (i32, i32) {
    %c0_i32 = arith.constant 0 : i32
    %c0_i32_0 = arith.constant 0 : i32
    %c0_i32_1 = arith.constant 0 : i32
    return %c0_i32, %c0_i32_0 : i32, i32
  }
  func.func @transform_4(%arg0: i32) -> (i32, i32) {
    %c0_i32 = arith.constant 0 : i32
    %c0_i32_0 = arith.constant 0 : i32
    %c0_i32_1 = arith.constant 0 : i32
    return %c0_i32, %c0_i32_0 : i32, i32
  }
}

module attributes {stable_mosaic.version = 11 : i64} {
  func.func @_hidden_head_kernel(%arg0: i32, %arg1: memref<128x128xbf16, #tpu.memory_space<vmem>>, %arg2: memref<128x64xf32, #tpu.memory_space<vmem>>, %arg3: memref<64x128xf32, #tpu.memory_space<vmem>>, %arg4: memref<128x256xf32, #tpu.memory_space<vmem>>, %arg5: memref<128x256xf32, #tpu.memory_space<vmem>>, %arg6: memref<128x128xf32, #tpu.memory_space<vmem>>) attributes {dimension_semantics = [#tpu.dimension_semantics<arbitrary>], iteration_bounds = array<i64: 2>, scalar_prefetch = 0 : i64, scratch_operands = 1 : i64, tpu.core_type = #tpu.core_type<tc>, window_params = [{transform_indices = @transform_0, window_bounds = array<i64: 128, 128>}, {transform_indices = @transform_1, window_bounds = array<i64: 128, 64>}, {pipeline_mode = #tpu.pipeline_mode<synchronous>, transform_indices = @transform_2, window_bounds = array<i64: 64, 128>}, {pipeline_mode = #tpu.pipeline_mode<synchronous>, transform_indices = @transform_3, window_bounds = array<i64: 128, 256>}, {pipeline_mode = #tpu.pipeline_mode<synchronous>, transform_indices = @transform_4, window_bounds = array<i64: 128, 256>}]} {
    %c0_i32 = arith.constant 0 : i32
    %0 = arith.cmpi eq, %arg0, %c0_i32 : i32
    %1 = arith.extui %0 : i1 to i32
    %c0_i32_0 = arith.constant 0 : i32
    %2 = arith.cmpi ne, %1, %c0_i32_0 : i32
    scf.if %2 {
      %cst_12 = arith.constant 0.000000e+00 : f32
      %15 = vector.broadcast %cst_12 : f32 to vector<128x128xf32>
      %c0_13 = arith.constant 0 : index
      %c0_14 = arith.constant 0 : index
      %16 = vector.load %arg6[%c0_13, %c0_14] : memref<128x128xf32, #tpu.memory_space<vmem>>, vector<128x128xf32>
      tpu.vector_store %arg6[%c0_13, %c0_14], %15 {strides = array<i32>} : memref<128x128xf32, #tpu.memory_space<vmem>>, vector<128x128xf32>,
    } else {
    }
    %c0 = arith.constant 0 : index
    %c0_1 = arith.constant 0 : index
    %3 = vector.load %arg2[%c0, %c0_1] : memref<128x64xf32, #tpu.memory_space<vmem>>, vector<128x64xf32>
    %c0_2 = arith.constant 0 : index
    %c0_3 = arith.constant 0 : index
    %4 = vector.load %arg3[%c0_2, %c0_3] : memref<64x128xf32, #tpu.memory_space<vmem>>, vector<64x128xf32>
    %cst = arith.constant dense<0.000000e+00> : vector<128x128xf32>
    %5 = tpu.matmul %3, %4, %cst {dimension_numbers = #tpu.dot_dimension_numbers<[1], [0], [0], [1], [0, 0, 1, 1], [], []>} : vector<128x64xf32>, vector<64x128xf32>, vector<128x128xf32> -> vector<128x128xf32>
    %6 = arith.truncf %5 : vector<128x128xf32> to vector<128x128xbf16>
    %c0_4 = arith.constant 0 : index
    %c0_5 = arith.constant 0 : index
    %7 = vector.load %arg6[%c0_4, %c0_5] : memref<128x128xf32, #tpu.memory_space<vmem>>, vector<128x128xf32>
    %c0_6 = arith.constant 0 : index
    %c0_7 = arith.constant 0 : index
    %8 = vector.load %arg1[%c0_6, %c0_7] : memref<128x128xbf16, #tpu.memory_space<vmem>>, vector<128x128xbf16>
    %cst_8 = arith.constant dense<0.000000e+00> : vector<128x128xf32>
    %9 = tpu.matmul %8, %6, %cst_8 {dimension_numbers = #tpu.dot_dimension_numbers<[0], [0], [1], [1], [0, 1, 1, 1], [], []>} : vector<128x128xbf16>, vector<128x128xbf16>, vector<128x128xf32> -> vector<128x128xf32>
    %10 = arith.addf %7, %9 : vector<128x128xf32>
    %c0_9 = arith.constant 0 : index
    %c0_10 = arith.constant 0 : index
    %11 = vector.load %arg6[%c0_9, %c0_10] : memref<128x128xf32, #tpu.memory_space<vmem>>, vector<128x128xf32>
    tpu.vector_store %arg6[%c0_9, %c0_10], %10 {strides = array<i32>} : memref<128x128xf32, #tpu.memory_space<vmem>>, vector<128x128xf32>,
    %c1_i32 = arith.constant 1 : i32
    %12 = arith.cmpi eq, %arg0, %c1_i32 : i32
    %13 = arith.extui %12 : i1 to i32
    %c0_i32_11 = arith.constant 0 : i32
    %14 = arith.cmpi ne, %13, %c0_i32_11 : i32
    scf.if %14 {
      %c0_12 = arith.constant 0 : index
      %c0_13 = arith.constant 0 : index
      %15 = vector.load %arg6[%c0_12, %c0_13] : memref<128x128xf32, #tpu.memory_space<vmem>>, vector<128x128xf32>
      %cst_14 = arith.constant 0.000000e+00 : f32
      %16 = vector.broadcast %cst_14 : f32 to vector<128x128xf32>
      %17 = arith.maximumf %15, %16 : vector<128x128xf32>
      %c0_15 = arith.constant 0 : index
      %c0_16 = arith.constant 0 : index
      %18 = vector.load %arg4[%c0_15, %c0_16] : memref<128x256xf32, #tpu.memory_space<vmem>>, vector<128x256xf32>
      %cst_17 = arith.constant dense<0.000000e+00> : vector<128x256xf32>
      %19 = tpu.matmul %17, %18, %cst_17 {dimension_numbers = #tpu.dot_dimension_numbers<[1], [0], [0], [1], [0, 0, 1, 1], [], []>} : vector<128x128xf32>, vector<128x256xf32>, vector<128x256xf32> -> vector<128x256xf32>
      %c0_18 = arith.constant 0 : index
      %c0_19 = arith.constant 0 : index
      %20 = vector.load %arg5[%c0_18, %c0_19] : memref<128x256xf32, #tpu.memory_space<vmem>>, vector<128x256xf32>
      tpu.vector_store %arg5[%c0_18, %c0_19], %19 {strides = array<i32>} : memref<128x256xf32, #tpu.memory_space<vmem>>, vector<128x256xf32>,
    } else {
    }
    return
  }
  func.func @transform_0(%arg0: i32) -> (i32, i32) {
    %c0_i32 = arith.constant 0 : i32
    %c0_i32_0 = arith.constant 0 : i32
    return %arg0, %c0_i32 : i32, i32
  }
  func.func @transform_1(%arg0: i32) -> (i32, i32) {
    %c0_i32 = arith.constant 0 : i32
    %c0_i32_0 = arith.constant 0 : i32
    return %arg0, %c0_i32 : i32, i32
  }
  func.func @transform_2(%arg0: i32) -> (i32, i32) {
    %c0_i32 = arith.constant 0 : i32
    %c0_i32_0 = arith.constant 0 : i32
    %c0_i32_1 = arith.constant 0 : i32
    return %c0_i32, %c0_i32_0 : i32, i32
  }
  func.func @transform_3(%arg0: i32) -> (i32, i32) {
    %c0_i32 = arith.constant 0 : i32
    %c0_i32_0 = arith.constant 0 : i32
    %c0_i32_1 = arith.constant 0 : i32
    return %c0_i32, %c0_i32_0 : i32, i32
  }
  func.func @transform_4(%arg0: i32) -> (i32, i32) {
    %c0_i32 = arith.constant 0 : i32
    %c0_i32_0 = arith.constant 0 : i32
    %c0_i32_1 = arith.constant 0 : i32
    return %c0_i32, %c0_i32_0 : i32, i32
  }
}

module attributes {stable_mosaic.version = 11 : i64} {
  func.func @_reparam_kernel(%arg0: i32, %arg1: memref<128x128xbf16, #tpu.memory_space<vmem>>, %arg2: memref<128x256xf32, #tpu.memory_space<vmem>>, %arg3: memref<128x128xf32, #tpu.memory_space<vmem>>, %arg4: memref<128x128xf32, #tpu.memory_space<vmem>>) attributes {dimension_semantics = [#tpu.dimension_semantics<parallel>], iteration_bounds = array<i64: 2>, scalar_prefetch = 0 : i64, scratch_operands = 0 : i64, tpu.core_type = #tpu.core_type<tc>, window_params = [{transform_indices = @transform_0, window_bounds = array<i64: 128, 128>}, {pipeline_mode = #tpu.pipeline_mode<synchronous>, transform_indices = @transform_1, window_bounds = array<i64: 128, 256>}, {transform_indices = @transform_2, window_bounds = array<i64: 128, 128>}, {transform_indices = @transform_3, window_bounds = array<i64: 128, 128>}]} {
    %c0 = arith.constant 0 : index
    %c0_0 = arith.constant 0 : index
    %0 = vector.load %arg2[%c0, %c0_0] : memref<128x256xf32, #tpu.memory_space<vmem>>, vector<128x256xf32>
    %1 = arith.truncf %0 : vector<128x256xf32> to vector<128x256xbf16>
    %c0_1 = arith.constant 0 : index
    %c0_2 = arith.constant 0 : index
    %2 = vector.load %arg1[%c0_1, %c0_2] : memref<128x128xbf16, #tpu.memory_space<vmem>>, vector<128x128xbf16>
    %cst = arith.constant dense<0.000000e+00> : vector<128x256xf32>
    %3 = tpu.matmul %2, %1, %cst {dimension_numbers = #tpu.dot_dimension_numbers<[1], [0], [0], [1], [0, 0, 1, 1], [], []>} : vector<128x128xbf16>, vector<128x256xbf16>, vector<128x256xf32> -> vector<128x256xf32>
    %4 = vector.extract_strided_slice %3 {offsets = [0, 0], sizes = [128, 128], strides = [1, 1]} : vector<128x256xf32> to vector<128x128xf32>
    %5 = vector.extract_strided_slice %3 {offsets = [0, 128], sizes = [128, 128], strides = [1, 1]} : vector<128x256xf32> to vector<128x128xf32>
    %c0_3 = arith.constant 0 : index
    %c0_4 = arith.constant 0 : index
    %6 = vector.load %arg3[%c0_3, %c0_4] : memref<128x128xf32, #tpu.memory_space<vmem>>, vector<128x128xf32>
    %7 = math.exp %5 : vector<128x128xf32>
    %8 = arith.mulf %6, %7 : vector<128x128xf32>
    %9 = arith.addf %8, %4 : vector<128x128xf32>
    %c0_5 = arith.constant 0 : index
    %c0_6 = arith.constant 0 : index
    %10 = vector.load %arg4[%c0_5, %c0_6] : memref<128x128xf32, #tpu.memory_space<vmem>>, vector<128x128xf32>
    tpu.vector_store %arg4[%c0_5, %c0_6], %9 {strides = array<i32>} : memref<128x128xf32, #tpu.memory_space<vmem>>, vector<128x128xf32>,
    return
  }
  func.func @transform_0(%arg0: i32) -> (i32, i32) {
    %c0_i32 = arith.constant 0 : i32
    %c0_i32_0 = arith.constant 0 : i32
    return %arg0, %c0_i32 : i32, i32
  }
  func.func @transform_1(%arg0: i32) -> (i32, i32) {
    %c0_i32 = arith.constant 0 : i32
    %c0_i32_0 = arith.constant 0 : i32
    %c0_i32_1 = arith.constant 0 : i32
    return %c0_i32, %c0_i32_0 : i32, i32
  }
  func.func @transform_2(%arg0: i32) -> (i32, i32) {
    %c0_i32 = arith.constant 0 : i32
    %c0_i32_0 = arith.constant 0 : i32
    return %arg0, %c0_i32 : i32, i32
  }
  func.func @transform_3(%arg0: i32) -> (i32, i32) {
    %c0_i32 = arith.constant 0 : i32
    %c0_i32_0 = arith.constant 0 : i32
    return %arg0, %c0_i32 : i32, i32
  }
}

module attributes {stable_mosaic.version = 11 : i64} {
  func.func @_decode_kernel(%arg0: i32, %arg1: i32, %arg2: memref<256x128xf32, #tpu.memory_space<vmem>>, %arg3: memref<128x128xf32, #tpu.memory_space<vmem>>, %arg4: memref<256x128xf32, #tpu.memory_space<vmem>>) attributes {dimension_semantics = [#tpu.dimension_semantics<parallel>, #tpu.dimension_semantics<parallel>], iteration_bounds = array<i64: 1, 1>, scalar_prefetch = 0 : i64, scratch_operands = 0 : i64, tpu.core_type = #tpu.core_type<tc>, window_params = [{transform_indices = @transform_0, window_bounds = array<i64: 256, 128>}, {transform_indices = @transform_1, window_bounds = array<i64: 128, 128>}, {transform_indices = @transform_2, window_bounds = array<i64: 256, 128>}]} {
    %c0 = arith.constant 0 : index
    %c0_0 = arith.constant 0 : index
    %0 = vector.load %arg2[%c0, %c0_0] : memref<256x128xf32, #tpu.memory_space<vmem>>, vector<256x128xf32>
    %c0_1 = arith.constant 0 : index
    %c0_2 = arith.constant 0 : index
    %1 = vector.load %arg3[%c0_1, %c0_2] : memref<128x128xf32, #tpu.memory_space<vmem>>, vector<128x128xf32>
    %cst = arith.constant dense<0.000000e+00> : vector<256x128xf32>
    %2 = tpu.matmul %0, %1, %cst {dimension_numbers = #tpu.dot_dimension_numbers<[1], [1], [0], [0], [0, 0, 1, 0], [], []>} : vector<256x128xf32>, vector<128x128xf32>, vector<256x128xf32> -> vector<256x128xf32>
    %3 = arith.mulf %0, %0 : vector<256x128xf32>
    %cst_3 = arith.constant dense<0.000000e+00> : vector<256xf32>
    %4 = vector.multi_reduction <add>, %3, %cst_3 [1] : vector<256x128xf32> to vector<256xf32>
    %5 = vector.shape_cast %4 : vector<256xf32> to vector<256x1xf32>
    %6 = arith.mulf %1, %1 : vector<128x128xf32>
    %cst_4 = arith.constant dense<0.000000e+00> : vector<128xf32>
    %7 = vector.multi_reduction <add>, %6, %cst_4 [1] : vector<128x128xf32> to vector<128xf32>
    %8 = vector.shape_cast %7 : vector<128xf32> to vector<1x128xf32>
    %9 = vector.broadcast %5 : vector<256x1xf32> to vector<256x128xf32>
    %10 = vector.broadcast %8 : vector<1x128xf32> to vector<256x128xf32>
    %11 = arith.addf %9, %10 : vector<256x128xf32>
    %cst_5 = arith.constant 2.000000e+00 : f32
    %12 = vector.broadcast %cst_5 : f32 to vector<256x128xf32>
    %13 = arith.mulf %12, %2 : vector<256x128xf32>
    %14 = arith.subf %11, %13 : vector<256x128xf32>
    %cst_6 = arith.constant 0.000000e+00 : f32
    %15 = vector.broadcast %cst_6 : f32 to vector<256x128xf32>
    %16 = arith.maximumf %14, %15 : vector<256x128xf32>
    %cst_7 = arith.constant -5.000000e-03 : f32
    %17 = vector.broadcast %cst_7 : f32 to vector<256x128xf32>
    %18 = arith.mulf %17, %16 : vector<256x128xf32>
    %19 = math.exp %18 : vector<256x128xf32>
    %c0_8 = arith.constant 0 : index
    %c0_9 = arith.constant 0 : index
    %20 = vector.load %arg4[%c0_8, %c0_9] : memref<256x128xf32, #tpu.memory_space<vmem>>, vector<256x128xf32>
    tpu.vector_store %arg4[%c0_8, %c0_9], %19 {strides = array<i32>} : memref<256x128xf32, #tpu.memory_space<vmem>>, vector<256x128xf32>,
    return
  }
  func.func @transform_0(%arg0: i32, %arg1: i32) -> (i32, i32) {
    %c0_i32 = arith.constant 0 : i32
    %c0_i32_0 = arith.constant 0 : i32
    return %arg0, %c0_i32 : i32, i32
  }
  func.func @transform_1(%arg0: i32, %arg1: i32) -> (i32, i32) {
    %c0_i32 = arith.constant 0 : i32
    %c0_i32_0 = arith.constant 0 : i32
    return %arg1, %c0_i32 : i32, i32
  }
  func.func @transform_2(%arg0: i32, %arg1: i32) -> (i32, i32) {
    %c0_i32 = arith.constant 0 : i32
    return %arg0, %arg1 : i32, i32
  }
}

</mosaic_0001>

<llo_original>
// kernel: vbgae_forward.8
$region0: #{vbgae_forward.8}
  #allocation0 [shape = 'u32[]', space=smem, size = 0x4, offset = 0x4, fixed_abs, tag = 'smem constant byte address 0x4 - core index']
  #allocation1 [shape = 'u32[144,128]{1,0:T(1,128)}', space=vmem, size = 0x12000, scoped, tag = 'internal scratch']
  %s0 = inlined_call_operand.vmem [shape: bf16[256,128], index: 0, kind: input, shape index: {}]
  %s1 = inlined_call_operand.vmem [shape: f32[256,256], index: 1, kind: input, shape index: {}]
  %s2 = inlined_call_operand.vmem [shape: f32[128,128], index: 2, kind: input, shape index: {}]
  %s3 = inlined_call_operand.vmem [shape: f32[128,128], index: 3, kind: output, shape index: {}]
  %s4 = sld [smem:[#allocation0]]
  $region22: #{vbgae_forward.8} parent=0
    _
  %s6 = ssub.s32 1, %s4
  %s7 = scalar_select 0, %s6, %s4
  // Predicated region
  $region2: #{vbgae_forward.8} parent=0 // pred_check
    _
  $region3: #{vbgae_forward.8} parent=0 // pred_check_branch
    %9 = sbr.rel (0) target = $region5
  $region4: #{vbgae_forward.8} parent=0 // pred_region
    _
  $region5: #{vbgae_forward.8} parent=0 // pred_fallthru
    _
  // Predicated region
  $region6: #{vbgae_forward.8} parent=0 // pred_check
    _
  $region7: #{vbgae_forward.8} parent=0 // pred_check_branch
    %11 = sbr.rel (0) target = $region9
  $region8: #{vbgae_forward.8} parent=0 // pred_region
    _
  $region9: #{vbgae_forward.8} parent=0 // pred_fallthru
    _
  // Predicated region
  $region10: #{vbgae_forward.8} parent=0 // pred_check
    _
  $region11: #{vbgae_forward.8} parent=0 // pred_check_branch
    %13 = sbr.rel (0) target = $region13
  $region12: #{vbgae_forward.8} parent=0 // pred_region
    _
  $region13: #{vbgae_forward.8} parent=0 // pred_fallthru
    _
  %v14 = vld [vmem:[%s1] sm:$0xff]
  %v15 = vld [vmem:[%s1 + $0x8] sm:$0xff]
  %v16 = vld [vmem:[%s1 + $0x10] sm:$0xff]
  %v17 = vld [vmem:[%s1 + $0x18] sm:$0xff]
  %v18 = vld [vmem:[%s1 + $0x20] sm:$0xff]
  %v19 = vld [vmem:[%s1 + $0x28] sm:$0xff]
  %v20 = vld [vmem:[%s1 + $0x30] sm:$0xff]
  %v21 = vld [vmem:[%s1 + $0x38] sm:$0xff]
  %v22 = vld [vmem:[%s1 + $0x40] sm:$0xff]
  %v23 = vld [vmem:[%s1 + $0x48] sm:$0xff]
  %v24 = vld [vmem:[%s1 + $0x50] sm:$0xff]
  %v25 = vld [vmem:[%s1 + $0x58] sm:$0xff]
  %v26 = vld [vmem:[%s1 + $0x60] sm:$0xff]
  %v27 = vld [vmem:[%s1 + $0x68] sm:$0xff]
  %v28 = vld [vmem:[%s1 + $0x70] sm:$0xff]
  %v29 = vld [vmem:[%s1 + $0x78] sm:$0xff]
  %v30 = vld [vmem:[%s1 + $0x80] sm:$0xff]
  %v31 = vld [vmem:[%s1 + $0x88] sm:$0xff]
  %v32 = vld [vmem:[%s1 + $0x90] sm:$0xff]
  %v33 = vld [vmem:[%s1 + $0x98] sm:$0xff]
  %v34 = vld [vmem:[%s1 + $0xa0] sm:$0xff]
  %v35 = vld [vmem:[%s1 + $0xa8] sm:$0xff]
  %v36 = vld [vmem:[%s1 + $0xb0] sm:$0xff]
  %v37 = vld [vmem:[%s1 + $0xb8] sm:$0xff]
  %v38 = vld [vmem:[%s1 + $0xc0] sm:$0xff]
  %v39 = vld [vmem:[%s1 + $0xc8] sm:$0xff]
  %v40 = vld [vmem:[%s1 + $0xd0] sm:$0xff]
  %v41 = vld [vmem:[%s1 + $0xd8] sm:$0xff]
  %v42 = vld [vmem:[%s1 + $0xe0] sm:$0xff]
  %v43 = vld [vmem:[%s1 + $0xe8] sm:$0xff]
  %v44 = vld [vmem:[%s1 + $0xf0] sm:$0xff]
  %v45 = vld [vmem:[%s1 + $0xf8] sm:$0xff]
  %v46 = vld [vmem:[%s1 + $0x100] sm:$0xff]
  %v47 = vld [vmem:[%s1 + $0x108] sm:$0xff]
  %v48 = vld [vmem:[%s1 + $0x110] sm:$0xff]
  %v49 = vld [vmem:[%s1 + $0x118] sm:$0xff]
  %v50 = vld [vmem:[%s1 + $0x120] sm:$0xff]
  %v51 = vld [vmem:[%s1 + $0x128] sm:$0xff]
  %v52 = vld [vmem:[%s1 + $0x130] sm:$0xff]
  %v53 = vld [vmem:[%s1 + $0x138] sm:$0xff]
  %v54 = vld [vmem:[%s1 + $0x140] sm:$0xff]
  %v55 = vld [vmem:[%s1 + $0x148] sm:$0xff]
  %v56 = vld [vmem:[%s1 + $0x150] sm:$0xff]
  %v57 = vld [vmem:[%s1 + $0x158] sm:$0xff]
  %v58 = vld [vmem:[%s1 + $0x160] sm:$0xff]
  %v59 = vld [vmem:[%s1 + $0x168] sm:$0xff]
  %v60 = vld [vmem:[%s1 + $0x170] sm:$0xff]
  %v61 = vld [vmem:[%s1 + $0x178] sm:$0xff]
  %v62 = vld [vmem:[%s1 + $0x180] sm:$0xff]
  %v63 = vld [vmem:[%s1 + $0x188] sm:$0xff]
  %v64 = vld [vmem:[%s1 + $0x190] sm:$0xff]
  %v65 = vld [vmem:[%s1 + $0x198] sm:$0xff]
  %v66 = vld [vmem:[%s1 + $0x1a0] sm:$0xff]
  %v67 = vld [vmem:[%s1 + $0x1a8] sm:$0xff]
  %v68 = vld [vmem:[%s1 + $0x1b0] sm:$0xff]
  %v69 = vld [vmem:[%s1 + $0x1b8] sm:$0xff]
  %v70 = vld [vmem:[%s1 + $0x1c0] sm:$0xff]
  %v71 = vld [vmem:[%s1 + $0x1c8] sm:$0xff]
  %v72 = vld [vmem:[%s1 + $0x1d0] sm:$0xff]
  %v73 = vld [vmem:[%s1 + $0x1d8] sm:$0xff]
  %v74 = vld [vmem:[%s1 + $0x1e0] sm:$0xff]
  %v75 = vld [vmem:[%s1 + $0x1e8] sm:$0xff]
  %v76 = vld [vmem:[%s1 + $0x1f0] sm:$0xff]
  %v77 = vld [vmem:[%s1 + $0x1f8] sm:$0xff]
  %v78 = vpack.c.bf16 %v16, %v14
  %v79 = vpack.c.bf16 %v17, %v15
  %v80 = vpack.c.bf16 %v20, %v18
  %v81 = vpack.c.bf16 %v21, %v19
  %v82 = vpack.c.bf16 %v24, %v22
  %v83 = vpack.c.bf16 %v25, %v23
  %v84 = vpack.c.bf16 %v28, %v26
  %v85 = vpack.c.bf16 %v29, %v27
  %v86 = vpack.c.bf16 %v32, %v30
  %v87 = vpack.c.bf16 %v33, %v31
  %v88 = vpack.c.bf16 %v36, %v34
  %v89 = vpack.c.bf16 %v37, %v35
  %v90 = vpack.c.bf16 %v40, %v38
  %v91 = vpack.c.bf16 %v41, %v39
  %v92 = vpack.c.bf16 %v44, %v42
  %v93 = vpack.c.bf16 %v45, %v43
  %v94 = vpack.c.bf16 %v48, %v46
  %v95 = vpack.c.bf16 %v49, %v47
  %v96 = vpack.c.bf16 %v52, %v50
  %v97 = vpack.c.bf16 %v53, %v51
  %v98 = vpack.c.bf16 %v56, %v54
  %v99 = vpack.c.bf16 %v57, %v55
  %v100 = vpack.c.bf16 %v60, %v58
  %v101 = vpack.c.bf16 %v61, %v59
  %v102 = vpack.c.bf16 %v64, %v62
  %v103 = vpack.c.bf16 %v65, %v63
  %v104 = vpack.c.bf16 %v68, %v66
  %v105 = vpack.c.bf16 %v69, %v67
  %v106 = vpack.c.bf16 %v72, %v70
  %v107 = vpack.c.bf16 %v73, %v71
  %v108 = vpack.c.bf16 %v76, %v74
  %v109 = vpack.c.bf16 %v77, %v75
  %v110 = vld [vmem:[%s0] sm:$0xf]
  %v111 = vld [vmem:[%s0 + $0x4] sm:$0xf]
  %v112 = vld [vmem:[%s0 + $0x8] sm:$0xf]
  %v113 = vld [vmem:[%s0 + $0xc] sm:$0xf]
  %v114 = vld [vmem:[%s0 + $0x10] sm:$0xf]
  %v115 = vld [vmem:[%s0 + $0x14] sm:$0xf]
  %v116 = vld [vmem:[%s0 + $0x18] sm:$0xf]
  %v117 = vld [vmem:[%s0 + $0x1c] sm:$0xf]
  %v118 = vld [vmem:[%s0 + $0x20] sm:$0xf]
  %v119 = vld [vmem:[%s0 + $0x24] sm:$0xf]
  %v120 = vld [vmem:[%s0 + $0x28] sm:$0xf]
  %v121 = vld [vmem:[%s0 + $0x2c] sm:$0xf]
  %v122 = vld [vmem:[%s0 + $0x30] sm:$0xf]
  %v123 = vld [vmem:[%s0 + $0x34] sm:$0xf]
  %v124 = vld [vmem:[%s0 + $0x38] sm:$0xf]
  %v125 = vld [vmem:[%s0 + $0x3c] sm:$0xf]
  %v126 = vld [vmem:[%s0 + $0x40] sm:$0xf]
  %v127 = vld [vmem:[%s0 + $0x44] sm:$0xf]
  %v128 = vld [vmem:[%s0 + $0x48] sm:$0xf]
  %v129 = vld [vmem:[%s0 + $0x4c] sm:$0xf]
  %v130 = vld [vmem:[%s0 + $0x50] sm:$0xf]
  %v131 = vld [vmem:[%s0 + $0x54] sm:$0xf]
  %v132 = vld [vmem:[%s0 + $0x58] sm:$0xf]
  %v133 = vld [vmem:[%s0 + $0x5c] sm:$0xf]
  %v134 = vld [vmem:[%s0 + $0x60] sm:$0xf]
  %v135 = vld [vmem:[%s0 + $0x64] sm:$0xf]
  %v136 = vld [vmem:[%s0 + $0x68] sm:$0xf]
  %v137 = vld [vmem:[%s0 + $0x6c] sm:$0xf]
  %v138 = vld [vmem:[%s0 + $0x70] sm:$0xf]
  %v139 = vld [vmem:[%s0 + $0x74] sm:$0xf]
  %v140 = vld [vmem:[%s0 + $0x78] sm:$0xf]
  %v141 = vld [vmem:[%s0 + $0x7c] sm:$0xf]
  %v174 = vunpack.c.l.b16 %v110
  %v175 = vunpack.c.l.b16 %v111
  %v176 = vunpack.c.l.b16 %v112
  %v177 = vunpack.c.l.b16 %v113
  %v178 = vunpack.c.l.b16 %v114
  %v179 = vunpack.c.l.b16 %v115
  %v180 = vunpack.c.l.b16 %v116
  %v181 = vunpack.c.l.b16 %v117
  %v182 = vunpack.c.l.b16 %v118
  %v183 = vunpack.c.l.b16 %v119
  %v184 = vunpack.c.l.b16 %v120
  %v185 = vunpack.c.l.b16 %v121
  %v186 = vunpack.c.l.b16 %v122
  %v187 = vunpack.c.l.b16 %v123
  %v188 = vunpack.c.l.b16 %v124
  %v189 = vunpack.c.l.b16 %v125
  %v190 = vunpack.c.l.b16 %v126
  %v191 = vunpack.c.l.b16 %v127
  %v192 = vunpack.c.l.b16 %v128
  %v193 = vunpack.c.l.b16 %v129
  %v194 = vunpack.c.l.b16 %v130
  %v195 = vunpack.c.l.b16 %v131
  %v196 = vunpack.c.l.b16 %v132
  %v197 = vunpack.c.l.b16 %v133
  %v198 = vunpack.c.l.b16 %v134
  %v199 = vunpack.c.l.b16 %v135
  %v200 = vunpack.c.l.b16 %v136
  %v201 = vunpack.c.l.b16 %v137
  %v202 = vunpack.c.l.b16 %v138
  %v203 = vunpack.c.l.b16 %v139
  %v204 = vunpack.c.l.b16 %v140
  %v205 = vunpack.c.l.b16 %v141
  %v206 = vpack.c.b16 %v175, %v174
  %v207 = vpack.c.b16 %v177, %v176
  %v208 = vpack.c.b16 %v179, %v178
  %v209 = vpack.c.b16 %v181, %v180
  %v210 = vpack.c.b16 %v183, %v182
  %v211 = vpack.c.b16 %v185, %v184
  %v212 = vpack.c.b16 %v187, %v186
  %v213 = vpack.c.b16 %v189, %v188
  %v214 = vpack.c.b16 %v191, %v190
  %v215 = vpack.c.b16 %v193, %v192
  %v216 = vpack.c.b16 %v195, %v194
  %v217 = vpack.c.b16 %v197, %v196
  %v218 = vpack.c.b16 %v199, %v198
  %v219 = vpack.c.b16 %v201, %v200
  %v220 = vpack.c.b16 %v203, %v202
  %v221 = vpack.c.b16 %v205, %v204
  %238 = vxpose.xlu0.c.b16.start [1/8] %v206, 128
  %239 = vxpose.xlu0.c.b16.cont [2/8] %v207, 128
  %240 = vxpose.xlu0.c.b16.cont [3/8] %v208, 128
  %241 = vxpose.xlu0.c.b16.cont [4/8] %v209, 128
  %242 = vxpose.xlu0.c.b16.cont [5/8] %v210, 128
  %243 = vxpose.xlu0.c.b16.cont [6/8] %v211, 128
  %244 = vxpose.xlu0.c.b16.cont [7/8] %v212, 128
  %245 = vxpose.xlu0.c.b16.end [8/8] %v213, 128
  %v246 = vpop.trf.xlu0
  %v247 = vpop.trf.xlu0
  %v248 = vpop.trf.xlu0
  %v249 = vpop.trf.xlu0
  %v250 = vpop.trf.xlu0
  %v251 = vpop.trf.xlu0
  %v252 = vpop.trf.xlu0
  %v253 = vpop.trf.xlu0
  %254 = vxpose.xlu0.c.b16.start [1/8] %v214, 128
  %255 = vxpose.xlu0.c.b16.cont [2/8] %v215, 128
  %256 = vxpose.xlu0.c.b16.cont [3/8] %v216, 128
  %257 = vxpose.xlu0.c.b16.cont [4/8] %v217, 128
  %258 = vxpose.xlu0.c.b16.cont [5/8] %v218, 128
  %259 = vxpose.xlu0.c.b16.cont [6/8] %v219, 128
  %260 = vxpose.xlu0.c.b16.cont [7/8] %v220, 128
  %261 = vxpose.xlu0.c.b16.end [8/8] %v221, 128
  %v262 = vpop.trf.xlu0
  %v263 = vpop.trf.xlu0
  %v264 = vpop.trf.xlu0
  %v265 = vpop.trf.xlu0
  %v266 = vpop.trf.xlu0
  %v267 = vpop.trf.xlu0
  %v268 = vpop.trf.xlu0
  %v269 = vpop.trf.xlu0
  %270 = vmatprep.subr.bf16.mxu0 %v79
  %271 = vmatpush1.bf16.msra.mxu0 %v78
  %272 = vmatprep.subr.bf16.mxu0 %v81
  %273 = vmatpush1.bf16.msra.mxu0 %v80
  %274 = vmatprep.subr.bf16.mxu0 %v83
  %275 = vmatpush1.bf16.msra.mxu0 %v82
  %276 = vmatprep.subr.bf16.mxu0 %v85
  %277 = vmatpush1.bf16.msra.mxu0 %v84
  %278 = vmatprep.subr.bf16.mxu0 %v87
  %279 = vmatpush1.bf16.msra.mxu0 %v86
  %280 = vmatprep.subr.bf16.mxu0 %v89
  %281 = vmatpush1.bf16.msra.mxu0 %v88
  %282 = vmatprep.subr.bf16.mxu0 %v91
  %283 = vmatpush1.bf16.msra.mxu0 %v90
  %284 = vmatprep.subr.bf16.mxu0 %v93
  %285 = vmatpush1.bf16.msra.mxu0 %v92
  %286 = vmatprep.subr.bf16.mxu0 %v95
  %287 = vmatpush1.bf16.msra.mxu0 %v94
  %288 = vmatprep.subr.bf16.mxu0 %v97
  %289 = vmatpush1.bf16.msra.mxu0 %v96
  %290 = vmatprep.subr.bf16.mxu0 %v99
  %291 = vmatpush1.bf16.msra.mxu0 %v98
  %292 = vmatprep.subr.bf16.mxu0 %v101
  %293 = vmatpush1.bf16.msra.mxu0 %v100
  %294 = vmatprep.subr.bf16.mxu0 %v103
  %295 = vmatpush1.bf16.msra.mxu0 %v102
  %296 = vmatprep.subr.bf16.mxu0 %v105
  %297 = vmatpush1.bf16.msra.mxu0 %v104
  %298 = vmatprep.subr.bf16.mxu0 %v107
  %299 = vmatpush1.bf16.msra.mxu0 %v106
  %300 = vmatprep.subr.bf16.mxu0 %v109
  %301 = vmatpush1.bf16.msra.mxu0 %v108
  %302 = vmatprep.mubr.bf16.mxu0 %v262
  %303 = vmatmul.mubr.bf16.gmra.mrb[0].mxu0 %v246
  %v304 = vpop.f32.mrb[0].mxu0
  %v305 = vadd.f32 0.0, %v304
  %v306 = vpop.f32.mrb[0].mxu0
  %v307 = vadd.f32 0.0, %v306
  %v308 = vpop.f32.mrb[0].mxu0
  %v309 = vadd.f32 0.0, %v308
  %v310 = vpop.f32.mrb[0].mxu0
  %v311 = vadd.f32 0.0, %v310
  %312 = vmatprep.mubr.bf16.mxu0 %v263
  %313 = vmatmul.mubr.bf16.gmra.mrb[0].mxu0 %v247
  %v314 = vpop.f32.mrb[0].mxu0
  %v315 = vadd.f32 0.0, %v314
  %v316 = vpop.f32.mrb[0].mxu0
  %v317 = vadd.f32 0.0, %v316
  %v318 = vpop.f32.mrb[0].mxu0
  %v319 = vadd.f32 0.0, %v318
  %v320 = vpop.f32.mrb[0].mxu0
  %v321 = vadd.f32 0.0, %v320
  %322 = vmatprep.mubr.bf16.mxu0 %v264
  %323 = vmatmul.mubr.bf16.gmra.mrb[0].mxu0 %v248
  %v324 = vpop.f32.mrb[0].mxu0
  %v325 = vadd.f32 0.0, %v324
  %v326 = vpop.f32.mrb[0].mxu0
  %v327 = vadd.f32 0.0, %v326
  %v328 = vpop.f32.mrb[0].mxu0
  %v329 = vadd.f32 0.0, %v328
  %v330 = vpop.f32.mrb[0].mxu0
  %v331 = vadd.f32 0.0, %v330
  %332 = vmatprep.mubr.bf16.mxu0 %v265
  %333 = vmatmul.mubr.bf16.gmra.mrb[0].mxu0 %v249
  %v334 = vpop.f32.mrb[0].mxu0
  %v335 = vadd.f32 0.0, %v334
  %v336 = vpop.f32.mrb[0].mxu0
  %v337 = vadd.f32 0.0, %v336
  %v338 = vpop.f32.mrb[0].mxu0
  %v339 = vadd.f32 0.0, %v338
  %v340 = vpop.f32.mrb[0].mxu0
  %v341 = vadd.f32 0.0, %v340
  %342 = vmatprep.mubr.bf16.mxu0 %v266
  %343 = vmatmul.mubr.bf16.gmra.mrb[0].mxu0 %v250
  %v344 = vpop.f32.mrb[0].mxu0
  %v345 = vadd.f32 0.0, %v344
  %v346 = vpop.f32.mrb[0].mxu0
  %v347 = vadd.f32 0.0, %v346
  %v348 = vpop.f32.mrb[0].mxu0
  %v349 = vadd.f32 0.0, %v348
  %v350 = vpop.f32.mrb[0].mxu0
  %v351 = vadd.f32 0.0, %v350
  %352 = vmatprep.mubr.bf16.mxu0 %v267
  %353 = vmatmul.mubr.bf16.gmra.mrb[0].mxu0 %v251
  %v354 = vpop.f32.mrb[0].mxu0
  %v355 = vadd.f32 0.0, %v354
  %v356 = vpop.f32.mrb[0].mxu0
  %v357 = vadd.f32 0.0, %v356
  %v358 = vpop.f32.mrb[0].mxu0
  %v359 = vadd.f32 0.0, %v358
  %v360 = vpop.f32.mrb[0].mxu0
  %v361 = vadd.f32 0.0, %v360
  %362 = vmatprep.mubr.bf16.mxu0 %v268
  %363 = vmatmul.mubr.bf16.gmra.mrb[0].mxu0 %v252
  %v364 = vpop.f32.mrb[0].mxu0
  %v365 = vadd.f32 0.0, %v364
  %v366 = vpop.f32.mrb[0].mxu0
  %v367 = vadd.f32 0.0, %v366
  %v368 = vpop.f32.mrb[0].mxu0
  %v369 = vadd.f32 0.0, %v368
  %v370 = vpop.f32.mrb[0].mxu0
  %v371 = vadd.f32 0.0, %v370
  %372 = vmatprep.mubr.bf16.mxu0 %v269
  %373 = vmatmul.mubr.bf16.gmra.mrb[0].mxu0 %v253
  %v374 = vpop.f32.mrb[0].mxu0
  %v375 = vadd.f32 0.0, %v374
  %v376 = vpop.f32.mrb[0].mxu0
  %v377 = vadd.f32 0.0, %v376
  %v378 = vpop.f32.mrb[0].mxu0
  %v379 = vadd.f32 0.0, %v378
  %v380 = vpop.f32.mrb[0].mxu0
  %v381 = vadd.f32 0.0, %v380
  %382 = vdwg.mxu0
  %v383 = vld [vmem:[%s2] sm:$0xff]
  %v384 = vld [vmem:[%s2 + $0x8] sm:$0xff]
  %v385 = vld [vmem:[%s2 + $0x10] sm:$0xff]
  %v386 = vld [vmem:[%s2 + $0x18] sm:$0xff]
  %v387 = vld [vmem:[%s2 + $0x20] sm:$0xff]
  %v388 = vld [vmem:[%s2 + $0x28] sm:$0xff]
  %v389 = vld [vmem:[%s2 + $0x30] sm:$0xff]
  %v390 = vld [vmem:[%s2 + $0x38] sm:$0xff]
  %v391 = vld [vmem:[%s2 + $0x40] sm:$0xff]
  %v392 = vld [vmem:[%s2 + $0x48] sm:$0xff]
  %v393 = vld [vmem:[%s2 + $0x50] sm:$0xff]
  %v394 = vld [vmem:[%s2 + $0x58] sm:$0xff]
  %v395 = vld [vmem:[%s2 + $0x60] sm:$0xff]
  %v396 = vld [vmem:[%s2 + $0x68] sm:$0xff]
  %v397 = vld [vmem:[%s2 + $0x70] sm:$0xff]
  %v398 = vld [vmem:[%s2 + $0x78] sm:$0xff]
  %v399 = vmul.f32 %v307, 1.442695
  %v400 = vpow.pop %v399
  %v401 = vmul.f32 %v311, 1.442695
  %v402 = vpow.pop %v401
  %v403 = vmul.f32 %v317, 1.442695
  %v404 = vpow.pop %v403
  %v405 = vmul.f32 %v321, 1.442695
  %v406 = vpow.pop %v405
  %v407 = vmul.f32 %v327, 1.442695
  %v408 = vpow.pop %v407
  %v409 = vmul.f32 %v331, 1.442695
  %v410 = vpow.pop %v409
  %v411 = vmul.f32 %v337, 1.442695
  %v412 = vpow.pop %v411
  %v413 = vmul.f32 %v341, 1.442695
  %v414 = vpow.pop %v413
  %v415 = vmul.f32 %v347, 1.442695
  %v416 = vpow.pop %v415
  %v417 = vmul.f32 %v351, 1.442695
  %v418 = vpow.pop %v417
  %v419 = vmul.f32 %v357, 1.442695
  %v420 = vpow.pop %v419
  %v421 = vmul.f32 %v361, 1.442695
  %v422 = vpow.pop %v421
  %v423 = vmul.f32 %v367, 1.442695
  %v424 = vpow.pop %v423
  %v425 = vmul.f32 %v371, 1.442695
  %v426 = vpow.pop %v425
  %v427 = vmul.f32 %v377, 1.442695
  %v428 = vpow.pop %v427
  %v429 = vmul.f32 %v381, 1.442695
  %v430 = vpow.pop %v429
  %v431 = vmul.f32 %v383, %v400
  %v432 = vmul.f32 %v384, %v402
  %v433 = vmul.f32 %v385, %v404
  %v434 = vmul.f32 %v386, %v406
  %v435 = vmul.f32 %v387, %v408
  %v436 = vmul.f32 %v388, %v410
  %v437 = vmul.f32 %v389, %v412
  %v438 = vmul.f32 %v390, %v414
  %v439 = vmul.f32 %v391, %v416
  %v440 = vmul.f32 %v392, %v418
  %v441 = vmul.f32 %v393, %v420
  %v442 = vmul.f32 %v394, %v422
  %v443 = vmul.f32 %v395, %v424
  %v444 = vmul.f32 %v396, %v426
  %v445 = vmul.f32 %v397, %v428
  %v446 = vmul.f32 %v398, %v430
  %v447 = vadd.f32 %v431, %v305
  %v448 = vadd.f32 %v432, %v309
  %v449 = vadd.f32 %v433, %v315
  %v450 = vadd.f32 %v434, %v319
  %v451 = vadd.f32 %v435, %v325
  %v452 = vadd.f32 %v436, %v329
  %v453 = vadd.f32 %v437, %v335
  %v454 = vadd.f32 %v438, %v339
  %v455 = vadd.f32 %v439, %v345
  %v456 = vadd.f32 %v440, %v349
  %v457 = vadd.f32 %v441, %v355
  %v458 = vadd.f32 %v442, %v359
  %v459 = vadd.f32 %v443, %v365
  %v460 = vadd.f32 %v444, %v369
  %v461 = vadd.f32 %v445, %v375
  %v462 = vadd.f32 %v446, %v379
  %463 = vst [vmem:[%s3] sm:$0xff] %v447
  %464 = vst [vmem:[%s3 + $0x8] sm:$0xff] %v448
  %465 = vst [vmem:[%s3 + $0x10] sm:$0xff] %v449
  %466 = vst [vmem:[%s3 + $0x18] sm:$0xff] %v450
  %467 = vst [vmem:[%s3 + $0x20] sm:$0xff] %v451
  %468 = vst [vmem:[%s3 + $0x28] sm:$0xff] %v452
  %469 = vst [vmem:[%s3 + $0x30] sm:$0xff] %v453
  %470 = vst [vmem:[%s3 + $0x38] sm:$0xff] %v454
  %471 = vst [vmem:[%s3 + $0x40] sm:$0xff] %v455
  %472 = vst [vmem:[%s3 + $0x48] sm:$0xff] %v456
  %473 = vst [vmem:[%s3 + $0x50] sm:$0xff] %v457
  %474 = vst [vmem:[%s3 + $0x58] sm:$0xff] %v458
  %475 = vst [vmem:[%s3 + $0x60] sm:$0xff] %v459
  %476 = vst [vmem:[%s3 + $0x68] sm:$0xff] %v460
  %477 = vst [vmem:[%s3 + $0x70] sm:$0xff] %v461
  %478 = vst [vmem:[%s3 + $0x78] sm:$0xff] %v462
  // Predicated region
  $region14: #{vbgae_forward.8} parent=0 // pred_check
    _
  $region15: #{vbgae_forward.8} parent=0 // pred_check_branch
    %480 = sbr.rel (0) target = $region17
  $region16: #{vbgae_forward.8} parent=0 // pred_region
    _
  $region17: #{vbgae_forward.8} parent=0 // pred_fallthru
    _
  // Predicated region
  $region18: #{vbgae_forward.8} parent=0 // pred_check
    _
  $region19: #{vbgae_forward.8} parent=0 // pred_check_branch
    %482 = sbr.rel (0) target = $region21
  $region20: #{vbgae_forward.8} parent=0 // pred_region
    _
  $region21: #{vbgae_forward.8} parent=0 // pred_fallthru
    _

// kernel: vbgae_forward.6
$region0: #{vbgae_forward.6}
  #allocation0 [shape = 'u32[]', space=smem, size = 0x4, offset = 0x4, fixed_abs, tag = 'smem constant byte address 0x4 - core index']
  #allocation1 [shape = 'u32[144,128]{1,0:T(1,128)}', space=vmem, size = 0x12000, scoped, tag = 'internal scratch']
  %s0 = inlined_call_operand.vmem [shape: bf16[256,128], index: 0, kind: input, shape index: {}]
  %s1 = inlined_call_operand.vmem [shape: f32[128,256], index: 1, kind: input, shape index: {}]
  %s2 = inlined_call_operand.vmem [shape: f32[256,128], index: 2, kind: input, shape index: {}]
  %s3 = inlined_call_operand.vmem [shape: f32[256,128], index: 3, kind: output, shape index: {}]
  %s4 = sld [smem:[#allocation0]]
  $region45: #{vbgae_forward.6} parent=0
    _
  %s6 = ssub.s32 1, %s4
  %s7 = scalar_select 0, %s6, %s4
  loop: start=0, step=1, limit=4
  $region2: #{vbgae_forward.6} parent=0 // loop_pre_header
    _
  $region3: #{vbgae_forward.6} parent=0 // loop_header
    %s9 = sphi 0, %s13
    %p10 = scmp.ge.s32.totalorder %s9, 4
    %s19 = sphi 0, %s21
    %s22 = sphi 0, %s19
    %s23 = sphi 0, %s22
    %s39 = sphi 0, %s23
    %s43 = sphi 0, %s43
    %s45 = sphi 0, %s43
    %s46 = sphi 0, %s45
    %s60 = sphi 0, %s46
    %s66 = sphi 0, %s68
    %s69 = sphi 0, %s66
    %s70 = sphi 0, %s69
    %s86 = sphi 0, %s70
    %s92 = sphi 0, %s94
    %s95 = sphi 0, %s92
    %s96 = sphi 0, %s95
    %s112 = sphi 0, %s96
  $region4: #{vbgae_forward.6} parent=0 // loop_header_branch
    %12 = sbr.rel (%p10) target = $region8
  $region5: #{vbgae_forward.6} parent=0 // loop_body
    %s14 = ssub.s32 %s9, 1
    %s15 = ssub.s32 %s9, 2
    %s16 = sadd.s32 %s9, 1
    %s17 = ssub.s32 %s9, %s16
    %p18 = scmp.eq.s32.totalorder %s17, 0
    %s20 = sadd.s32 %s19, 1
    %s21 = scalar_select %p18, %s19, %s20
    %p24 = pneg %p18
    %p25 = scmp.eq.s32.totalorder %s9, 1
    %p26 = por %p24, %p25
    %p27 = scmp.ne.s32.totalorder %s19, %s22
    %p28 = scmp.eq.s32.totalorder %s9, 0
    %p29 = por %p27, %p28
    %p30 = scmp.ne.s32.totalorder %s19, %s22
    %p31 = scmp.eq.s32.totalorder %s14, 1
    %p32 = por %p30, %p31
    %p33 = scmp.ne.s32.totalorder %s22, %s23
    %p34 = scmp.eq.s32.totalorder %s14, 0
    %p35 = por %p33, %p34
    %p36 = scmp.ne.s32.totalorder %s22, %s23
    %p37 = scmp.eq.s32.totalorder %s15, 1
    %p38 = por %p36, %p37
    %p40 = scmp.ne.s32.totalorder %s23, %s39
    %p41 = scmp.eq.s32.totalorder %s15, 0
    %p42 = por %p40, %p41
    %s44 = sadd.s32 %s43, 1
    %p47 = scmp.eq.s32.totalorder %s9, 1
    %p48 = scmp.ne.s32.totalorder %s43, %s45
    %p49 = scmp.eq.s32.totalorder %s9, 0
    %p50 = por %p48, %p49
    %p51 = scmp.ne.s32.totalorder %s43, %s45
    %p52 = scmp.eq.s32.totalorder %s14, 1
    %p53 = por %p51, %p52
    %p54 = scmp.ne.s32.totalorder %s45, %s46
    %p55 = scmp.eq.s32.totalorder %s14, 0
    %p56 = por %p54, %p55
    %p57 = scmp.ne.s32.totalorder %s45, %s46
    %p58 = scmp.eq.s32.totalorder %s15, 1
    %p59 = por %p57, %p58
    %p61 = scmp.ne.s32.totalorder %s46, %s60
    %p62 = scmp.eq.s32.totalorder %s15, 0
    %p63 = por %p61, %p62
    %s64 = ssub.s32 %s9, %s16
    %p65 = scmp.eq.s32.totalorder %s64, 0
    %s67 = sadd.s32 %s66, 1
    %s68 = scalar_select %p65, %s66, %s67
    %p71 = pneg %p65
    %p72 = scmp.eq.s32.totalorder %s9, 1
    %p73 = por %p71, %p72
    %p74 = scmp.ne.s32.totalorder %s66, %s69
    %p75 = scmp.eq.s32.totalorder %s9, 0
    %p76 = por %p74, %p75
    %p77 = scmp.ne.s32.totalorder %s66, %s69
    %p78 = scmp.eq.s32.totalorder %s14, 1
    %p79 = por %p77, %p78
    %p80 = scmp.ne.s32.totalorder %s69, %s70
    %p81 = scmp.eq.s32.totalorder %s14, 0
    %p82 = por %p80, %p81
    %p83 = scmp.ne.s32.totalorder %s69, %s70
    %p84 = scmp.eq.s32.totalorder %s15, 1
    %p85 = por %p83, %p84
    %p87 = scmp.ne.s32.totalorder %s70, %s86
    %p88 = scmp.eq.s32.totalorder %s15, 0
    %p89 = por %p87, %p88
    %s90 = ssub.s32 %s9, %s16
    %p91 = scmp.eq.s32.totalorder %s90, 0
    %s93 = sadd.s32 %s92, 1
    %s94 = scalar_select %p91, %s92, %s93
    %p97 = pneg %p91
    %p98 = scmp.eq.s32.totalorder %s9, 1
    %p99 = por %p97, %p98
    %p100 = scmp.ne.s32.totalorder %s92, %s95
    %p101 = scmp.eq.s32.totalorder %s9, 0
    %p102 = por %p100, %p101
    %p103 = scmp.ne.s32.totalorder %s92, %s95
    %p104 = scmp.eq.s32.totalorder %s14, 1
    %p105 = por %p103, %p104
    %p106 = scmp.ne.s32.totalorder %s95, %s96
    %p107 = scmp.eq.s32.totalorder %s14, 0
    %p108 = por %p106, %p107
    %p109 = scmp.ne.s32.totalorder %s95, %s96
    %p110 = scmp.eq.s32.totalorder %s15, 1
    %p111 = por %p109, %p110
    %p113 = scmp.ne.s32.totalorder %s96, %s112
    %p114 = scmp.eq.s32.totalorder %s15, 0
    %p115 = por %p113, %p114
    %p116 = scmp.le.s32.totalorder 1, %s9
    %p117 = scmp.lt.s32.totalorder %s9, 3
    %p118 = pnand %p116, %p117
    %p119 = pneg %p118
    // Predicated region
    $region9: #{vbgae_forward.6} parent=5 // pred_check
      _
    $region10: #{vbgae_forward.6} parent=5 // pred_check_branch
      %121 = sbr.rel (%p118) target = $region12
    $region11: #{vbgae_forward.6} parent=5 // pred_region
      %s122 = ssub.s32 %s9, 1
      // Predicated region
      $region13: #{vbgae_forward.6} parent=11 // pred_check
        %p123 = pneg %p56
      $region14: #{vbgae_forward.6} parent=11 // pred_check_branch
        %125 = sbr.rel (%p123) target = $region16
      $region15: #{vbgae_forward.6} parent=11 // pred_region
        _
      $region16: #{vbgae_forward.6} parent=11 // pred_fallthru
        _
    $region12: #{vbgae_forward.6} parent=5 // pred_fallthru
      _
    %p126 = scmp.lt.s32.totalorder %s9, 2
    // Predicated region
    $region17: #{vbgae_forward.6} parent=5 // pred_check
      %p127 = pneg %p126
    $region18: #{vbgae_forward.6} parent=5 // pred_check_branch
      %129 = sbr.rel (%p127) target = $region20
    $region19: #{vbgae_forward.6} parent=5 // pred_region
      // Predicated region
      $region21: #{vbgae_forward.6} parent=19 // pred_check
        %p130 = pneg %p29
      $region22: #{vbgae_forward.6} parent=19 // pred_check_branch
        %132 = sbr.rel (%p130) target = $region24
      $region23: #{vbgae_forward.6} parent=19 // pred_region
        %s133 = smul.u32 16, %s9
        %p134 = scmp.lt.s32.totalorder %s133, 31
        %s135 = scalar_select %p134, %s133, 31
        %s136 = smul.addr %s135, 4
        %s137 = scalar_lea.vmem %s0, %s136
        %s138 = smul.u32 16, %s9
      $region24: #{vbgae_forward.6} parent=19 // pred_fallthru
        _
      // Predicated region
      $region25: #{vbgae_forward.6} parent=19 // pred_check
        %p139 = pneg %p76
      $region26: #{vbgae_forward.6} parent=19 // pred_check_branch
        %141 = sbr.rel (%p139) target = $region28
      $region27: #{vbgae_forward.6} parent=19 // pred_region
        %s142 = smul.u32 16, %s9
        %p143 = scmp.lt.s32.totalorder %s142, 31
        %s144 = scalar_select %p143, %s142, 31
        %s145 = smul.addr %s144, 8
        %s146 = scalar_lea.vmem %s2, %s145
        %s147 = smul.u32 16, %s9
      $region28: #{vbgae_forward.6} parent=19 // pred_fallthru
        _
    $region20: #{vbgae_forward.6} parent=5 // pred_fallthru
      _
    %p148 = scmp.le.s32.totalorder 1, %s9
    %p149 = scmp.lt.s32.totalorder %s9, 3
    %p150 = pnand %p148, %p149
    %p151 = pneg %p150
    // Predicated region
    $region29: #{vbgae_forward.6} parent=5 // pred_check
      _
    $region30: #{vbgae_forward.6} parent=5 // pred_check_branch
      %153 = sbr.rel (%p150) target = $region32
    $region31: #{vbgae_forward.6} parent=5 // pred_region
      %s154 = ssub.s32 %s9, 1
      %s155 = smul.u32 16, %s14
      %p156 = scmp.lt.s32.totalorder %s155, 31
      %s157 = scalar_select %p156, %s155, 31
      %s158 = smul.addr %s157, 4
      %s159 = scalar_lea.vmem %s0, %s158
      %p160 = pneg %p35
      %p161 = pneg %p32
      %p162 = pneg %p56
      %p163 = pneg %p53
      %s164 = smul.u32 16, %s14
      %p165 = scmp.lt.s32.totalorder %s164, 31
      %s166 = scalar_select %p165, %s164, 31
      %s167 = smul.addr %s166, 8
      %s168 = scalar_lea.vmem %s2, %s167
      %p169 = pneg %p82
      %p170 = pneg %p79
      %p171 = pneg %p108
      %p172 = pneg %p105
      %s173 = smul.u32 16, %s14
      %p174 = scmp.lt.s32.totalorder %s173, 31
      %s175 = scalar_select %p174, %s173, 31
      %s176 = smul.addr %s175, 8
      %s177 = scalar_lea.vmem %s3, %s176
      %s178 = smul.u32 16, %s14
      %p179 = scmp.lt.s32.totalorder %s178, 31
      %s180 = scalar_select %p179, %s178, 31
      %s181 = smul.addr %s180, 4
      %s182 = scalar_lea.vmem %s0, %s181
      %s183 = smul.u32 16, %s14
      %s184 = smul.u32 16, %s14
      %p185 = scmp.lt.s32.totalorder %s184, 31
      %s186 = scalar_select %p185, %s184, 31
      %s187 = smul.addr %s186, 8
      %s188 = scalar_lea.vmem %s2, %s187
      %s189 = smul.u32 16, %s14
      %s190 = smul.u32 16, %s14
      %p191 = scmp.lt.s32.totalorder %s190, 31
      %s192 = scalar_select %p191, %s190, 31
      %s193 = smul.addr %s192, 8
      %s194 = scalar_lea.vmem %s3, %s193
      %s195 = smul.u32 16, %s14
      %v197 = vld [vmem:[%s1] sm:$0xff]
      %v198 = vld [vmem:[%s1 + $0x8] sm:$0xff]
      %v199 = vld [vmem:[%s1 + $0x10] sm:$0xff]
      %v200 = vld [vmem:[%s1 + $0x18] sm:$0xff]
      %v201 = vld [vmem:[%s1 + $0x20] sm:$0xff]
      %v202 = vld [vmem:[%s1 + $0x28] sm:$0xff]
      %v203 = vld [vmem:[%s1 + $0x30] sm:$0xff]
      %v204 = vld [vmem:[%s1 + $0x38] sm:$0xff]
      %v205 = vld [vmem:[%s1 + $0x40] sm:$0xff]
      %v206 = vld [vmem:[%s1 + $0x48] sm:$0xff]
      %v207 = vld [vmem:[%s1 + $0x50] sm:$0xff]
      %v208 = vld [vmem:[%s1 + $0x58] sm:$0xff]
      %v209 = vld [vmem:[%s1 + $0x60] sm:$0xff]
      %v210 = vld [vmem:[%s1 + $0x68] sm:$0xff]
      %v211 = vld [vmem:[%s1 + $0x70] sm:$0xff]
      %v212 = vld [vmem:[%s1 + $0x78] sm:$0xff]
      %v213 = vld [vmem:[%s1 + $0x80] sm:$0xff]
      %v214 = vld [vmem:[%s1 + $0x88] sm:$0xff]
      %v215 = vld [vmem:[%s1 + $0x90] sm:$0xff]
      %v216 = vld [vmem:[%s1 + $0x98] sm:$0xff]
      %v217 = vld [vmem:[%s1 + $0xa0] sm:$0xff]
      %v218 = vld [vmem:[%s1 + $0xa8] sm:$0xff]
      %v219 = vld [vmem:[%s1 + $0xb0] sm:$0xff]
      %v220 = vld [vmem:[%s1 + $0xb8] sm:$0xff]
      %v221 = vld [vmem:[%s1 + $0xc0] sm:$0xff]
      %v222 = vld [vmem:[%s1 + $0xc8] sm:$0xff]
      %v223 = vld [vmem:[%s1 + $0xd0] sm:$0xff]
      %v224 = vld [vmem:[%s1 + $0xd8] sm:$0xff]
      %v225 = vld [vmem:[%s1 + $0xe0] sm:$0xff]
      %v226 = vld [vmem:[%s1 + $0xe8] sm:$0xff]
      %v227 = vld [vmem:[%s1 + $0xf0] sm:$0xff]
      %v228 = vld [vmem:[%s1 + $0xf8] sm:$0xff]
      %v229 = vpack.c.bf16 %v199, %v197
      %v230 = vpack.c.bf16 %v200, %v198
      %v231 = vpack.c.bf16 %v203, %v201
      %v232 = vpack.c.bf16 %v204, %v202
      %v233 = vpack.c.bf16 %v207, %v205
      %v234 = vpack.c.bf16 %v208, %v206
      %v235 = vpack.c.bf16 %v211, %v209
      %v236 = vpack.c.bf16 %v212, %v210
      %v237 = vpack.c.bf16 %v215, %v213
      %v238 = vpack.c.bf16 %v216, %v214
      %v239 = vpack.c.bf16 %v219, %v217
      %v240 = vpack.c.bf16 %v220, %v218
      %v241 = vpack.c.bf16 %v223, %v221
      %v242 = vpack.c.bf16 %v224, %v222
      %v243 = vpack.c.bf16 %v227, %v225
      %v244 = vpack.c.bf16 %v228, %v226
      %v245 = vld [vmem:[%s182] sm:$0xf]
      %v246 = vld [vmem:[%s182 + $0x4] sm:$0xf]
      %v247 = vld [vmem:[%s182 + $0x8] sm:$0xf]
      %v248 = vld [vmem:[%s182 + $0xc] sm:$0xf]
      %v249 = vld [vmem:[%s182 + $0x10] sm:$0xf]
      %v250 = vld [vmem:[%s182 + $0x14] sm:$0xf]
      %v251 = vld [vmem:[%s182 + $0x18] sm:$0xf]
      %v252 = vld [vmem:[%s182 + $0x1c] sm:$0xf]
      %v253 = vld [vmem:[%s182 + $0x20] sm:$0xf]
      %v254 = vld [vmem:[%s182 + $0x24] sm:$0xf]
      %v255 = vld [vmem:[%s182 + $0x28] sm:$0xf]
      %v256 = vld [vmem:[%s182 + $0x2c] sm:$0xf]
      %v257 = vld [vmem:[%s182 + $0x30] sm:$0xf]
      %v258 = vld [vmem:[%s182 + $0x34] sm:$0xf]
      %v259 = vld [vmem:[%s182 + $0x38] sm:$0xf]
      %v260 = vld [vmem:[%s182 + $0x3c] sm:$0xf]
      %v277 = vunpack.c.l.b16 %v245
      %v278 = vunpack.c.l.b16 %v246
      %v279 = vunpack.c.l.b16 %v247
      %v280 = vunpack.c.l.b16 %v248
      %v281 = vunpack.c.l.b16 %v249
      %v282 = vunpack.c.l.b16 %v250
      %v283 = vunpack.c.l.b16 %v251
      %v284 = vunpack.c.l.b16 %v252
      %v285 = vunpack.c.l.b16 %v253
      %v286 = vunpack.c.l.b16 %v254
      %v287 = vunpack.c.l.b16 %v255
      %v288 = vunpack.c.l.b16 %v256
      %v289 = vunpack.c.l.b16 %v257
      %v290 = vunpack.c.l.b16 %v258
      %v291 = vunpack.c.l.b16 %v259
      %v292 = vunpack.c.l.b16 %v260
      %v293 = vpack.c.b16 %v278, %v277
      %v294 = vpack.c.b16 %v280, %v279
      %v295 = vpack.c.b16 %v282, %v281
      %v296 = vpack.c.b16 %v284, %v283
      %v297 = vpack.c.b16 %v286, %v285
      %v298 = vpack.c.b16 %v288, %v287
      %v299 = vpack.c.b16 %v290, %v289
      %v300 = vpack.c.b16 %v292, %v291
      %309 = vmatprep.subr.bf16.mxu0 %v230
      %310 = vmatpush1.bf16.msra.mxu0 %v229
      %311 = vmatprep.subr.bf16.mxu0 %v232
      %312 = vmatpush1.bf16.msra.mxu0 %v231
      %313 = vmatprep.subr.bf16.mxu0 %v234
      %314 = vmatpush1.bf16.msra.mxu0 %v233
      %315 = vmatprep.subr.bf16.mxu0 %v236
      %316 = vmatpush1.bf16.msra.mxu0 %v235
      %317 = vmatprep.subr.bf16.mxu0 %v238
      %318 = vmatpush1.bf16.msra.mxu0 %v237
      %319 = vmatprep.subr.bf16.mxu0 %v240
      %320 = vmatpush1.bf16.msra.mxu0 %v239
      %321 = vmatprep.subr.bf16.mxu0 %v242
      %322 = vmatpush1.bf16.msra.mxu0 %v241
      %323 = vmatprep.subr.bf16.mxu0 %v244
      %324 = vmatpush1.bf16.msra.mxu0 %v243
      %325 = vmatprep.subr.bf16.mxu0 0
      %326 = vmatpush1.bf16.msra.mxu0 0
      %327 = vmatprep.subr.bf16.mxu0 0
      %328 = vmatpush1.bf16.msra.mxu0 0
      %329 = vmatprep.subr.bf16.mxu0 0
      %330 = vmatpush1.bf16.msra.mxu0 0
      %331 = vmatprep.subr.bf16.mxu0 0
      %332 = vmatpush1.bf16.msra.mxu0 0
      %333 = vmatprep.subr.bf16.mxu0 0
      %334 = vmatpush1.bf16.msra.mxu0 0
      %335 = vmatprep.subr.bf16.mxu0 0
      %336 = vmatpush1.bf16.msra.mxu0 0
      %337 = vmatprep.subr.bf16.mxu0 0
      %338 = vmatpush1.bf16.msra.mxu0 0
      %339 = vmatprep.subr.bf16.mxu0 0
      %340 = vmatpush1.bf16.msra.mxu0 0
      %341 = vmatprep.mubr.bf16.mxu0 0
      %342 = vmatmul.mubr.bf16.gmra.mrb[0].mxu0 %v293
      %v343 = vpop.f32.mrb[0].mxu0
      %v344 = vadd.f32 0.0, %v343
      %v345 = vpop.f32.mrb[0].mxu0
      %v346 = vadd.f32 0.0, %v345
      %v347 = vpop.f32.mrb[0].mxu0
      %v348 = vadd.f32 0.0, %v347
      %v349 = vpop.f32.mrb[0].mxu0
      %v350 = vadd.f32 0.0, %v349
      %351 = vmatprep.mubr.bf16.mxu0 0
      %352 = vmatmul.mubr.bf16.gmra.mrb[0].mxu0 %v294
      %v353 = vpop.f32.mrb[0].mxu0
      %v354 = vadd.f32 0.0, %v353
      %v355 = vpop.f32.mrb[0].mxu0
      %v356 = vadd.f32 0.0, %v355
      %v357 = vpop.f32.mrb[0].mxu0
      %v358 = vadd.f32 0.0, %v357
      %v359 = vpop.f32.mrb[0].mxu0
      %v360 = vadd.f32 0.0, %v359
      %361 = vmatprep.mubr.bf16.mxu0 0
      %362 = vmatmul.mubr.bf16.gmra.mrb[0].mxu0 %v295
      %v363 = vpop.f32.mrb[0].mxu0
      %v364 = vadd.f32 0.0, %v363
      %v365 = vpop.f32.mrb[0].mxu0
      %v366 = vadd.f32 0.0, %v365
      %v367 = vpop.f32.mrb[0].mxu0
      %v368 = vadd.f32 0.0, %v367
      %v369 = vpop.f32.mrb[0].mxu0
      %v370 = vadd.f32 0.0, %v369
      %371 = vmatprep.mubr.bf16.mxu0 0
      %372 = vmatmul.mubr.bf16.gmra.mrb[0].mxu0 %v296
      %v373 = vpop.f32.mrb[0].mxu0
      %v374 = vadd.f32 0.0, %v373
      %v375 = vpop.f32.mrb[0].mxu0
      %v376 = vadd.f32 0.0, %v375
      %v377 = vpop.f32.mrb[0].mxu0
      %v378 = vadd.f32 0.0, %v377
      %v379 = vpop.f32.mrb[0].mxu0
      %v380 = vadd.f32 0.0, %v379
      %381 = vmatprep.mubr.bf16.mxu0 0
      %382 = vmatmul.mubr.bf16.gmra.mrb[0].mxu0 %v297
      %v383 = vpop.f32.mrb[0].mxu0
      %v384 = vadd.f32 0.0, %v383
      %v385 = vpop.f32.mrb[0].mxu0
      %v386 = vadd.f32 0.0, %v385
      %v387 = vpop.f32.mrb[0].mxu0
      %v388 = vadd.f32 0.0, %v387
      %v389 = vpop.f32.mrb[0].mxu0
      %v390 = vadd.f32 0.0, %v389
      %391 = vmatprep.mubr.bf16.mxu0 0
      %392 = vmatmul.mubr.bf16.gmra.mrb[0].mxu0 %v298
      %v393 = vpop.f32.mrb[0].mxu0
      %v394 = vadd.f32 0.0, %v393
      %v395 = vpop.f32.mrb[0].mxu0
      %v396 = vadd.f32 0.0, %v395
      %v397 = vpop.f32.mrb[0].mxu0
      %v398 = vadd.f32 0.0, %v397
      %v399 = vpop.f32.mrb[0].mxu0
      %v400 = vadd.f32 0.0, %v399
      %401 = vmatprep.mubr.bf16.mxu0 0
      %402 = vmatmul.mubr.bf16.gmra.mrb[0].mxu0 %v299
      %v403 = vpop.f32.mrb[0].mxu0
      %v404 = vadd.f32 0.0, %v403
      %v405 = vpop.f32.mrb[0].mxu0
      %v406 = vadd.f32 0.0, %v405
      %v407 = vpop.f32.mrb[0].mxu0
      %v408 = vadd.f32 0.0, %v407
      %v409 = vpop.f32.mrb[0].mxu0
      %v410 = vadd.f32 0.0, %v409
      %411 = vmatprep.mubr.bf16.mxu0 0
      %412 = vmatmul.mubr.bf16.gmra.mrb[0].mxu0 %v300
      %v413 = vpop.f32.mrb[0].mxu0
      %v414 = vadd.f32 0.0, %v413
      %v415 = vpop.f32.mrb[0].mxu0
      %v416 = vadd.f32 0.0, %v415
      %v417 = vpop.f32.mrb[0].mxu0
      %v418 = vadd.f32 0.0, %v417
      %v419 = vpop.f32.mrb[0].mxu0
      %v420 = vadd.f32 0.0, %v419
      %421 = vdwg.mxu0
      %v422 = vld [vmem:[%s188] sm:$0xff]
      %v423 = vld [vmem:[%s188 + $0x8] sm:$0xff]
      %v424 = vld [vmem:[%s188 + $0x10] sm:$0xff]
      %v425 = vld [vmem:[%s188 + $0x18] sm:$0xff]
      %v426 = vld [vmem:[%s188 + $0x20] sm:$0xff]
      %v427 = vld [vmem:[%s188 + $0x28] sm:$0xff]
      %v428 = vld [vmem:[%s188 + $0x30] sm:$0xff]
      %v429 = vld [vmem:[%s188 + $0x38] sm:$0xff]
      %v430 = vld [vmem:[%s188 + $0x40] sm:$0xff]
      %v431 = vld [vmem:[%s188 + $0x48] sm:$0xff]
      %v432 = vld [vmem:[%s188 + $0x50] sm:$0xff]
      %v433 = vld [vmem:[%s188 + $0x58] sm:$0xff]
      %v434 = vld [vmem:[%s188 + $0x60] sm:$0xff]
      %v435 = vld [vmem:[%s188 + $0x68] sm:$0xff]
      %v436 = vld [vmem:[%s188 + $0x70] sm:$0xff]
      %v437 = vld [vmem:[%s188 + $0x78] sm:$0xff]
      %v438 = vmul.f32 %v346, 1.442695
      %v439 = vpow.pop %v438
      %v440 = vmul.f32 %v350, 1.442695
      %v441 = vpow.pop %v440
      %v442 = vmul.f32 %v356, 1.442695
      %v443 = vpow.pop %v442
      %v444 = vmul.f32 %v360, 1.442695
      %v445 = vpow.pop %v444
      %v446 = vmul.f32 %v366, 1.442695
      %v447 = vpow.pop %v446
      %v448 = vmul.f32 %v370, 1.442695
      %v449 = vpow.pop %v448
      %v450 = vmul.f32 %v376, 1.442695
      %v451 = vpow.pop %v450
      %v452 = vmul.f32 %v380, 1.442695
      %v453 = vpow.pop %v452
      %v454 = vmul.f32 %v386, 1.442695
      %v455 = vpow.pop %v454
      %v456 = vmul.f32 %v390, 1.442695
      %v457 = vpow.pop %v456
      %v458 = vmul.f32 %v396, 1.442695
      %v459 = vpow.pop %v458
      %v460 = vmul.f32 %v400, 1.442695
      %v461 = vpow.pop %v460
      %v462 = vmul.f32 %v406, 1.442695
      %v463 = vpow.pop %v462
      %v464 = vmul.f32 %v410, 1.442695
      %v465 = vpow.pop %v464
      %v466 = vmul.f32 %v416, 1.442695
      %v467 = vpow.pop %v466
      %v468 = vmul.f32 %v420, 1.442695
      %v469 = vpow.pop %v468
      %v470 = vmul.f32 %v422, %v439
      %v471 = vmul.f32 %v423, %v441
      %v472 = vmul.f32 %v424, %v443
      %v473 = vmul.f32 %v425, %v445
      %v474 = vmul.f32 %v426, %v447
      %v475 = vmul.f32 %v427, %v449
      %v476 = vmul.f32 %v428, %v451
      %v477 = vmul.f32 %v429, %v453
      %v478 = vmul.f32 %v430, %v455
      %v479 = vmul.f32 %v431, %v457
      %v480 = vmul.f32 %v432, %v459
      %v481 = vmul.f32 %v433, %v461
      %v482 = vmul.f32 %v434, %v463
      %v483 = vmul.f32 %v435, %v465
      %v484 = vmul.f32 %v436, %v467
      %v485 = vmul.f32 %v437, %v469
      %v486 = vadd.f32 %v470, %v344
      %v487 = vadd.f32 %v471, %v348
      %v488 = vadd.f32 %v472, %v354
      %v489 = vadd.f32 %v473, %v358
      %v490 = vadd.f32 %v474, %v364
      %v491 = vadd.f32 %v475, %v368
      %v492 = vadd.f32 %v476, %v374
      %v493 = vadd.f32 %v477, %v378
      %v494 = vadd.f32 %v478, %v384
      %v495 = vadd.f32 %v479, %v388
      %v496 = vadd.f32 %v480, %v394
      %v497 = vadd.f32 %v481, %v398
      %v498 = vadd.f32 %v482, %v404
      %v499 = vadd.f32 %v483, %v408
      %v500 = vadd.f32 %v484, %v414
      %v501 = vadd.f32 %v485, %v418
      %502 = vst [vmem:[%s194] sm:$0xff] %v486
      %503 = vst [vmem:[%s194 + $0x8] sm:$0xff] %v487
      %504 = vst [vmem:[%s194 + $0x10] sm:$0xff] %v488
      %505 = vst [vmem:[%s194 + $0x18] sm:$0xff] %v489
      %506 = vst [vmem:[%s194 + $0x20] sm:$0xff] %v490
      %507 = vst [vmem:[%s194 + $0x28] sm:$0xff] %v491
      %508 = vst [vmem:[%s194 + $0x30] sm:$0xff] %v492
      %509 = vst [vmem:[%s194 + $0x38] sm:$0xff] %v493
      %510 = vst [vmem:[%s194 + $0x40] sm:$0xff] %v494
      %511 = vst [vmem:[%s194 + $0x48] sm:$0xff] %v495
      %512 = vst [vmem:[%s194 + $0x50] sm:$0xff] %v496
      %513 = vst [vmem:[%s194 + $0x58] sm:$0xff] %v497
      %514 = vst [vmem:[%s194 + $0x60] sm:$0xff] %v498
      %515 = vst [vmem:[%s194 + $0x68] sm:$0xff] %v499
      %516 = vst [vmem:[%s194 + $0x70] sm:$0xff] %v500
      %517 = vst [vmem:[%s194 + $0x78] sm:$0xff] %v501
      %s518 = smul.u32 16, %s14
      %p519 = scmp.lt.s32.totalorder %s518, 31
      %s520 = scalar_select %p519, %s518, 31
      %s521 = smul.addr %s520, 8
      %s522 = scalar_lea.vmem %s3, %s521
      // Predicated region
      $region33: #{vbgae_forward.6} parent=31 // pred_check
        %p523 = pneg %p105
      $region34: #{vbgae_forward.6} parent=31 // pred_check_branch
        %525 = sbr.rel (%p523) target = $region36
      $region35: #{vbgae_forward.6} parent=31 // pred_region
        %s526 = smul.u32 16, %s14
      $region36: #{vbgae_forward.6} parent=31 // pred_fallthru
        _
    $region32: #{vbgae_forward.6} parent=5 // pred_fallthru
      _
    %p527 = scmp.le.s32.totalorder 2, %s9
    // Predicated region
    $region37: #{vbgae_forward.6} parent=5 // pred_check
      %p528 = pneg %p527
    $region38: #{vbgae_forward.6} parent=5 // pred_check_branch
      %530 = sbr.rel (%p528) target = $region40
    $region39: #{vbgae_forward.6} parent=5 // pred_region
      %s531 = ssub.s32 %s9, 2
      // Predicated region
      $region41: #{vbgae_forward.6} parent=39 // pred_check
        %p532 = pneg %p111
      $region42: #{vbgae_forward.6} parent=39 // pred_check_branch
        %534 = sbr.rel (%p532) target = $region44
      $region43: #{vbgae_forward.6} parent=39 // pred_region
        %s535 = smul.u32 16, %s15
        %p536 = scmp.lt.s32.totalorder %s535, 31
        %s537 = scalar_select %p536, %s535, 31
        %s538 = smul.addr %s537, 8
        %s539 = scalar_lea.vmem %s3, %s538
      $region44: #{vbgae_forward.6} parent=39 // pred_fallthru
        _
    $region40: #{vbgae_forward.6} parent=5 // pred_fallthru
      _
  $region6: #{vbgae_forward.6} parent=0 // loop_footer
    %s13 = sadd.s32 1, %s9
  $region7: #{vbgae_forward.6} parent=0 // loop_footer_branch
    %8 = sbr.rel target = $region3
  $region8: #{vbgae_forward.6} parent=0 // loop_exit
    _

// kernel: vbgae_forward.5
$region0: #{vbgae_forward.5}
  #allocation0 [shape = 'u32[]', space=smem, size = 0x4, offset = 0x4, fixed_abs, tag = 'smem constant byte address 0x4 - core index']
  #allocation1 [shape = 'u32[144,128]{1,0:T(1,128)}', space=vmem, size = 0x12000, scoped, tag = 'internal scratch']
  #allocation2 [shape = 'f32[128,128]{1,0:T(8,128)}', space=vmem, size = 0x10000, scoped, tag = 'scratch operand']
  %s0 = inlined_call_operand.vmem [shape: bf16[256,128], index: 0, kind: input, shape index: {}]
  %s1 = inlined_call_operand.vmem [shape: f32[256,64], index: 1, kind: input, shape index: {}]
  %s2 = inlined_call_operand.vmem [shape: f32[64,128], index: 2, kind: input, shape index: {}]
  %s3 = inlined_call_operand.vmem [shape: f32[128,256], index: 3, kind: input, shape index: {}]
  %s4 = inlined_call_operand.vmem [shape: f32[128,256], index: 4, kind: output, shape index: {}]
  %s5 = sld [smem:[#allocation0]]
  $region57: #{vbgae_forward.5} parent=0
    _
  %s7 = ssub.s32 1, %s5
  %s8 = scalar_select 0, %s7, %s5
  loop: start=0, step=1, limit=4
  $region2: #{vbgae_forward.5} parent=0 // loop_pre_header
    _
  $region3: #{vbgae_forward.5} parent=0 // loop_header
    %s10 = sphi 0, %s14
    %p11 = scmp.ge.s32.totalorder %s10, 4
    %s20 = sphi 0, %s22
    %s23 = sphi 0, %s20
    %s24 = sphi 0, %s23
    %s40 = sphi 0, %s24
    %s46 = sphi 0, %s48
    %s49 = sphi 0, %s46
    %s50 = sphi 0, %s49
    %s66 = sphi 0, %s50
    %s70 = sphi 0, %s70
    %s72 = sphi 0, %s70
    %s73 = sphi 0, %s72
    %s87 = sphi 0, %s73
    %s91 = sphi 0, %s91
    %s93 = sphi 0, %s91
    %s94 = sphi 0, %s93
    %s108 = sphi 0, %s94
    %s112 = sphi 0, %s112
    %s114 = sphi 0, %s112
    %s115 = sphi 0, %s114
    %s129 = sphi 0, %s115
  $region4: #{vbgae_forward.5} parent=0 // loop_header_branch
    %13 = sbr.rel (%p11) target = $region8
  $region5: #{vbgae_forward.5} parent=0 // loop_body
    %s15 = ssub.s32 %s10, 1
    %s16 = ssub.s32 %s10, 2
    %s17 = sadd.s32 %s10, 1
    %s18 = ssub.s32 %s10, %s17
    %p19 = scmp.eq.s32.totalorder %s18, 0
    %s21 = sadd.s32 %s20, 1
    %s22 = scalar_select %p19, %s20, %s21
    %p25 = pneg %p19
    %p26 = scmp.eq.s32.totalorder %s10, 1
    %p27 = por %p25, %p26
    %p28 = scmp.ne.s32.totalorder %s20, %s23
    %p29 = scmp.eq.s32.totalorder %s10, 0
    %p30 = por %p28, %p29
    %p31 = scmp.ne.s32.totalorder %s20, %s23
    %p32 = scmp.eq.s32.totalorder %s15, 1
    %p33 = por %p31, %p32
    %p34 = scmp.ne.s32.totalorder %s23, %s24
    %p35 = scmp.eq.s32.totalorder %s15, 0
    %p36 = por %p34, %p35
    %p37 = scmp.ne.s32.totalorder %s23, %s24
    %p38 = scmp.eq.s32.totalorder %s16, 1
    %p39 = por %p37, %p38
    %p41 = scmp.ne.s32.totalorder %s24, %s40
    %p42 = scmp.eq.s32.totalorder %s16, 0
    %p43 = por %p41, %p42
    %s44 = ssub.s32 %s10, %s17
    %p45 = scmp.eq.s32.totalorder %s44, 0
    %s47 = sadd.s32 %s46, 1
    %s48 = scalar_select %p45, %s46, %s47
    %p51 = pneg %p45
    %p52 = scmp.eq.s32.totalorder %s10, 1
    %p53 = por %p51, %p52
    %p54 = scmp.ne.s32.totalorder %s46, %s49
    %p55 = scmp.eq.s32.totalorder %s10, 0
    %p56 = por %p54, %p55
    %p57 = scmp.ne.s32.totalorder %s46, %s49
    %p58 = scmp.eq.s32.totalorder %s15, 1
    %p59 = por %p57, %p58
    %p60 = scmp.ne.s32.totalorder %s49, %s50
    %p61 = scmp.eq.s32.totalorder %s15, 0
    %p62 = por %p60, %p61
    %p63 = scmp.ne.s32.totalorder %s49, %s50
    %p64 = scmp.eq.s32.totalorder %s16, 1
    %p65 = por %p63, %p64
    %p67 = scmp.ne.s32.totalorder %s50, %s66
    %p68 = scmp.eq.s32.totalorder %s16, 0
    %p69 = por %p67, %p68
    %s71 = sadd.s32 %s70, 1
    %p74 = scmp.eq.s32.totalorder %s10, 1
    %p75 = scmp.ne.s32.totalorder %s70, %s72
    %p76 = scmp.eq.s32.totalorder %s10, 0
    %p77 = por %p75, %p76
    %p78 = scmp.ne.s32.totalorder %s70, %s72
    %p79 = scmp.eq.s32.totalorder %s15, 1
    %p80 = por %p78, %p79
    %p81 = scmp.ne.s32.totalorder %s72, %s73
    %p82 = scmp.eq.s32.totalorder %s15, 0
    %p83 = por %p81, %p82
    %p84 = scmp.ne.s32.totalorder %s72, %s73
    %p85 = scmp.eq.s32.totalorder %s16, 1
    %p86 = por %p84, %p85
    %p88 = scmp.ne.s32.totalorder %s73, %s87
    %p89 = scmp.eq.s32.totalorder %s16, 0
    %p90 = por %p88, %p89
    %s92 = sadd.s32 %s91, 1
    %p95 = scmp.eq.s32.totalorder %s10, 1
    %p96 = scmp.ne.s32.totalorder %s91, %s93
    %p97 = scmp.eq.s32.totalorder %s10, 0
    %p98 = por %p96, %p97
    %p99 = scmp.ne.s32.totalorder %s91, %s93
    %p100 = scmp.eq.s32.totalorder %s15, 1
    %p101 = por %p99, %p100
    %p102 = scmp.ne.s32.totalorder %s93, %s94
    %p103 = scmp.eq.s32.totalorder %s15, 0
    %p104 = por %p102, %p103
    %p105 = scmp.ne.s32.totalorder %s93, %s94
    %p106 = scmp.eq.s32.totalorder %s16, 1
    %p107 = por %p105, %p106
    %p109 = scmp.ne.s32.totalorder %s94, %s108
    %p110 = scmp.eq.s32.totalorder %s16, 0
    %p111 = por %p109, %p110
    %s113 = sadd.s32 %s112, 1
    %p116 = scmp.eq.s32.totalorder %s10, 1
    %p117 = scmp.ne.s32.totalorder %s112, %s114
    %p118 = scmp.eq.s32.totalorder %s10, 0
    %p119 = por %p117, %p118
    %p120 = scmp.ne.s32.totalorder %s112, %s114
    %p121 = scmp.eq.s32.totalorder %s15, 1
    %p122 = por %p120, %p121
    %p123 = scmp.ne.s32.totalorder %s114, %s115
    %p124 = scmp.eq.s32.totalorder %s15, 0
    %p125 = por %p123, %p124
    %p126 = scmp.ne.s32.totalorder %s114, %s115
    %p127 = scmp.eq.s32.totalorder %s16, 1
    %p128 = por %p126, %p127
    %p130 = scmp.ne.s32.totalorder %s115, %s129
    %p131 = scmp.eq.s32.totalorder %s16, 0
    %p132 = por %p130, %p131
    %p133 = scmp.le.s32.totalorder 1, %s10
    %p134 = scmp.lt.s32.totalorder %s10, 3
    %p135 = pnand %p133, %p134
    %p136 = pneg %p135
    // Predicated region
    $region9: #{vbgae_forward.5} parent=5 // pred_check
      _
    $region10: #{vbgae_forward.5} parent=5 // pred_check_branch
      %138 = sbr.rel (%p135) target = $region12
    $region11: #{vbgae_forward.5} parent=5 // pred_region
      %s139 = ssub.s32 %s10, 1
      // Predicated region
      $region13: #{vbgae_forward.5} parent=11 // pred_check
        %p140 = pneg %p83
      $region14: #{vbgae_forward.5} parent=11 // pred_check_branch
        %142 = sbr.rel (%p140) target = $region16
      $region15: #{vbgae_forward.5} parent=11 // pred_region
        _
      $region16: #{vbgae_forward.5} parent=11 // pred_fallthru
        _
      // Predicated region
      $region17: #{vbgae_forward.5} parent=11 // pred_check
        %p143 = pneg %p104
      $region18: #{vbgae_forward.5} parent=11 // pred_check_branch
        %145 = sbr.rel (%p143) target = $region20
      $region19: #{vbgae_forward.5} parent=11 // pred_region
        _
      $region20: #{vbgae_forward.5} parent=11 // pred_fallthru
        _
    $region12: #{vbgae_forward.5} parent=5 // pred_fallthru
      _
    %p146 = scmp.lt.s32.totalorder %s10, 2
    // Predicated region
    $region21: #{vbgae_forward.5} parent=5 // pred_check
      %p147 = pneg %p146
    $region22: #{vbgae_forward.5} parent=5 // pred_check_branch
      %149 = sbr.rel (%p147) target = $region24
    $region23: #{vbgae_forward.5} parent=5 // pred_region
      // Predicated region
      $region25: #{vbgae_forward.5} parent=23 // pred_check
        %p150 = pneg %p30
      $region26: #{vbgae_forward.5} parent=23 // pred_check_branch
        %152 = sbr.rel (%p150) target = $region28
      $region27: #{vbgae_forward.5} parent=23 // pred_region
        %s153 = smul.u32 16, %s10
        %p154 = scmp.lt.s32.totalorder %s153, 31
        %s155 = scalar_select %p154, %s153, 31
        %s156 = smul.addr %s155, 4
        %s157 = scalar_lea.vmem %s0, %s156
        %s158 = smul.u32 16, %s10
      $region28: #{vbgae_forward.5} parent=23 // pred_fallthru
        _
      // Predicated region
      $region29: #{vbgae_forward.5} parent=23 // pred_check
        %p159 = pneg %p56
      $region30: #{vbgae_forward.5} parent=23 // pred_check_branch
        %161 = sbr.rel (%p159) target = $region32
      $region31: #{vbgae_forward.5} parent=23 // pred_region
        %s162 = smul.u32 16, %s10
        %p163 = scmp.lt.s32.totalorder %s162, 31
        %s164 = scalar_select %p163, %s162, 31
        %s165 = smul.addr %s164, 8
        %s166 = scalar_lea.vmem %s1, %s165
        %s167 = smul.u32 16, %s10
      $region32: #{vbgae_forward.5} parent=23 // pred_fallthru
        _
    $region24: #{vbgae_forward.5} parent=5 // pred_fallthru
      _
    %p168 = scmp.le.s32.totalorder 1, %s10
    %p169 = scmp.lt.s32.totalorder %s10, 3
    %p170 = pnand %p168, %p169
    %p171 = pneg %p170
    // Predicated region
    $region33: #{vbgae_forward.5} parent=5 // pred_check
      _
    $region34: #{vbgae_forward.5} parent=5 // pred_check_branch
      %173 = sbr.rel (%p170) target = $region36
    $region35: #{vbgae_forward.5} parent=5 // pred_region
      %s174 = ssub.s32 %s10, 1
      %s175 = smul.u32 16, %s15
      %p176 = scmp.lt.s32.totalorder %s175, 31
      %s177 = scalar_select %p176, %s175, 31
      %s178 = smul.addr %s177, 4
      %s179 = scalar_lea.vmem %s0, %s178
      %p180 = pneg %p36
      %p181 = pneg %p33
      %s182 = smul.u32 16, %s15
      %p183 = scmp.lt.s32.totalorder %s182, 31
      %s184 = scalar_select %p183, %s182, 31
      %s185 = smul.addr %s184, 8
      %s186 = scalar_lea.vmem %s1, %s185
      %p187 = pneg %p62
      %p188 = pneg %p59
      %p189 = pneg %p83
      %p190 = pneg %p80
      %p191 = pneg %p104
      %p192 = pneg %p101
      %p193 = pneg %p125
      %p194 = pneg %p122
      %s195 = smul.u32 16, %s15
      %p196 = scmp.lt.s32.totalorder %s195, 31
      %s197 = scalar_select %p196, %s195, 31
      %s198 = smul.addr %s197, 4
      %s199 = scalar_lea.vmem %s0, %s198
      %s200 = smul.u32 16, %s15
      %s201 = smul.u32 16, %s15
      %p202 = scmp.lt.s32.totalorder %s201, 31
      %s203 = scalar_select %p202, %s201, 31
      %s204 = smul.addr %s203, 8
      %s205 = scalar_lea.vmem %s1, %s204
      %s206 = smul.u32 16, %s15
      %p208 = scmp.eq.s32.totalorder %s15, 0
      // Predicated region
      $region37: #{vbgae_forward.5} parent=35 // pred_check
        %p209 = pneg %p208
      $region38: #{vbgae_forward.5} parent=35 // pred_check_branch
        %211 = sbr.rel (%p209) target = $region40
      $region39: #{vbgae_forward.5} parent=35 // pred_region
        %212 = vst [vmem:[#allocation2] sm:$0xff] 0.0
        %213 = vst [vmem:[#allocation2 + $0x8] sm:$0xff] 0.0
        %214 = vst [vmem:[#allocation2 + $0x10] sm:$0xff] 0.0
        %215 = vst [vmem:[#allocation2 + $0x18] sm:$0xff] 0.0
        %216 = vst [vmem:[#allocation2 + $0x20] sm:$0xff] 0.0
        %217 = vst [vmem:[#allocation2 + $0x28] sm:$0xff] 0.0
        %218 = vst [vmem:[#allocation2 + $0x30] sm:$0xff] 0.0
        %219 = vst [vmem:[#allocation2 + $0x38] sm:$0xff] 0.0
        %220 = vst [vmem:[#allocation2 + $0x40] sm:$0xff] 0.0
        %221 = vst [vmem:[#allocation2 + $0x48] sm:$0xff] 0.0
        %222 = vst [vmem:[#allocation2 + $0x50] sm:$0xff] 0.0
        %223 = vst [vmem:[#allocation2 + $0x58] sm:$0xff] 0.0
        %224 = vst [vmem:[#allocation2 + $0x60] sm:$0xff] 0.0
        %225 = vst [vmem:[#allocation2 + $0x68] sm:$0xff] 0.0
        %226 = vst [vmem:[#allocation2 + $0x70] sm:$0xff] 0.0
        %227 = vst [vmem:[#allocation2 + $0x78] sm:$0xff] 0.0
      $region40: #{vbgae_forward.5} parent=35 // pred_fallthru
        _
      %v228 = vld [vmem:[%s205] sm:$0xff]
      %v229 = vld [vmem:[%s205 + $0x8] sm:$0xff]
      %v230 = vld [vmem:[%s205 + $0x10] sm:$0xff]
      %v231 = vld [vmem:[%s205 + $0x18] sm:$0xff]
      %v232 = vld [vmem:[%s205 + $0x20] sm:$0xff]
      %v233 = vld [vmem:[%s205 + $0x28] sm:$0xff]
      %v234 = vld [vmem:[%s205 + $0x30] sm:$0xff]
      %v235 = vld [vmem:[%s205 + $0x38] sm:$0xff]
      %v236 = vld [vmem:[%s205 + $0x40] sm:$0xff]
      %v237 = vld [vmem:[%s205 + $0x48] sm:$0xff]
      %v238 = vld [vmem:[%s205 + $0x50] sm:$0xff]
      %v239 = vld [vmem:[%s205 + $0x58] sm:$0xff]
      %v240 = vld [vmem:[%s205 + $0x60] sm:$0xff]
      %v241 = vld [vmem:[%s205 + $0x68] sm:$0xff]
      %v242 = vld [vmem:[%s205 + $0x70] sm:$0xff]
      %v243 = vld [vmem:[%s205 + $0x78] sm:$0xff]
      %v244 = vld [vmem:[%s2] sm:$0xff]
      %v245 = vld [vmem:[%s2 + $0x8] sm:$0xff]
      %v246 = vld [vmem:[%s2 + $0x10] sm:$0xff]
      %v247 = vld [vmem:[%s2 + $0x18] sm:$0xff]
      %v248 = vld [vmem:[%s2 + $0x20] sm:$0xff]
      %v249 = vld [vmem:[%s2 + $0x28] sm:$0xff]
      %v250 = vld [vmem:[%s2 + $0x30] sm:$0xff]
      %v251 = vld [vmem:[%s2 + $0x38] sm:$0xff]
      %vm252 = vcmask 523264
      %v254 = vsel %vm252, %v228, 0
      %v257 = vsel %vm252, %v229, 0
      %v260 = vsel %vm252, %v230, 0
      %v263 = vsel %vm252, %v231, 0
      %v266 = vsel %vm252, %v232, 0
      %v269 = vsel %vm252, %v233, 0
      %v272 = vsel %vm252, %v234, 0
      %v275 = vsel %vm252, %v235, 0
      %v278 = vsel %vm252, %v236, 0
      %v281 = vsel %vm252, %v237, 0
      %v284 = vsel %vm252, %v238, 0
      %v287 = vsel %vm252, %v239, 0
      %v290 = vsel %vm252, %v240, 0
      %v293 = vsel %vm252, %v241, 0
      %v296 = vsel %vm252, %v242, 0
      %v299 = vsel %vm252, %v243, 0
      %301 = vmatprep.subr.mxu0 0.0
      %302 = vmatpush1.msra.mxu0 %v244
      %303 = vmatprep.subr.mxu0 0.0
      %304 = vmatpush1.msra.mxu0 %v245
      %305 = vmatprep.subr.mxu0 0.0
      %306 = vmatpush1.msra.mxu0 %v246
      %307 = vmatprep.subr.mxu0 0.0
      %308 = vmatpush1.msra.mxu0 %v247
      %309 = vmatprep.subr.mxu0 0.0
      %310 = vmatpush1.msra.mxu0 %v248
      %311 = vmatprep.subr.mxu0 0.0
      %312 = vmatpush1.msra.mxu0 %v249
      %313 = vmatprep.subr.mxu0 0.0
      %314 = vmatpush1.msra.mxu0 %v250
      %315 = vmatprep.subr.mxu0 0.0
      %316 = vmatpush1.msra.mxu0 %v251
      %317 = vmatprep.subr.mxu0 0.0
      %318 = vmatpush1.msra.mxu0 0.0
      %319 = vmatprep.subr.mxu0 0.0
      %320 = vmatpush1.msra.mxu0 0.0
      %321 = vmatprep.subr.mxu0 0.0
      %322 = vmatpush1.msra.mxu0 0.0
      %323 = vmatprep.subr.mxu0 0.0
      %324 = vmatpush1.msra.mxu0 0.0
      %325 = vmatprep.subr.mxu0 0.0
      %326 = vmatpush1.msra.mxu0 0.0
      %327 = vmatprep.subr.mxu0 0.0
      %328 = vmatpush1.msra.mxu0 0.0
      %329 = vmatprep.subr.mxu0 0.0
      %330 = vmatpush1.msra.mxu0 0.0
      %331 = vmatprep.subr.mxu0 0.0
      %332 = vmatpush1.msra.mxu0 0.0
      %333 = vmatprep.subr.mxu0 0.0
      %334 = vmatpush1.msra.mxu0 0.0
      %335 = vmatprep.subr.mxu0 0.0
      %336 = vmatpush1.msra.mxu0 0.0
      %337 = vmatprep.subr.mxu0 0.0
      %338 = vmatpush1.msra.mxu0 0.0
      %339 = vmatprep.subr.mxu0 0.0
      %340 = vmatpush1.msra.mxu0 0.0
      %341 = vmatprep.subr.mxu0 0.0
      %342 = vmatpush1.msra.mxu0 0.0
      %343 = vmatprep.subr.mxu0 0.0
      %344 = vmatpush1.msra.mxu0 0.0
      %345 = vmatprep.subr.mxu0 0.0
      %346 = vmatpush1.msra.mxu0 0.0
      %347 = vmatprep.subr.mxu0 0.0
      %348 = vmatpush1.msra.mxu0 0.0
      %349 = vmatprep.subr.mxu0 0.0
      %350 = vmatpush1.msra.mxu0 0.0
      %351 = vmatprep.subr.mxu0 0.0
      %352 = vmatpush1.msra.mxu0 0.0
      %353 = vmatprep.subr.mxu0 0.0
      %354 = vmatpush1.msra.mxu0 0.0
      %355 = vmatprep.subr.mxu0 0.0
      %356 = vmatpush1.msra.mxu0 0.0
      %357 = vmatprep.subr.mxu0 0.0
      %358 = vmatpush1.msra.mxu0 0.0
      %359 = vmatprep.subr.mxu0 0.0
      %360 = vmatpush1.msra.mxu0 0.0
      %361 = vmatprep.subr.mxu0 0.0
      %362 = vmatpush1.msra.mxu0 0.0
      %363 = vmatprep.subr.mxu0 0.0
      %364 = vmatpush1.msra.mxu0 0.0
      %365 = vmatprep.mubr.f32.mxu0 0.0
      %366 = vmatmul.mubr.f32.gmra.mrb[0].mxu0 %v254
      %v367 = vpop.f32.mrb[0].mxu0
      %v368 = vadd.f32 0.0, %v367
      %v369 = vpop.f32.mrb[0].mxu0
      %370 = vmatprep.mubr.f32.mxu0 0.0
      %371 = vmatmul.mubr.f32.gmra.mrb[0].mxu0 %v257
      %v372 = vpop.f32.mrb[0].mxu0
      %v373 = vadd.f32 0.0, %v372
      %v374 = vpop.f32.mrb[0].mxu0
      %375 = vmatprep.mubr.f32.mxu0 0.0
      %376 = vmatmul.mubr.f32.gmra.mrb[0].mxu0 %v260
      %v377 = vpop.f32.mrb[0].mxu0
      %v378 = vadd.f32 0.0, %v377
      %v379 = vpop.f32.mrb[0].mxu0
      %380 = vmatprep.mubr.f32.mxu0 0.0
      %381 = vmatmul.mubr.f32.gmra.mrb[0].mxu0 %v263
      %v382 = vpop.f32.mrb[0].mxu0
      %v383 = vadd.f32 0.0, %v382
      %v384 = vpop.f32.mrb[0].mxu0
      %385 = vmatprep.mubr.f32.mxu0 0.0
      %386 = vmatmul.mubr.f32.gmra.mrb[0].mxu0 %v266
      %v387 = vpop.f32.mrb[0].mxu0
      %v388 = vadd.f32 0.0, %v387
      %v389 = vpop.f32.mrb[0].mxu0
      %390 = vmatprep.mubr.f32.mxu0 0.0
      %391 = vmatmul.mubr.f32.gmra.mrb[0].mxu0 %v269
      %v392 = vpop.f32.mrb[0].mxu0
      %v393 = vadd.f32 0.0, %v392
      %v394 = vpop.f32.mrb[0].mxu0
      %395 = vmatprep.mubr.f32.mxu0 0.0
      %396 = vmatmul.mubr.f32.gmra.mrb[0].mxu0 %v272
      %v397 = vpop.f32.mrb[0].mxu0
      %v398 = vadd.f32 0.0, %v397
      %v399 = vpop.f32.mrb[0].mxu0
      %400 = vmatprep.mubr.f32.mxu0 0.0
      %401 = vmatmul.mubr.f32.gmra.mrb[0].mxu0 %v275
      %v402 = vpop.f32.mrb[0].mxu0
      %v403 = vadd.f32 0.0, %v402
      %v404 = vpop.f32.mrb[0].mxu0
      %405 = vmatprep.mubr.f32.mxu0 0.0
      %406 = vmatmul.mubr.f32.gmra.mrb[0].mxu0 %v278
      %v407 = vpop.f32.mrb[0].mxu0
      %v408 = vadd.f32 0.0, %v407
      %v409 = vpop.f32.mrb[0].mxu0
      %410 = vmatprep.mubr.f32.mxu0 0.0
      %411 = vmatmul.mubr.f32.gmra.mrb[0].mxu0 %v281
      %v412 = vpop.f32.mrb[0].mxu0
      %v413 = vadd.f32 0.0, %v412
      %v414 = vpop.f32.mrb[0].mxu0
      %415 = vmatprep.mubr.f32.mxu0 0.0
      %416 = vmatmul.mubr.f32.gmra.mrb[0].mxu0 %v284
      %v417 = vpop.f32.mrb[0].mxu0
      %v418 = vadd.f32 0.0, %v417
      %v419 = vpop.f32.mrb[0].mxu0
      %420 = vmatprep.mubr.f32.mxu0 0.0
      %421 = vmatmul.mubr.f32.gmra.mrb[0].mxu0 %v287
      %v422 = vpop.f32.mrb[0].mxu0
      %v423 = vadd.f32 0.0, %v422
      %v424 = vpop.f32.mrb[0].mxu0
      %425 = vmatprep.mubr.f32.mxu0 0.0
      %426 = vmatmul.mubr.f32.gmra.mrb[0].mxu0 %v290
      %v427 = vpop.f32.mrb[0].mxu0
      %v428 = vadd.f32 0.0, %v427
      %v429 = vpop.f32.mrb[0].mxu0
      %430 = vmatprep.mubr.f32.mxu0 0.0
      %431 = vmatmul.mubr.f32.gmra.mrb[0].mxu0 %v293
      %v432 = vpop.f32.mrb[0].mxu0
      %v433 = vadd.f32 0.0, %v432
      %v434 = vpop.f32.mrb[0].mxu0
      %435 = vmatprep.mubr.f32.mxu0 0.0
      %436 = vmatmul.mubr.f32.gmra.mrb[0].mxu0 %v296
      %v437 = vpop.f32.mrb[0].mxu0
      %v438 = vadd.f32 0.0, %v437
      %v439 = vpop.f32.mrb[0].mxu0
      %440 = vmatprep.mubr.f32.mxu0 0.0
      %441 = vmatmul.mubr.f32.gmra.mrb[0].mxu0 %v299
      %v442 = vpop.f32.mrb[0].mxu0
      %v443 = vadd.f32 0.0, %v442
      %v444 = vpop.f32.mrb[0].mxu0
      %445 = vdwg.mxu0
      %v446 = vpack.c.bf16 %v373, %v368
      %v447 = vpack.c.bf16 %v383, %v378
      %v448 = vpack.c.bf16 %v393, %v388
      %v449 = vpack.c.bf16 %v403, %v398
      %v450 = vpack.c.bf16 %v413, %v408
      %v451 = vpack.c.bf16 %v423, %v418
      %v452 = vpack.c.bf16 %v433, %v428
      %v453 = vpack.c.bf16 %v443, %v438
      %v454 = vld [vmem:[#allocation2] sm:$0xff]
      %v455 = vld [vmem:[#allocation2 + $0x8] sm:$0xff]
      %v456 = vld [vmem:[#allocation2 + $0x10] sm:$0xff]
      %v457 = vld [vmem:[#allocation2 + $0x18] sm:$0xff]
      %v458 = vld [vmem:[#allocation2 + $0x20] sm:$0xff]
      %v459 = vld [vmem:[#allocation2 + $0x28] sm:$0xff]
      %v460 = vld [vmem:[#allocation2 + $0x30] sm:$0xff]
      %v461 = vld [vmem:[#allocation2 + $0x38] sm:$0xff]
      %v462 = vld [vmem:[#allocation2 + $0x40] sm:$0xff]
      %v463 = vld [vmem:[#allocation2 + $0x48] sm:$0xff]
      %v464 = vld [vmem:[#allocation2 + $0x50] sm:$0xff]
      %v465 = vld [vmem:[#allocation2 + $0x58] sm:$0xff]
      %v466 = vld [vmem:[#allocation2 + $0x60] sm:$0xff]
      %v467 = vld [vmem:[#allocation2 + $0x68] sm:$0xff]
      %v468 = vld [vmem:[#allocation2 + $0x70] sm:$0xff]
      %v469 = vld [vmem:[#allocation2 + $0x78] sm:$0xff]
      %v470 = vld [vmem:[%s199] sm:$0xf]
      %v471 = vld [vmem:[%s199 + $0x4] sm:$0xf]
      %v472 = vld [vmem:[%s199 + $0x8] sm:$0xf]
      %v473 = vld [vmem:[%s199 + $0xc] sm:$0xf]
      %v474 = vld [vmem:[%s199 + $0x10] sm:$0xf]
      %v475 = vld [vmem:[%s199 + $0x14] sm:$0xf]
      %v476 = vld [vmem:[%s199 + $0x18] sm:$0xf]
      %v477 = vld [vmem:[%s199 + $0x1c] sm:$0xf]
      %v478 = vld [vmem:[%s199 + $0x20] sm:$0xf]
      %v479 = vld [vmem:[%s199 + $0x24] sm:$0xf]
      %v480 = vld [vmem:[%s199 + $0x28] sm:$0xf]
      %v481 = vld [vmem:[%s199 + $0x2c] sm:$0xf]
      %v482 = vld [vmem:[%s199 + $0x30] sm:$0xf]
      %v483 = vld [vmem:[%s199 + $0x34] sm:$0xf]
      %v484 = vld [vmem:[%s199 + $0x38] sm:$0xf]
      %v485 = vld [vmem:[%s199 + $0x3c] sm:$0xf]
      %v502 = vunpack.c.l.b16 %v470
      %v503 = vunpack.c.l.b16 %v471
      %v504 = vunpack.c.l.b16 %v472
      %v505 = vunpack.c.l.b16 %v473
      %v506 = vunpack.c.l.b16 %v474
      %v507 = vunpack.c.l.b16 %v475
      %v508 = vunpack.c.l.b16 %v476
      %v509 = vunpack.c.l.b16 %v477
      %v510 = vunpack.c.l.b16 %v478
      %v511 = vunpack.c.l.b16 %v479
      %v512 = vunpack.c.l.b16 %v480
      %v513 = vunpack.c.l.b16 %v481
      %v514 = vunpack.c.l.b16 %v482
      %v515 = vunpack.c.l.b16 %v483
      %v516 = vunpack.c.l.b16 %v484
      %v517 = vunpack.c.l.b16 %v485
      %v518 = vpack.c.b16 %v503, %v502
      %v519 = vpack.c.b16 %v505, %v504
      %v520 = vpack.c.b16 %v507, %v506
      %v521 = vpack.c.b16 %v509, %v508
      %v522 = vpack.c.b16 %v511, %v510
      %v523 = vpack.c.b16 %v513, %v512
      %v524 = vpack.c.b16 %v515, %v514
      %v525 = vpack.c.b16 %v517, %v516
      %534 = vxpose.xlu0.c.b16.start [1/8] %v518, 128
      %535 = vxpose.xlu0.c.b16.cont [2/8] %v519, 128
      %536 = vxpose.xlu0.c.b16.cont [3/8] %v520, 128
      %537 = vxpose.xlu0.c.b16.cont [4/8] %v521, 128
      %538 = vxpose.xlu0.c.b16.cont [5/8] %v522, 128
      %539 = vxpose.xlu0.c.b16.cont [6/8] %v523, 128
      %540 = vxpose.xlu0.c.b16.cont [7/8] %v524, 128
      %541 = vxpose.xlu0.c.b16.end [8/8] %v525, 128
      %v542 = vpop.trf.xlu0
      %v543 = vpop.trf.xlu0
      %v544 = vpop.trf.xlu0
      %v545 = vpop.trf.xlu0
      %v546 = vpop.trf.xlu0
      %v547 = vpop.trf.xlu0
      %v548 = vpop.trf.xlu0
      %v549 = vpop.trf.xlu0
      %550 = vmatprep.subr.bf16.mxu0 0
      %551 = vmatpush1.bf16.msra.mxu0 %v446
      %552 = vmatprep.subr.bf16.mxu0 0
      %553 = vmatpush1.bf16.msra.mxu0 %v447
      %554 = vmatprep.subr.bf16.mxu0 0
      %555 = vmatpush1.bf16.msra.mxu0 %v448
      %556 = vmatprep.subr.bf16.mxu0 0
      %557 = vmatpush1.bf16.msra.mxu0 %v449
      %558 = vmatprep.subr.bf16.mxu0 0
      %559 = vmatpush1.bf16.msra.mxu0 %v450
      %560 = vmatprep.subr.bf16.mxu0 0
      %561 = vmatpush1.bf16.msra.mxu0 %v451
      %562 = vmatprep.subr.bf16.mxu0 0
      %563 = vmatpush1.bf16.msra.mxu0 %v452
      %564 = vmatprep.subr.bf16.mxu0 0
      %565 = vmatpush1.bf16.msra.mxu0 %v453
      %566 = vmatprep.subr.bf16.mxu0 0
      %567 = vmatpush1.bf16.msra.mxu0 0
      %568 = vmatprep.subr.bf16.mxu0 0
      %569 = vmatpush1.bf16.msra.mxu0 0
      %570 = vmatprep.subr.bf16.mxu0 0
      %571 = vmatpush1.bf16.msra.mxu0 0
      %572 = vmatprep.subr.bf16.mxu0 0
      %573 = vmatpush1.bf16.msra.mxu0 0
      %574 = vmatprep.subr.bf16.mxu0 0
      %575 = vmatpush1.bf16.msra.mxu0 0
      %576 = vmatprep.subr.bf16.mxu0 0
      %577 = vmatpush1.bf16.msra.mxu0 0
      %578 = vmatprep.subr.bf16.mxu0 0
      %579 = vmatpush1.bf16.msra.mxu0 0
      %580 = vmatprep.subr.bf16.mxu0 0
      %581 = vmatpush1.bf16.msra.mxu0 0
      %582 = vmatprep.mubr.bf16.mxu0 0
      %583 = vmatmul.mubr.bf16.gmra.mrb[0].mxu0 %v542
      %v584 = vpop.f32.mrb[0].mxu0
      %v585 = vadd.f32 0.0, %v584
      %v586 = vpop.f32.mrb[0].mxu0
      %v587 = vpop.f32.mrb[0].mxu0
      %v588 = vadd.f32 0.0, %v587
      %v589 = vpop.f32.mrb[0].mxu0
      %590 = vmatprep.mubr.bf16.mxu0 0
      %591 = vmatmul.mubr.bf16.gmra.mrb[0].mxu0 %v543
      %v592 = vpop.f32.mrb[0].mxu0
      %v593 = vadd.f32 0.0, %v592
      %v594 = vpop.f32.mrb[0].mxu0
      %v595 = vpop.f32.mrb[0].mxu0
      %v596 = vadd.f32 0.0, %v595
      %v597 = vpop.f32.mrb[0].mxu0
      %598 = vmatprep.mubr.bf16.mxu0 0
      %599 = vmatmul.mubr.bf16.gmra.mrb[0].mxu0 %v544
      %v600 = vpop.f32.mrb[0].mxu0
      %v601 = vadd.f32 0.0, %v600
      %v602 = vpop.f32.mrb[0].mxu0
      %v603 = vpop.f32.mrb[0].mxu0
      %v604 = vadd.f32 0.0, %v603
      %v605 = vpop.f32.mrb[0].mxu0
      %606 = vmatprep.mubr.bf16.mxu0 0
      %607 = vmatmul.mubr.bf16.gmra.mrb[0].mxu0 %v545
      %v608 = vpop.f32.mrb[0].mxu0
      %v609 = vadd.f32 0.0, %v608
      %v610 = vpop.f32.mrb[0].mxu0
      %v611 = vpop.f32.mrb[0].mxu0
      %v612 = vadd.f32 0.0, %v611
      %v613 = vpop.f32.mrb[0].mxu0
      %614 = vmatprep.mubr.bf16.mxu0 0
      %615 = vmatmul.mubr.bf16.gmra.mrb[0].mxu0 %v546
      %v616 = vpop.f32.mrb[0].mxu0
      %v617 = vadd.f32 0.0, %v616
      %v618 = vpop.f32.mrb[0].mxu0
      %v619 = vpop.f32.mrb[0].mxu0
      %v620 = vadd.f32 0.0, %v619
      %v621 = vpop.f32.mrb[0].mxu0
      %622 = vmatprep.mubr.bf16.mxu0 0
      %623 = vmatmul.mubr.bf16.gmra.mrb[0].mxu0 %v547
      %v624 = vpop.f32.mrb[0].mxu0
      %v625 = vadd.f32 0.0, %v624
      %v626 = vpop.f32.mrb[0].mxu0
      %v627 = vpop.f32.mrb[0].mxu0
      %v628 = vadd.f32 0.0, %v627
      %v629 = vpop.f32.mrb[0].mxu0
      %630 = vmatprep.mubr.bf16.mxu0 0
      %631 = vmatmul.mubr.bf16.gmra.mrb[0].mxu0 %v548
      %v632 = vpop.f32.mrb[0].mxu0
      %v633 = vadd.f32 0.0, %v632
      %v634 = vpop.f32.mrb[0].mxu0
      %v635 = vpop.f32.mrb[0].mxu0
      %v636 = vadd.f32 0.0, %v635
      %v637 = vpop.f32.mrb[0].mxu0
      %638 = vmatprep.mubr.bf16.mxu0 0
      %639 = vmatmul.mubr.bf16.gmra.mrb[0].mxu0 %v549
      %v640 = vpop.f32.mrb[0].mxu0
      %v641 = vadd.f32 0.0, %v640
      %v642 = vpop.f32.mrb[0].mxu0
      %v643 = vpop.f32.mrb[0].mxu0
      %v644 = vadd.f32 0.0, %v643
      %v645 = vpop.f32.mrb[0].mxu0
      %646 = vdwg.mxu0
      %v647 = vadd.f32 %v454, %v585
      %v648 = vadd.f32 %v455, %v588
      %v649 = vadd.f32 %v456, %v593
      %v650 = vadd.f32 %v457, %v596
      %v651 = vadd.f32 %v458, %v601
      %v652 = vadd.f32 %v459, %v604
      %v653 = vadd.f32 %v460, %v609
      %v654 = vadd.f32 %v461, %v612
      %v655 = vadd.f32 %v462, %v617
      %v656 = vadd.f32 %v463, %v620
      %v657 = vadd.f32 %v464, %v625
      %v658 = vadd.f32 %v465, %v628
      %v659 = vadd.f32 %v466, %v633
      %v660 = vadd.f32 %v467, %v636
      %v661 = vadd.f32 %v468, %v641
      %v662 = vadd.f32 %v469, %v644
      %663 = vst [vmem:[#allocation2] sm:$0xff] %v647
      %664 = vst [vmem:[#allocation2 + $0x8] sm:$0xff] %v648
      %665 = vst [vmem:[#allocation2 + $0x10] sm:$0xff] %v649
      %666 = vst [vmem:[#allocation2 + $0x18] sm:$0xff] %v650
      %667 = vst [vmem:[#allocation2 + $0x20] sm:$0xff] %v651
      %668 = vst [vmem:[#allocation2 + $0x28] sm:$0xff] %v652
      %669 = vst [vmem:[#allocation2 + $0x30] sm:$0xff] %v653
      %670 = vst [vmem:[#allocation2 + $0x38] sm:$0xff] %v654
      %671 = vst [vmem:[#allocation2 + $0x40] sm:$0xff] %v655
      %672 = vst [vmem:[#allocation2 + $0x48] sm:$0xff] %v656
      %673 = vst [vmem:[#allocation2 + $0x50] sm:$0xff] %v657
      %674 = vst [vmem:[#allocation2 + $0x58] sm:$0xff] %v658
      %675 = vst [vmem:[#allocation2 + $0x60] sm:$0xff] %v659
      %676 = vst [vmem:[#allocation2 + $0x68] sm:$0xff] %v660
      %677 = vst [vmem:[#allocation2 + $0x70] sm:$0xff] %v661
      %678 = vst [vmem:[#allocation2 + $0x78] sm:$0xff] %v662
      %p679 = scmp.eq.s32.totalorder %s15, 1
      // Predicated region
      $region41: #{vbgae_forward.5} parent=35 // pred_check
        %p680 = pneg %p679
      $region42: #{vbgae_forward.5} parent=35 // pred_check_branch
        %682 = sbr.rel (%p680) target = $region44
      $region43: #{vbgae_forward.5} parent=35 // pred_region
        %v683 = vld [vmem:[#allocation2] sm:$0xff]
        %v684 = vld [vmem:[#allocation2 + $0x8] sm:$0xff]
        %v685 = vld [vmem:[#allocation2 + $0x10] sm:$0xff]
        %v686 = vld [vmem:[#allocation2 + $0x18] sm:$0xff]
        %v687 = vld [vmem:[#allocation2 + $0x20] sm:$0xff]
        %v688 = vld [vmem:[#allocation2 + $0x28] sm:$0xff]
        %v689 = vld [vmem:[#allocation2 + $0x30] sm:$0xff]
        %v690 = vld [vmem:[#allocation2 + $0x38] sm:$0xff]
        %v691 = vld [vmem:[#allocation2 + $0x40] sm:$0xff]
        %v692 = vld [vmem:[#allocation2 + $0x48] sm:$0xff]
        %v693 = vld [vmem:[#allocation2 + $0x50] sm:$0xff]
        %v694 = vld [vmem:[#allocation2 + $0x58] sm:$0xff]
        %v695 = vld [vmem:[#allocation2 + $0x60] sm:$0xff]
        %v696 = vld [vmem:[#allocation2 + $0x68] sm:$0xff]
        %v697 = vld [vmem:[#allocation2 + $0x70] sm:$0xff]
        %v698 = vld [vmem:[#allocation2 + $0x78] sm:$0xff]
        %v699 = vmax.f32 %v683, 0.0
        %v700 = vmax.f32 %v684, 0.0
        %v701 = vmax.f32 %v685, 0.0
        %v702 = vmax.f32 %v686, 0.0
        %v703 = vmax.f32 %v687, 0.0
        %v704 = vmax.f32 %v688, 0.0
        %v705 = vmax.f32 %v689, 0.0
        %v706 = vmax.f32 %v690, 0.0
        %v707 = vmax.f32 %v691, 0.0
        %v708 = vmax.f32 %v692, 0.0
        %v709 = vmax.f32 %v693, 0.0
        %v710 = vmax.f32 %v694, 0.0
        %v711 = vmax.f32 %v695, 0.0
        %v712 = vmax.f32 %v696, 0.0
        %v713 = vmax.f32 %v697, 0.0
        %v714 = vmax.f32 %v698, 0.0
        %v715 = vld [vmem:[%s3] sm:$0xff]
        %v716 = vld [vmem:[%s3 + $0x8] sm:$0xff]
        %v717 = vld [vmem:[%s3 + $0x10] sm:$0xff]
        %v718 = vld [vmem:[%s3 + $0x18] sm:$0xff]
        %v719 = vld [vmem:[%s3 + $0x20] sm:$0xff]
        %v720 = vld [vmem:[%s3 + $0x28] sm:$0xff]
        %v721 = vld [vmem:[%s3 + $0x30] sm:$0xff]
        %v722 = vld [vmem:[%s3 + $0x38] sm:$0xff]
        %v723 = vld [vmem:[%s3 + $0x40] sm:$0xff]
        %v724 = vld [vmem:[%s3 + $0x48] sm:$0xff]
        %v725 = vld [vmem:[%s3 + $0x50] sm:$0xff]
        %v726 = vld [vmem:[%s3 + $0x58] sm:$0xff]
        %v727 = vld [vmem:[%s3 + $0x60] sm:$0xff]
        %v728 = vld [vmem:[%s3 + $0x68] sm:$0xff]
        %v729 = vld [vmem:[%s3 + $0x70] sm:$0xff]
        %v730 = vld [vmem:[%s3 + $0x78] sm:$0xff]
        %v731 = vld [vmem:[%s3 + $0x80] sm:$0xff]
        %v732 = vld [vmem:[%s3 + $0x88] sm:$0xff]
        %v733 = vld [vmem:[%s3 + $0x90] sm:$0xff]
        %v734 = vld [vmem:[%s3 + $0x98] sm:$0xff]
        %v735 = vld [vmem:[%s3 + $0xa0] sm:$0xff]
        %v736 = vld [vmem:[%s3 + $0xa8] sm:$0xff]
        %v737 = vld [vmem:[%s3 + $0xb0] sm:$0xff]
        %v738 = vld [vmem:[%s3 + $0xb8] sm:$0xff]
        %v739 = vld [vmem:[%s3 + $0xc0] sm:$0xff]
        %v740 = vld [vmem:[%s3 + $0xc8] sm:$0xff]
        %v741 = vld [vmem:[%s3 + $0xd0] sm:$0xff]
        %v742 = vld [vmem:[%s3 + $0xd8] sm:$0xff]
        %v743 = vld [vmem:[%s3 + $0xe0] sm:$0xff]
        %v744 = vld [vmem:[%s3 + $0xe8] sm:$0xff]
        %v745 = vld [vmem:[%s3 + $0xf0] sm:$0xff]
        %v746 = vld [vmem:[%s3 + $0xf8] sm:$0xff]
        %747 = vmatprep.subr.mxu0 %v716
        %748 = vmatpush1.msra.mxu0 %v715
        %749 = vmatprep.subr.mxu0 %v718
        %750 = vmatpush1.msra.mxu0 %v717
        %751 = vmatprep.subr.mxu0 %v720
        %752 = vmatpush1.msra.mxu0 %v719
        %753 = vmatprep.subr.mxu0 %v722
        %754 = vmatpush1.msra.mxu0 %v721
        %755 = vmatprep.subr.mxu0 %v724
        %756 = vmatpush1.msra.mxu0 %v723
        %757 = vmatprep.subr.mxu0 %v726
        %758 = vmatpush1.msra.mxu0 %v725
        %759 = vmatprep.subr.mxu0 %v728
        %760 = vmatpush1.msra.mxu0 %v727
        %761 = vmatprep.subr.mxu0 %v730
        %762 = vmatpush1.msra.mxu0 %v729
        %763 = vmatprep.subr.mxu0 %v732
        %764 = vmatpush1.msra.mxu0 %v731
        %765 = vmatprep.subr.mxu0 %v734
        %766 = vmatpush1.msra.mxu0 %v733
        %767 = vmatprep.subr.mxu0 %v736
        %768 = vmatpush1.msra.mxu0 %v735
        %769 = vmatprep.subr.mxu0 %v738
        %770 = vmatpush1.msra.mxu0 %v737
        %771 = vmatprep.subr.mxu0 %v740
        %772 = vmatpush1.msra.mxu0 %v739
        %773 = vmatprep.subr.mxu0 %v742
        %774 = vmatpush1.msra.mxu0 %v741
        %775 = vmatprep.subr.mxu0 %v744
        %776 = vmatpush1.msra.mxu0 %v743
        %777 = vmatprep.subr.mxu0 %v746
        %778 = vmatpush1.msra.mxu0 %v745
        %779 = vmatprep.subr.mxu0 0.0
        %780 = vmatpush1.msra.mxu0 0.0
        %781 = vmatprep.subr.mxu0 0.0
        %782 = vmatpush1.msra.mxu0 0.0
        %783 = vmatprep.subr.mxu0 0.0
        %784 = vmatpush1.msra.mxu0 0.0
        %785 = vmatprep.subr.mxu0 0.0
        %786 = vmatpush1.msra.mxu0 0.0
        %787 = vmatprep.subr.mxu0 0.0
        %788 = vmatpush1.msra.mxu0 0.0
        %789 = vmatprep.subr.mxu0 0.0
        %790 = vmatpush1.msra.mxu0 0.0
        %791 = vmatprep.subr.mxu0 0.0
        %792 = vmatpush1.msra.mxu0 0.0
        %793 = vmatprep.subr.mxu0 0.0
        %794 = vmatpush1.msra.mxu0 0.0
        %795 = vmatprep.subr.mxu0 0.0
        %796 = vmatpush1.msra.mxu0 0.0
        %797 = vmatprep.subr.mxu0 0.0
        %798 = vmatpush1.msra.mxu0 0.0
        %799 = vmatprep.subr.mxu0 0.0
        %800 = vmatpush1.msra.mxu0 0.0
        %801 = vmatprep.subr.mxu0 0.0
        %802 = vmatpush1.msra.mxu0 0.0
        %803 = vmatprep.subr.mxu0 0.0
        %804 = vmatpush1.msra.mxu0 0.0
        %805 = vmatprep.subr.mxu0 0.0
        %806 = vmatpush1.msra.mxu0 0.0
        %807 = vmatprep.subr.mxu0 0.0
        %808 = vmatpush1.msra.mxu0 0.0
        %809 = vmatprep.subr.mxu0 0.0
        %810 = vmatpush1.msra.mxu0 0.0
        %811 = vmatprep.mubr.f32.mxu0 0.0
        %812 = vmatmul.mubr.f32.gmra.mrb[0].mxu0 %v699
        %v813 = vpop.f32.mrb[0].mxu0
        %v814 = vadd.f32 0.0, %v813
        %v815 = vpop.f32.mrb[0].mxu0
        %v816 = vadd.f32 0.0, %v815
        %817 = vmatprep.mubr.f32.mxu0 0.0
        %818 = vmatmul.mubr.f32.gmra.mrb[0].mxu0 %v700
        %v819 = vpop.f32.mrb[0].mxu0
        %v820 = vadd.f32 0.0, %v819
        %v821 = vpop.f32.mrb[0].mxu0
        %v822 = vadd.f32 0.0, %v821
        %823 = vmatprep.mubr.f32.mxu0 0.0
        %824 = vmatmul.mubr.f32.gmra.mrb[0].mxu0 %v701
        %v825 = vpop.f32.mrb[0].mxu0
        %v826 = vadd.f32 0.0, %v825
        %v827 = vpop.f32.mrb[0].mxu0
        %v828 = vadd.f32 0.0, %v827
        %829 = vmatprep.mubr.f32.mxu0 0.0
        %830 = vmatmul.mubr.f32.gmra.mrb[0].mxu0 %v702
        %v831 = vpop.f32.mrb[0].mxu0
        %v832 = vadd.f32 0.0, %v831
        %v833 = vpop.f32.mrb[0].mxu0
        %v834 = vadd.f32 0.0, %v833
        %835 = vmatprep.mubr.f32.mxu0 0.0
        %836 = vmatmul.mubr.f32.gmra.mrb[0].mxu0 %v703
        %v837 = vpop.f32.mrb[0].mxu0
        %v838 = vadd.f32 0.0, %v837
        %v839 = vpop.f32.mrb[0].mxu0
        %v840 = vadd.f32 0.0, %v839
        %841 = vmatprep.mubr.f32.mxu0 0.0
        %842 = vmatmul.mubr.f32.gmra.mrb[0].mxu0 %v704
        %v843 = vpop.f32.mrb[0].mxu0
        %v844 = vadd.f32 0.0, %v843
        %v845 = vpop.f32.mrb[0].mxu0
        %v846 = vadd.f32 0.0, %v845
        %847 = vmatprep.mubr.f32.mxu0 0.0
        %848 = vmatmul.mubr.f32.gmra.mrb[0].mxu0 %v705
        %v849 = vpop.f32.mrb[0].mxu0
        %v850 = vadd.f32 0.0, %v849
        %v851 = vpop.f32.mrb[0].mxu0
        %v852 = vadd.f32 0.0, %v851
        %853 = vmatprep.mubr.f32.mxu0 0.0
        %854 = vmatmul.mubr.f32.gmra.mrb[0].mxu0 %v706
        %v855 = vpop.f32.mrb[0].mxu0
        %v856 = vadd.f32 0.0, %v855
        %v857 = vpop.f32.mrb[0].mxu0
        %v858 = vadd.f32 0.0, %v857
        %859 = vmatprep.mubr.f32.mxu0 0.0
        %860 = vmatmul.mubr.f32.gmra.mrb[0].mxu0 %v707
        %v861 = vpop.f32.mrb[0].mxu0
        %v862 = vadd.f32 0.0, %v861
        %v863 = vpop.f32.mrb[0].mxu0
        %v864 = vadd.f32 0.0, %v863
        %865 = vmatprep.mubr.f32.mxu0 0.0
        %866 = vmatmul.mubr.f32.gmra.mrb[0].mxu0 %v708
        %v867 = vpop.f32.mrb[0].mxu0
        %v868 = vadd.f32 0.0, %v867
        %v869 = vpop.f32.mrb[0].mxu0
        %v870 = vadd.f32 0.0, %v869
        %871 = vmatprep.mubr.f32.mxu0 0.0
        %872 = vmatmul.mubr.f32.gmra.mrb[0].mxu0 %v709
        %v873 = vpop.f32.mrb[0].mxu0
        %v874 = vadd.f32 0.0, %v873
        %v875 = vpop.f32.mrb[0].mxu0
        %v876 = vadd.f32 0.0, %v875
        %877 = vmatprep.mubr.f32.mxu0 0.0
        %878 = vmatmul.mubr.f32.gmra.mrb[0].mxu0 %v710
        %v879 = vpop.f32.mrb[0].mxu0
        %v880 = vadd.f32 0.0, %v879
        %v881 = vpop.f32.mrb[0].mxu0
        %v882 = vadd.f32 0.0, %v881
        %883 = vmatprep.mubr.f32.mxu0 0.0
        %884 = vmatmul.mubr.f32.gmra.mrb[0].mxu0 %v711
        %v885 = vpop.f32.mrb[0].mxu0
        %v886 = vadd.f32 0.0, %v885
        %v887 = vpop.f32.mrb[0].mxu0
        %v888 = vadd.f32 0.0, %v887
        %889 = vmatprep.mubr.f32.mxu0 0.0
        %890 = vmatmul.mubr.f32.gmra.mrb[0].mxu0 %v712
        %v891 = vpop.f32.mrb[0].mxu0
        %v892 = vadd.f32 0.0, %v891
        %v893 = vpop.f32.mrb[0].mxu0
        %v894 = vadd.f32 0.0, %v893
        %895 = vmatprep.mubr.f32.mxu0 0.0
        %896 = vmatmul.mubr.f32.gmra.mrb[0].mxu0 %v713
        %v897 = vpop.f32.mrb[0].mxu0
        %v898 = vadd.f32 0.0, %v897
        %v899 = vpop.f32.mrb[0].mxu0
        %v900 = vadd.f32 0.0, %v899
        %901 = vmatprep.mubr.f32.mxu0 0.0
        %902 = vmatmul.mubr.f32.gmra.mrb[0].mxu0 %v714
        %v903 = vpop.f32.mrb[0].mxu0
        %v904 = vadd.f32 0.0, %v903
        %v905 = vpop.f32.mrb[0].mxu0
        %v906 = vadd.f32 0.0, %v905
        %907 = vdwg.mxu0
        %908 = vst [vmem:[%s4] sm:$0xff] %v814
        %909 = vst [vmem:[%s4 + $0x8] sm:$0xff] %v816
        %910 = vst [vmem:[%s4 + $0x10] sm:$0xff] %v820
        %911 = vst [vmem:[%s4 + $0x18] sm:$0xff] %v822
        %912 = vst [vmem:[%s4 + $0x20] sm:$0xff] %v826
        %913 = vst [vmem:[%s4 + $0x28] sm:$0xff] %v828
        %914 = vst [vmem:[%s4 + $0x30] sm:$0xff] %v832
        %915 = vst [vmem:[%s4 + $0x38] sm:$0xff] %v834
        %916 = vst [vmem:[%s4 + $0x40] sm:$0xff] %v838
        %917 = vst [vmem:[%s4 + $0x48] sm:$0xff] %v840
        %918 = vst [vmem:[%s4 + $0x50] sm:$0xff] %v844
        %919 = vst [vmem:[%s4 + $0x58] sm:$0xff] %v846
        %920 = vst [vmem:[%s4 + $0x60] sm:$0xff] %v850
        %921 = vst [vmem:[%s4 + $0x68] sm:$0xff] %v852
        %922 = vst [vmem:[%s4 + $0x70] sm:$0xff] %v856
        %923 = vst [vmem:[%s4 + $0x78] sm:$0xff] %v858
        %924 = vst [vmem:[%s4 + $0x80] sm:$0xff] %v862
        %925 = vst [vmem:[%s4 + $0x88] sm:$0xff] %v864
        %926 = vst [vmem:[%s4 + $0x90] sm:$0xff] %v868
        %927 = vst [vmem:[%s4 + $0x98] sm:$0xff] %v870
        %928 = vst [vmem:[%s4 + $0xa0] sm:$0xff] %v874
        %929 = vst [vmem:[%s4 + $0xa8] sm:$0xff] %v876
        %930 = vst [vmem:[%s4 + $0xb0] sm:$0xff] %v880
        %931 = vst [vmem:[%s4 + $0xb8] sm:$0xff] %v882
        %932 = vst [vmem:[%s4 + $0xc0] sm:$0xff] %v886
        %933 = vst [vmem:[%s4 + $0xc8] sm:$0xff] %v888
        %934 = vst [vmem:[%s4 + $0xd0] sm:$0xff] %v892
        %935 = vst [vmem:[%s4 + $0xd8] sm:$0xff] %v894
        %936 = vst [vmem:[%s4 + $0xe0] sm:$0xff] %v898
        %937 = vst [vmem:[%s4 + $0xe8] sm:$0xff] %v900
        %938 = vst [vmem:[%s4 + $0xf0] sm:$0xff] %v904
        %939 = vst [vmem:[%s4 + $0xf8] sm:$0xff] %v906
      $region44: #{vbgae_forward.5} parent=35 // pred_fallthru
        _
      // Predicated region
      $region45: #{vbgae_forward.5} parent=35 // pred_check
        %p940 = pneg %p122
      $region46: #{vbgae_forward.5} parent=35 // pred_check_branch
        %942 = sbr.rel (%p940) target = $region48
      $region47: #{vbgae_forward.5} parent=35 // pred_region
        _
      $region48: #{vbgae_forward.5} parent=35 // pred_fallthru
        _
      // Predicated region
      $region49: #{vbgae_forward.5} parent=35 // pred_check
        %p943 = pneg %p122
      $region50: #{vbgae_forward.5} parent=35 // pred_check_branch
        %945 = sbr.rel (%p943) target = $region52
      $region51: #{vbgae_forward.5} parent=35 // pred_region
        _
      $region52: #{vbgae_forward.5} parent=35 // pred_fallthru
        _
    $region36: #{vbgae_forward.5} parent=5 // pred_fallthru
      _
    %p946 = scmp.le.s32.totalorder 2, %s10
    // Predicated region
    $region53: #{vbgae_forward.5} parent=5 // pred_check
      %p947 = pneg %p946
    $region54: #{vbgae_forward.5} parent=5 // pred_check_branch
      %949 = sbr.rel (%p947) target = $region56
    $region55: #{vbgae_forward.5} parent=5 // pred_region
      %s950 = ssub.s32 %s10, 2
    $region56: #{vbgae_forward.5} parent=5 // pred_fallthru
      _
  $region6: #{vbgae_forward.5} parent=0 // loop_footer
    %s14 = sadd.s32 1, %s10
  $region7: #{vbgae_forward.5} parent=0 // loop_footer_branch
    %9 = sbr.rel target = $region3
  $region8: #{vbgae_forward.5} parent=0 // loop_exit
    _

// kernel: vbgae_forward.7
$region0: #{vbgae_forward.7}
  #allocation0 [shape = 'u32[]', space=smem, size = 0x4, offset = 0x4, fixed_abs, tag = 'smem constant byte address 0x4 - core index']
  #allocation1 [shape = 'u32[144,128]{1,0:T(1,128)}', space=vmem, size = 0x12000, scoped, tag = 'internal scratch']
  #allocation2 [shape = 'f32[256,128]{1,0:T(8,128)}', space=vmem, size = 0x20000, scoped, tag = 'scratch operand']
  %s0 = inlined_call_operand.vmem [shape: bf16[256,128], index: 0, kind: input, shape index: {}]
  %s1 = inlined_call_operand.vmem [shape: f32[128,32], index: 1, kind: input, shape index: {}]
  %s2 = inlined_call_operand.vmem [shape: f32[32,128], index: 2, kind: input, shape index: {}]
  %s3 = inlined_call_operand.vmem [shape: f32[128,256], index: 3, kind: input, shape index: {}]
  %s4 = inlined_call_operand.vmem [shape: f32[256,256], index: 4, kind: output, shape index: {}]
  %s5 = sld [smem:[#allocation0]]
  $region34: #{vbgae_forward.7} parent=0
    _
  %s7 = ssub.s32 1, %s5
  %s8 = scalar_select 0, %s7, %s5
  // Predicated region
  $region2: #{vbgae_forward.7} parent=0 // pred_check
    _
  $region3: #{vbgae_forward.7} parent=0 // pred_check_branch
    %10 = sbr.rel (0) target = $region5
  $region4: #{vbgae_forward.7} parent=0 // pred_region
    _
  $region5: #{vbgae_forward.7} parent=0 // pred_fallthru
    _
  // Predicated region
  $region6: #{vbgae_forward.7} parent=0 // pred_check
    _
  $region7: #{vbgae_forward.7} parent=0 // pred_check_branch
    %12 = sbr.rel (0) target = $region9
  $region8: #{vbgae_forward.7} parent=0 // pred_region
    _
  $region9: #{vbgae_forward.7} parent=0 // pred_fallthru
    _
  // Predicated region
  $region10: #{vbgae_forward.7} parent=0 // pred_check
    _
  $region11: #{vbgae_forward.7} parent=0 // pred_check_branch
    %14 = sbr.rel (0) target = $region13
  $region12: #{vbgae_forward.7} parent=0 // pred_region
    _
  $region13: #{vbgae_forward.7} parent=0 // pred_fallthru
    _
  // Predicated region
  $region14: #{vbgae_forward.7} parent=0 // pred_check
    _
  $region15: #{vbgae_forward.7} parent=0 // pred_check_branch
    %16 = sbr.rel (0) target = $region17
  $region16: #{vbgae_forward.7} parent=0 // pred_region
    _
  $region17: #{vbgae_forward.7} parent=0 // pred_fallthru
    _
  %p18 = scmp.eq.s32.totalorder 0, 0
  // Predicated region
  $region18: #{vbgae_forward.7} parent=0 // pred_check
    %p19 = pneg %p18
  $region19: #{vbgae_forward.7} parent=0 // pred_check_branch
    %21 = sbr.rel (%p19) target = $region21
  $region20: #{vbgae_forward.7} parent=0 // pred_region
    %22 = vst [vmem:[#allocation2] sm:$0xff] 0.0
    %23 = vst [vmem:[#allocation2 + $0x8] sm:$0xff] 0.0
    %24 = vst [vmem:[#allocation2 + $0x10] sm:$0xff] 0.0
    %25 = vst [vmem:[#allocation2 + $0x18] sm:$0xff] 0.0
    %26 = vst [vmem:[#allocation2 + $0x20] sm:$0xff] 0.0
    %27 = vst [vmem:[#allocation2 + $0x28] sm:$0xff] 0.0
    %28 = vst [vmem:[#allocation2 + $0x30] sm:$0xff] 0.0
    %29 = vst [vmem:[#allocation2 + $0x38] sm:$0xff] 0.0
    %30 = vst [vmem:[#allocation2 + $0x40] sm:$0xff] 0.0
    %31 = vst [vmem:[#allocation2 + $0x48] sm:$0xff] 0.0
    %32 = vst [vmem:[#allocation2 + $0x50] sm:$0xff] 0.0
    %33 = vst [vmem:[#allocation2 + $0x58] sm:$0xff] 0.0
    %34 = vst [vmem:[#allocation2 + $0x60] sm:$0xff] 0.0
    %35 = vst [vmem:[#allocation2 + $0x68] sm:$0xff] 0.0
    %36 = vst [vmem:[#allocation2 + $0x70] sm:$0xff] 0.0
    %37 = vst [vmem:[#allocation2 + $0x78] sm:$0xff] 0.0
    %38 = vst [vmem:[#allocation2 + $0x80] sm:$0xff] 0.0
    %39 = vst [vmem:[#allocation2 + $0x88] sm:$0xff] 0.0
    %40 = vst [vmem:[#allocation2 + $0x90] sm:$0xff] 0.0
    %41 = vst [vmem:[#allocation2 + $0x98] sm:$0xff] 0.0
    %42 = vst [vmem:[#allocation2 + $0xa0] sm:$0xff] 0.0
    %43 = vst [vmem:[#allocation2 + $0xa8] sm:$0xff] 0.0
    %44 = vst [vmem:[#allocation2 + $0xb0] sm:$0xff] 0.0
    %45 = vst [vmem:[#allocation2 + $0xb8] sm:$0xff] 0.0
    %46 = vst [vmem:[#allocation2 + $0xc0] sm:$0xff] 0.0
    %47 = vst [vmem:[#allocation2 + $0xc8] sm:$0xff] 0.0
    %48 = vst [vmem:[#allocation2 + $0xd0] sm:$0xff] 0.0
    %49 = vst [vmem:[#allocation2 + $0xd8] sm:$0xff] 0.0
    %50 = vst [vmem:[#allocation2 + $0xe0] sm:$0xff] 0.0
    %51 = vst [vmem:[#allocation2 + $0xe8] sm:$0xff] 0.0
    %52 = vst [vmem:[#allocation2 + $0xf0] sm:$0xff] 0.0
    %53 = vst [vmem:[#allocation2 + $0xf8] sm:$0xff] 0.0
  $region21: #{vbgae_forward.7} parent=0 // pred_fallthru
    _
  %v54 = vld [vmem:[%s1] sm:$0xff]
  %v55 = vld [vmem:[%s1 + $0x8] sm:$0xff]
  %v56 = vld [vmem:[%s1 + $0x10] sm:$0xff]
  %v57 = vld [vmem:[%s1 + $0x18] sm:$0xff]
  %v58 = vld [vmem:[%s1 + $0x20] sm:$0xff]
  %v59 = vld [vmem:[%s1 + $0x28] sm:$0xff]
  %v60 = vld [vmem:[%s1 + $0x30] sm:$0xff]
  %v61 = vld [vmem:[%s1 + $0x38] sm:$0xff]
  %v62 = vld [vmem:[%s1 + $0x40] sm:$0xff]
  %v63 = vld [vmem:[%s1 + $0x48] sm:$0xff]
  %v64 = vld [vmem:[%s1 + $0x50] sm:$0xff]
  %v65 = vld [vmem:[%s1 + $0x58] sm:$0xff]
  %v66 = vld [vmem:[%s1 + $0x60] sm:$0xff]
  %v67 = vld [vmem:[%s1 + $0x68] sm:$0xff]
  %v68 = vld [vmem:[%s1 + $0x70] sm:$0xff]
  %v69 = vld [vmem:[%s1 + $0x78] sm:$0xff]
  %v70 = vld [vmem:[%s2] sm:$0xff]
  %v71 = vld [vmem:[%s2 + $0x8] sm:$0xff]
  %v72 = vld [vmem:[%s2 + $0x10] sm:$0xff]
  %v73 = vld [vmem:[%s2 + $0x18] sm:$0xff]
  %vm74 = vcmask 261120
  %v76 = vsel %vm74, %v54, 0
  %v79 = vsel %vm74, %v55, 0
  %v82 = vsel %vm74, %v56, 0
  %v85 = vsel %vm74, %v57, 0
  %v88 = vsel %vm74, %v58, 0
  %v91 = vsel %vm74, %v59, 0
  %v94 = vsel %vm74, %v60, 0
  %v97 = vsel %vm74, %v61, 0
  %v100 = vsel %vm74, %v62, 0
  %v103 = vsel %vm74, %v63, 0
  %v106 = vsel %vm74, %v64, 0
  %v109 = vsel %vm74, %v65, 0
  %v112 = vsel %vm74, %v66, 0
  %v115 = vsel %vm74, %v67, 0
  %v118 = vsel %vm74, %v68, 0
  %v121 = vsel %vm74, %v69, 0
  %123 = vmatprep.subr.mxu0 0.0
  %124 = vmatpush1.msra.mxu0 %v70
  %125 = vmatprep.subr.mxu0 0.0
  %126 = vmatpush1.msra.mxu0 %v71
  %127 = vmatprep.subr.mxu0 0.0
  %128 = vmatpush1.msra.mxu0 %v72
  %129 = vmatprep.subr.mxu0 0.0
  %130 = vmatpush1.msra.mxu0 %v73
  %131 = vmatprep.subr.mxu0 0.0
  %132 = vmatpush1.msra.mxu0 0.0
  %133 = vmatprep.subr.mxu0 0.0
  %134 = vmatpush1.msra.mxu0 0.0
  %135 = vmatprep.subr.mxu0 0.0
  %136 = vmatpush1.msra.mxu0 0.0
  %137 = vmatprep.subr.mxu0 0.0
  %138 = vmatpush1.msra.mxu0 0.0
  %139 = vmatprep.subr.mxu0 0.0
  %140 = vmatpush1.msra.mxu0 0.0
  %141 = vmatprep.subr.mxu0 0.0
  %142 = vmatpush1.msra.mxu0 0.0
  %143 = vmatprep.subr.mxu0 0.0
  %144 = vmatpush1.msra.mxu0 0.0
  %145 = vmatprep.subr.mxu0 0.0
  %146 = vmatpush1.msra.mxu0 0.0
  %147 = vmatprep.subr.mxu0 0.0
  %148 = vmatpush1.msra.mxu0 0.0
  %149 = vmatprep.subr.mxu0 0.0
  %150 = vmatpush1.msra.mxu0 0.0
  %151 = vmatprep.subr.mxu0 0.0
  %152 = vmatpush1.msra.mxu0 0.0
  %153 = vmatprep.subr.mxu0 0.0
  %154 = vmatpush1.msra.mxu0 0.0
  %155 = vmatprep.subr.mxu0 0.0
  %156 = vmatpush1.msra.mxu0 0.0
  %157 = vmatprep.subr.mxu0 0.0
  %158 = vmatpush1.msra.mxu0 0.0
  %159 = vmatprep.subr.mxu0 0.0
  %160 = vmatpush1.msra.mxu0 0.0
  %161 = vmatprep.subr.mxu0 0.0
  %162 = vmatpush1.msra.mxu0 0.0
  %163 = vmatprep.subr.mxu0 0.0
  %164 = vmatpush1.msra.mxu0 0.0
  %165 = vmatprep.subr.mxu0 0.0
  %166 = vmatpush1.msra.mxu0 0.0
  %167 = vmatprep.subr.mxu0 0.0
  %168 = vmatpush1.msra.mxu0 0.0
  %169 = vmatprep.subr.mxu0 0.0
  %170 = vmatpush1.msra.mxu0 0.0
  %171 = vmatprep.subr.mxu0 0.0
  %172 = vmatpush1.msra.mxu0 0.0
  %173 = vmatprep.subr.mxu0 0.0
  %174 = vmatpush1.msra.mxu0 0.0
  %175 = vmatprep.subr.mxu0 0.0
  %176 = vmatpush1.msra.mxu0 0.0
  %177 = vmatprep.subr.mxu0 0.0
  %178 = vmatpush1.msra.mxu0 0.0
  %179 = vmatprep.subr.mxu0 0.0
  %180 = vmatpush1.msra.mxu0 0.0
  %181 = vmatprep.subr.mxu0 0.0
  %182 = vmatpush1.msra.mxu0 0.0
  %183 = vmatprep.subr.mxu0 0.0
  %184 = vmatpush1.msra.mxu0 0.0
  %185 = vmatprep.subr.mxu0 0.0
  %186 = vmatpush1.msra.mxu0 0.0
  %187 = vmatprep.mubr.f32.mxu0 0.0
  %188 = vmatmul.mubr.f32.gmra.mrb[0].mxu0 %v76
  %v189 = vpop.f32.mrb[0].mxu0
  %v190 = vadd.f32 0.0, %v189
  %v191 = vpop.f32.mrb[0].mxu0
  %192 = vmatprep.mubr.f32.mxu0 0.0
  %193 = vmatmul.mubr.f32.gmra.mrb[0].mxu0 %v79
  %v194 = vpop.f32.mrb[0].mxu0
  %v195 = vadd.f32 0.0, %v194
  %v196 = vpop.f32.mrb[0].mxu0
  %197 = vmatprep.mubr.f32.mxu0 0.0
  %198 = vmatmul.mubr.f32.gmra.mrb[0].mxu0 %v82
  %v199 = vpop.f32.mrb[0].mxu0
  %v200 = vadd.f32 0.0, %v199
  %v201 = vpop.f32.mrb[0].mxu0
  %202 = vmatprep.mubr.f32.mxu0 0.0
  %203 = vmatmul.mubr.f32.gmra.mrb[0].mxu0 %v85
  %v204 = vpop.f32.mrb[0].mxu0
  %v205 = vadd.f32 0.0, %v204
  %v206 = vpop.f32.mrb[0].mxu0
  %207 = vmatprep.mubr.f32.mxu0 0.0
  %208 = vmatmul.mubr.f32.gmra.mrb[0].mxu0 %v88
  %v209 = vpop.f32.mrb[0].mxu0
  %v210 = vadd.f32 0.0, %v209
  %v211 = vpop.f32.mrb[0].mxu0
  %212 = vmatprep.mubr.f32.mxu0 0.0
  %213 = vmatmul.mubr.f32.gmra.mrb[0].mxu0 %v91
  %v214 = vpop.f32.mrb[0].mxu0
  %v215 = vadd.f32 0.0, %v214
  %v216 = vpop.f32.mrb[0].mxu0
  %217 = vmatprep.mubr.f32.mxu0 0.0
  %218 = vmatmul.mubr.f32.gmra.mrb[0].mxu0 %v94
  %v219 = vpop.f32.mrb[0].mxu0
  %v220 = vadd.f32 0.0, %v219
  %v221 = vpop.f32.mrb[0].mxu0
  %222 = vmatprep.mubr.f32.mxu0 0.0
  %223 = vmatmul.mubr.f32.gmra.mrb[0].mxu0 %v97
  %v224 = vpop.f32.mrb[0].mxu0
  %v225 = vadd.f32 0.0, %v224
  %v226 = vpop.f32.mrb[0].mxu0
  %227 = vmatprep.mubr.f32.mxu0 0.0
  %228 = vmatmul.mubr.f32.gmra.mrb[0].mxu0 %v100
  %v229 = vpop.f32.mrb[0].mxu0
  %v230 = vadd.f32 0.0, %v229
  %v231 = vpop.f32.mrb[0].mxu0
  %232 = vmatprep.mubr.f32.mxu0 0.0
  %233 = vmatmul.mubr.f32.gmra.mrb[0].mxu0 %v103
  %v234 = vpop.f32.mrb[0].mxu0
  %v235 = vadd.f32 0.0, %v234
  %v236 = vpop.f32.mrb[0].mxu0
  %237 = vmatprep.mubr.f32.mxu0 0.0
  %238 = vmatmul.mubr.f32.gmra.mrb[0].mxu0 %v106
  %v239 = vpop.f32.mrb[0].mxu0
  %v240 = vadd.f32 0.0, %v239
  %v241 = vpop.f32.mrb[0].mxu0
  %242 = vmatprep.mubr.f32.mxu0 0.0
  %243 = vmatmul.mubr.f32.gmra.mrb[0].mxu0 %v109
  %v244 = vpop.f32.mrb[0].mxu0
  %v245 = vadd.f32 0.0, %v244
  %v246 = vpop.f32.mrb[0].mxu0
  %247 = vmatprep.mubr.f32.mxu0 0.0
  %248 = vmatmul.mubr.f32.gmra.mrb[0].mxu0 %v112
  %v249 = vpop.f32.mrb[0].mxu0
  %v250 = vadd.f32 0.0, %v249
  %v251 = vpop.f32.mrb[0].mxu0
  %252 = vmatprep.mubr.f32.mxu0 0.0
  %253 = vmatmul.mubr.f32.gmra.mrb[0].mxu0 %v115
  %v254 = vpop.f32.mrb[0].mxu0
  %v255 = vadd.f32 0.0, %v254
  %v256 = vpop.f32.mrb[0].mxu0
  %257 = vmatprep.mubr.f32.mxu0 0.0
  %258 = vmatmul.mubr.f32.gmra.mrb[0].mxu0 %v118
  %v259 = vpop.f32.mrb[0].mxu0
  %v260 = vadd.f32 0.0, %v259
  %v261 = vpop.f32.mrb[0].mxu0
  %262 = vmatprep.mubr.f32.mxu0 0.0
  %263 = vmatmul.mubr.f32.gmra.mrb[0].mxu0 %v121
  %v264 = vpop.f32.mrb[0].mxu0
  %v265 = vadd.f32 0.0, %v264
  %v266 = vpop.f32.mrb[0].mxu0
  %267 = vdwg.mxu0
  %v268 = vpack.c.bf16 %v195, %v190
  %v269 = vpack.c.bf16 %v205, %v200
  %v270 = vpack.c.bf16 %v215, %v210
  %v271 = vpack.c.bf16 %v225, %v220
  %v272 = vpack.c.bf16 %v235, %v230
  %v273 = vpack.c.bf16 %v245, %v240
  %v274 = vpack.c.bf16 %v255, %v250
  %v275 = vpack.c.bf16 %v265, %v260
  %v276 = vld [vmem:[#allocation2] sm:$0xff]
  %v277 = vld [vmem:[#allocation2 + $0x8] sm:$0xff]
  %v278 = vld [vmem:[#allocation2 + $0x10] sm:$0xff]
  %v279 = vld [vmem:[#allocation2 + $0x18] sm:$0xff]
  %v280 = vld [vmem:[#allocation2 + $0x20] sm:$0xff]
  %v281 = vld [vmem:[#allocation2 + $0x28] sm:$0xff]
  %v282 = vld [vmem:[#allocation2 + $0x30] sm:$0xff]
  %v283 = vld [vmem:[#allocation2 + $0x38] sm:$0xff]
  %v284 = vld [vmem:[#allocation2 + $0x40] sm:$0xff]
  %v285 = vld [vmem:[#allocation2 + $0x48] sm:$0xff]
  %v286 = vld [vmem:[#allocation2 + $0x50] sm:$0xff]
  %v287 = vld [vmem:[#allocation2 + $0x58] sm:$0xff]
  %v288 = vld [vmem:[#allocation2 + $0x60] sm:$0xff]
  %v289 = vld [vmem:[#allocation2 + $0x68] sm:$0xff]
  %v290 = vld [vmem:[#allocation2 + $0x70] sm:$0xff]
  %v291 = vld [vmem:[#allocation2 + $0x78] sm:$0xff]
  %v292 = vld [vmem:[#allocation2 + $0x80] sm:$0xff]
  %v293 = vld [vmem:[#allocation2 + $0x88] sm:$0xff]
  %v294 = vld [vmem:[#allocation2 + $0x90] sm:$0xff]
  %v295 = vld [vmem:[#allocation2 + $0x98] sm:$0xff]
  %v296 = vld [vmem:[#allocation2 + $0xa0] sm:$0xff]
  %v297 = vld [vmem:[#allocation2 + $0xa8] sm:$0xff]
  %v298 = vld [vmem:[#allocation2 + $0xb0] sm:$0xff]
  %v299 = vld [vmem:[#allocation2 + $0xb8] sm:$0xff]
  %v300 = vld [vmem:[#allocation2 + $0xc0] sm:$0xff]
  %v301 = vld [vmem:[#allocation2 + $0xc8] sm:$0xff]
  %v302 = vld [vmem:[#allocation2 + $0xd0] sm:$0xff]
  %v303 = vld [vmem:[#allocation2 + $0xd8] sm:$0xff]
  %v304 = vld [vmem:[#allocation2 + $0xe0] sm:$0xff]
  %v305 = vld [vmem:[#allocation2 + $0xe8] sm:$0xff]
  %v306 = vld [vmem:[#allocation2 + $0xf0] sm:$0xff]
  %v307 = vld [vmem:[#allocation2 + $0xf8] sm:$0xff]
  %v308 = vld [vmem:[%s0] sm:$0xf]
  %v309 = vld [vmem:[%s0 + $0x4] sm:$0xf]
  %v310 = vld [vmem:[%s0 + $0x8] sm:$0xf]
  %v311 = vld [vmem:[%s0 + $0xc] sm:$0xf]
  %v312 = vld [vmem:[%s0 + $0x10] sm:$0xf]
  %v313 = vld [vmem:[%s0 + $0x14] sm:$0xf]
  %v314 = vld [vmem:[%s0 + $0x18] sm:$0xf]
  %v315 = vld [vmem:[%s0 + $0x1c] sm:$0xf]
  %v316 = vld [vmem:[%s0 + $0x20] sm:$0xf]
  %v317 = vld [vmem:[%s0 + $0x24] sm:$0xf]
  %v318 = vld [vmem:[%s0 + $0x28] sm:$0xf]
  %v319 = vld [vmem:[%s0 + $0x2c] sm:$0xf]
  %v320 = vld [vmem:[%s0 + $0x30] sm:$0xf]
  %v321 = vld [vmem:[%s0 + $0x34] sm:$0xf]
  %v322 = vld [vmem:[%s0 + $0x38] sm:$0xf]
  %v323 = vld [vmem:[%s0 + $0x3c] sm:$0xf]
  %v324 = vld [vmem:[%s0 + $0x40] sm:$0xf]
  %v325 = vld [vmem:[%s0 + $0x44] sm:$0xf]
  %v326 = vld [vmem:[%s0 + $0x48] sm:$0xf]
  %v327 = vld [vmem:[%s0 + $0x4c] sm:$0xf]
  %v328 = vld [vmem:[%s0 + $0x50] sm:$0xf]
  %v329 = vld [vmem:[%s0 + $0x54] sm:$0xf]
  %v330 = vld [vmem:[%s0 + $0x58] sm:$0xf]
  %v331 = vld [vmem:[%s0 + $0x5c] sm:$0xf]
  %v332 = vld [vmem:[%s0 + $0x60] sm:$0xf]
  %v333 = vld [vmem:[%s0 + $0x64] sm:$0xf]
  %v334 = vld [vmem:[%s0 + $0x68] sm:$0xf]
  %v335 = vld [vmem:[%s0 + $0x6c] sm:$0xf]
  %v336 = vld [vmem:[%s0 + $0x70] sm:$0xf]
  %v337 = vld [vmem:[%s0 + $0x74] sm:$0xf]
  %v338 = vld [vmem:[%s0 + $0x78] sm:$0xf]
  %v339 = vld [vmem:[%s0 + $0x7c] sm:$0xf]
  %v372 = vunpack.c.l.b16 %v308
  %v373 = vunpack.c.l.b16 %v309
  %v374 = vunpack.c.l.b16 %v310
  %v375 = vunpack.c.l.b16 %v311
  %v376 = vunpack.c.l.b16 %v312
  %v377 = vunpack.c.l.b16 %v313
  %v378 = vunpack.c.l.b16 %v314
  %v379 = vunpack.c.l.b16 %v315
  %v380 = vunpack.c.l.b16 %v316
  %v381 = vunpack.c.l.b16 %v317
  %v382 = vunpack.c.l.b16 %v318
  %v383 = vunpack.c.l.b16 %v319
  %v384 = vunpack.c.l.b16 %v320
  %v385 = vunpack.c.l.b16 %v321
  %v386 = vunpack.c.l.b16 %v322
  %v387 = vunpack.c.l.b16 %v323
  %v388 = vunpack.c.l.b16 %v324
  %v389 = vunpack.c.l.b16 %v325
  %v390 = vunpack.c.l.b16 %v326
  %v391 = vunpack.c.l.b16 %v327
  %v392 = vunpack.c.l.b16 %v328
  %v393 = vunpack.c.l.b16 %v329
  %v394 = vunpack.c.l.b16 %v330
  %v395 = vunpack.c.l.b16 %v331
  %v396 = vunpack.c.l.b16 %v332
  %v397 = vunpack.c.l.b16 %v333
  %v398 = vunpack.c.l.b16 %v334
  %v399 = vunpack.c.l.b16 %v335
  %v400 = vunpack.c.l.b16 %v336
  %v401 = vunpack.c.l.b16 %v337
  %v402 = vunpack.c.l.b16 %v338
  %v403 = vunpack.c.l.b16 %v339
  %v404 = vpack.c.b16 %v373, %v372
  %v405 = vpack.c.b16 %v375, %v374
  %v406 = vpack.c.b16 %v377, %v376
  %v407 = vpack.c.b16 %v379, %v378
  %v408 = vpack.c.b16 %v381, %v380
  %v409 = vpack.c.b16 %v383, %v382
  %v410 = vpack.c.b16 %v385, %v384
  %v411 = vpack.c.b16 %v387, %v386
  %v412 = vpack.c.b16 %v389, %v388
  %v413 = vpack.c.b16 %v391, %v390
  %v414 = vpack.c.b16 %v393, %v392
  %v415 = vpack.c.b16 %v395, %v394
  %v416 = vpack.c.b16 %v397, %v396
  %v417 = vpack.c.b16 %v399, %v398
  %v418 = vpack.c.b16 %v401, %v400
  %v419 = vpack.c.b16 %v403, %v402
  %436 = vmatprep.subr.bf16.mxu0 0
  %437 = vmatpush1.bf16.msra.mxu0 %v268
  %438 = vmatprep.subr.bf16.mxu0 0
  %439 = vmatpush1.bf16.msra.mxu0 %v269
  %440 = vmatprep.subr.bf16.mxu0 0
  %441 = vmatpush1.bf16.msra.mxu0 %v270
  %442 = vmatprep.subr.bf16.mxu0 0
  %443 = vmatpush1.bf16.msra.mxu0 %v271
  %444 = vmatprep.subr.bf16.mxu0 0
  %445 = vmatpush1.bf16.msra.mxu0 %v272
  %446 = vmatprep.subr.bf16.mxu0 0
  %447 = vmatpush1.bf16.msra.mxu0 %v273
  %448 = vmatprep.subr.bf16.mxu0 0
  %449 = vmatpush1.bf16.msra.mxu0 %v274
  %450 = vmatprep.subr.bf16.mxu0 0
  %451 = vmatpush1.bf16.msra.mxu0 %v275
  %452 = vmatprep.subr.bf16.mxu0 0
  %453 = vmatpush1.bf16.msra.mxu0 0
  %454 = vmatprep.subr.bf16.mxu0 0
  %455 = vmatpush1.bf16.msra.mxu0 0
  %456 = vmatprep.subr.bf16.mxu0 0
  %457 = vmatpush1.bf16.msra.mxu0 0
  %458 = vmatprep.subr.bf16.mxu0 0
  %459 = vmatpush1.bf16.msra.mxu0 0
  %460 = vmatprep.subr.bf16.mxu0 0
  %461 = vmatpush1.bf16.msra.mxu0 0
  %462 = vmatprep.subr.bf16.mxu0 0
  %463 = vmatpush1.bf16.msra.mxu0 0
  %464 = vmatprep.subr.bf16.mxu0 0
  %465 = vmatpush1.bf16.msra.mxu0 0
  %466 = vmatprep.subr.bf16.mxu0 0
  %467 = vmatpush1.bf16.msra.mxu0 0
  %468 = vmatprep.mubr.bf16.mxu0 0
  %469 = vmatmul.mubr.bf16.gmra.mrb[0].mxu0 %v404
  %v470 = vpop.f32.mrb[0].mxu0
  %v471 = vadd.f32 0.0, %v470
  %v472 = vpop.f32.mrb[0].mxu0
  %v473 = vpop.f32.mrb[0].mxu0
  %v474 = vadd.f32 0.0, %v473
  %v475 = vpop.f32.mrb[0].mxu0
  %476 = vmatprep.mubr.bf16.mxu0 0
  %477 = vmatmul.mubr.bf16.gmra.mrb[0].mxu0 %v405
  %v478 = vpop.f32.mrb[0].mxu0
  %v479 = vadd.f32 0.0, %v478
  %v480 = vpop.f32.mrb[0].mxu0
  %v481 = vpop.f32.mrb[0].mxu0
  %v482 = vadd.f32 0.0, %v481
  %v483 = vpop.f32.mrb[0].mxu0
  %484 = vmatprep.mubr.bf16.mxu0 0
  %485 = vmatmul.mubr.bf16.gmra.mrb[0].mxu0 %v406
  %v486 = vpop.f32.mrb[0].mxu0
  %v487 = vadd.f32 0.0, %v486
  %v488 = vpop.f32.mrb[0].mxu0
  %v489 = vpop.f32.mrb[0].mxu0
  %v490 = vadd.f32 0.0, %v489
  %v491 = vpop.f32.mrb[0].mxu0
  %492 = vmatprep.mubr.bf16.mxu0 0
  %493 = vmatmul.mubr.bf16.gmra.mrb[0].mxu0 %v407
  %v494 = vpop.f32.mrb[0].mxu0
  %v495 = vadd.f32 0.0, %v494
  %v496 = vpop.f32.mrb[0].mxu0
  %v497 = vpop.f32.mrb[0].mxu0
  %v498 = vadd.f32 0.0, %v497
  %v499 = vpop.f32.mrb[0].mxu0
  %500 = vmatprep.mubr.bf16.mxu0 0
  %501 = vmatmul.mubr.bf16.gmra.mrb[0].mxu0 %v408
  %v502 = vpop.f32.mrb[0].mxu0
  %v503 = vadd.f32 0.0, %v502
  %v504 = vpop.f32.mrb[0].mxu0
  %v505 = vpop.f32.mrb[0].mxu0
  %v506 = vadd.f32 0.0, %v505
  %v507 = vpop.f32.mrb[0].mxu0
  %508 = vmatprep.mubr.bf16.mxu0 0
  %509 = vmatmul.mubr.bf16.gmra.mrb[0].mxu0 %v409
  %v510 = vpop.f32.mrb[0].mxu0
  %v511 = vadd.f32 0.0, %v510
  %v512 = vpop.f32.mrb[0].mxu0
  %v513 = vpop.f32.mrb[0].mxu0
  %v514 = vadd.f32 0.0, %v513
  %v515 = vpop.f32.mrb[0].mxu0
  %516 = vmatprep.mubr.bf16.mxu0 0
  %517 = vmatmul.mubr.bf16.gmra.mrb[0].mxu0 %v410
  %v518 = vpop.f32.mrb[0].mxu0
  %v519 = vadd.f32 0.0, %v518
  %v520 = vpop.f32.mrb[0].mxu0
  %v521 = vpop.f32.mrb[0].mxu0
  %v522 = vadd.f32 0.0, %v521
  %v523 = vpop.f32.mrb[0].mxu0
  %524 = vmatprep.mubr.bf16.mxu0 0
  %525 = vmatmul.mubr.bf16.gmra.mrb[0].mxu0 %v411
  %v526 = vpop.f32.mrb[0].mxu0
  %v527 = vadd.f32 0.0, %v526
  %v528 = vpop.f32.mrb[0].mxu0
  %v529 = vpop.f32.mrb[0].mxu0
  %v530 = vadd.f32 0.0, %v529
  %v531 = vpop.f32.mrb[0].mxu0
  %532 = vmatprep.mubr.bf16.mxu0 0
  %533 = vmatmul.mubr.bf16.gmra.mrb[0].mxu0 %v412
  %v534 = vpop.f32.mrb[0].mxu0
  %v535 = vadd.f32 0.0, %v534
  %v536 = vpop.f32.mrb[0].mxu0
  %v537 = vpop.f32.mrb[0].mxu0
  %v538 = vadd.f32 0.0, %v537
  %v539 = vpop.f32.mrb[0].mxu0
  %540 = vmatprep.mubr.bf16.mxu0 0
  %541 = vmatmul.mubr.bf16.gmra.mrb[0].mxu0 %v413
  %v542 = vpop.f32.mrb[0].mxu0
  %v543 = vadd.f32 0.0, %v542
  %v544 = vpop.f32.mrb[0].mxu0
  %v545 = vpop.f32.mrb[0].mxu0
  %v546 = vadd.f32 0.0, %v545
  %v547 = vpop.f32.mrb[0].mxu0
  %548 = vmatprep.mubr.bf16.mxu0 0
  %549 = vmatmul.mubr.bf16.gmra.mrb[0].mxu0 %v414
  %v550 = vpop.f32.mrb[0].mxu0
  %v551 = vadd.f32 0.0, %v550
  %v552 = vpop.f32.mrb[0].mxu0
  %v553 = vpop.f32.mrb[0].mxu0
  %v554 = vadd.f32 0.0, %v553
  %v555 = vpop.f32.mrb[0].mxu0
  %556 = vmatprep.mubr.bf16.mxu0 0
  %557 = vmatmul.mubr.bf16.gmra.mrb[0].mxu0 %v415
  %v558 = vpop.f32.mrb[0].mxu0
  %v559 = vadd.f32 0.0, %v558
  %v560 = vpop.f32.mrb[0].mxu0
  %v561 = vpop.f32.mrb[0].mxu0
  %v562 = vadd.f32 0.0, %v561
  %v563 = vpop.f32.mrb[0].mxu0
  %564 = vmatprep.mubr.bf16.mxu0 0
  %565 = vmatmul.mubr.bf16.gmra.mrb[0].mxu0 %v416
  %v566 = vpop.f32.mrb[0].mxu0
  %v567 = vadd.f32 0.0, %v566
  %v568 = vpop.f32.mrb[0].mxu0
  %v569 = vpop.f32.mrb[0].mxu0
  %v570 = vadd.f32 0.0, %v569
  %v571 = vpop.f32.mrb[0].mxu0
  %572 = vmatprep.mubr.bf16.mxu0 0
  %573 = vmatmul.mubr.bf16.gmra.mrb[0].mxu0 %v417
  %v574 = vpop.f32.mrb[0].mxu0
  %v575 = vadd.f32 0.0, %v574
  %v576 = vpop.f32.mrb[0].mxu0
  %v577 = vpop.f32.mrb[0].mxu0
  %v578 = vadd.f32 0.0, %v577
  %v579 = vpop.f32.mrb[0].mxu0
  %580 = vmatprep.mubr.bf16.mxu0 0
  %581 = vmatmul.mubr.bf16.gmra.mrb[0].mxu0 %v418
  %v582 = vpop.f32.mrb[0].mxu0
  %v583 = vadd.f32 0.0, %v582
  %v584 = vpop.f32.mrb[0].mxu0
  %v585 = vpop.f32.mrb[0].mxu0
  %v586 = vadd.f32 0.0, %v585
  %v587 = vpop.f32.mrb[0].mxu0
  %588 = vmatprep.mubr.bf16.mxu0 0
  %589 = vmatmul.mubr.bf16.gmra.mrb[0].mxu0 %v419
  %v590 = vpop.f32.mrb[0].mxu0
  %v591 = vadd.f32 0.0, %v590
  %v592 = vpop.f32.mrb[0].mxu0
  %v593 = vpop.f32.mrb[0].mxu0
  %v594 = vadd.f32 0.0, %v593
  %v595 = vpop.f32.mrb[0].mxu0
  %596 = vdwg.mxu0
  %v597 = vadd.f32 %v276, %v471
  %v598 = vadd.f32 %v277, %v474
  %v599 = vadd.f32 %v278, %v479
  %v600 = vadd.f32 %v279, %v482
  %v601 = vadd.f32 %v280, %v487
  %v602 = vadd.f32 %v281, %v490
  %v603 = vadd.f32 %v282, %v495
  %v604 = vadd.f32 %v283, %v498
  %v605 = vadd.f32 %v284, %v503
  %v606 = vadd.f32 %v285, %v506
  %v607 = vadd.f32 %v286, %v511
  %v608 = vadd.f32 %v287, %v514
  %v609 = vadd.f32 %v288, %v519
  %v610 = vadd.f32 %v289, %v522
  %v611 = vadd.f32 %v290, %v527
  %v612 = vadd.f32 %v291, %v530
  %v613 = vadd.f32 %v292, %v535
  %v614 = vadd.f32 %v293, %v538
  %v615 = vadd.f32 %v294, %v543
  %v616 = vadd.f32 %v295, %v546
  %v617 = vadd.f32 %v296, %v551
  %v618 = vadd.f32 %v297, %v554
  %v619 = vadd.f32 %v298, %v559
  %v620 = vadd.f32 %v299, %v562
  %v621 = vadd.f32 %v300, %v567
  %v622 = vadd.f32 %v301, %v570
  %v623 = vadd.f32 %v302, %v575
  %v624 = vadd.f32 %v303, %v578
  %v625 = vadd.f32 %v304, %v583
  %v626 = vadd.f32 %v305, %v586
  %v627 = vadd.f32 %v306, %v591
  %v628 = vadd.f32 %v307, %v594
  %629 = vst [vmem:[#allocation2] sm:$0xff] %v597
  %630 = vst [vmem:[#allocation2 + $0x8] sm:$0xff] %v598
  %631 = vst [vmem:[#allocation2 + $0x10] sm:$0xff] %v599
  %632 = vst [vmem:[#allocation2 + $0x18] sm:$0xff] %v600
  %633 = vst [vmem:[#allocation2 + $0x20] sm:$0xff] %v601
  %634 = vst [vmem:[#allocation2 + $0x28] sm:$0xff] %v602
  %635 = vst [vmem:[#allocation2 + $0x30] sm:$0xff] %v603
  %636 = vst [vmem:[#allocation2 + $0x38] sm:$0xff] %v604
  %637 = vst [vmem:[#allocation2 + $0x40] sm:$0xff] %v605
  %638 = vst [vmem:[#allocation2 + $0x48] sm:$0xff] %v606
  %639 = vst [vmem:[#allocation2 + $0x50] sm:$0xff] %v607
  %640 = vst [vmem:[#allocation2 + $0x58] sm:$0xff] %v608
  %641 = vst [vmem:[#allocation2 + $0x60] sm:$0xff] %v609
  %642 = vst [vmem:[#allocation2 + $0x68] sm:$0xff] %v610
  %643 = vst [vmem:[#allocation2 + $0x70] sm:$0xff] %v611
  %644 = vst [vmem:[#allocation2 + $0x78] sm:$0xff] %v612
  %645 = vst [vmem:[#allocation2 + $0x80] sm:$0xff] %v613
  %646 = vst [vmem:[#allocation2 + $0x88] sm:$0xff] %v614
  %647 = vst [vmem:[#allocation2 + $0x90] sm:$0xff] %v615
  %648 = vst [vmem:[#allocation2 + $0x98] sm:$0xff] %v616
  %649 = vst [vmem:[#allocation2 + $0xa0] sm:$0xff] %v617
  %650 = vst [vmem:[#allocation2 + $0xa8] sm:$0xff] %v618
  %651 = vst [vmem:[#allocation2 + $0xb0] sm:$0xff] %v619
  %652 = vst [vmem:[#allocation2 + $0xb8] sm:$0xff] %v620
  %653 = vst [vmem:[#allocation2 + $0xc0] sm:$0xff] %v621
  %654 = vst [vmem:[#allocation2 + $0xc8] sm:$0xff] %v622
  %655 = vst [vmem:[#allocation2 + $0xd0] sm:$0xff] %v623
  %656 = vst [vmem:[#allocation2 + $0xd8] sm:$0xff] %v624
  %657 = vst [vmem:[#allocation2 + $0xe0] sm:$0xff] %v625
  %658 = vst [vmem:[#allocation2 + $0xe8] sm:$0xff] %v626
  %659 = vst [vmem:[#allocation2 + $0xf0] sm:$0xff] %v627
  %660 = vst [vmem:[#allocation2 + $0xf8] sm:$0xff] %v628
  // Predicated region
  $region22: #{vbgae_forward.7} parent=0 // pred_check
    %p661 = pneg %p18
  $region23: #{vbgae_forward.7} parent=0 // pred_check_branch
    %663 = sbr.rel (%p661) target = $region25
  $region24: #{vbgae_forward.7} parent=0 // pred_region
    %v664 = vld [vmem:[#allocation2] sm:$0xff]
    %v665 = vld [vmem:[#allocation2 + $0x8] sm:$0xff]
    %v666 = vld [vmem:[#allocation2 + $0x10] sm:$0xff]
    %v667 = vld [vmem:[#allocation2 + $0x18] sm:$0xff]
    %v668 = vld [vmem:[#allocation2 + $0x20] sm:$0xff]
    %v669 = vld [vmem:[#allocation2 + $0x28] sm:$0xff]
    %v670 = vld [vmem:[#allocation2 + $0x30] sm:$0xff]
    %v671 = vld [vmem:[#allocation2 + $0x38] sm:$0xff]
    %v672 = vld [vmem:[#allocation2 + $0x40] sm:$0xff]
    %v673 = vld [vmem:[#allocation2 + $0x48] sm:$0xff]
    %v674 = vld [vmem:[#allocation2 + $0x50] sm:$0xff]
    %v675 = vld [vmem:[#allocation2 + $0x58] sm:$0xff]
    %v676 = vld [vmem:[#allocation2 + $0x60] sm:$0xff]
    %v677 = vld [vmem:[#allocation2 + $0x68] sm:$0xff]
    %v678 = vld [vmem:[#allocation2 + $0x70] sm:$0xff]
    %v679 = vld [vmem:[#allocation2 + $0x78] sm:$0xff]
    %v680 = vld [vmem:[#allocation2 + $0x80] sm:$0xff]
    %v681 = vld [vmem:[#allocation2 + $0x88] sm:$0xff]
    %v682 = vld [vmem:[#allocation2 + $0x90] sm:$0xff]
    %v683 = vld [vmem:[#allocation2 + $0x98] sm:$0xff]
    %v684 = vld [vmem:[#allocation2 + $0xa0] sm:$0xff]
    %v685 = vld [vmem:[#allocation2 + $0xa8] sm:$0xff]
    %v686 = vld [vmem:[#allocation2 + $0xb0] sm:$0xff]
    %v687 = vld [vmem:[#allocation2 + $0xb8] sm:$0xff]
    %v688 = vld [vmem:[#allocation2 + $0xc0] sm:$0xff]
    %v689 = vld [vmem:[#allocation2 + $0xc8] sm:$0xff]
    %v690 = vld [vmem:[#allocation2 + $0xd0] sm:$0xff]
    %v691 = vld [vmem:[#allocation2 + $0xd8] sm:$0xff]
    %v692 = vld [vmem:[#allocation2 + $0xe0] sm:$0xff]
    %v693 = vld [vmem:[#allocation2 + $0xe8] sm:$0xff]
    %v694 = vld [vmem:[#allocation2 + $0xf0] sm:$0xff]
    %v695 = vld [vmem:[#allocation2 + $0xf8] sm:$0xff]
    %v696 = vmax.f32 %v664, 0.0
    %v697 = vmax.f32 %v665, 0.0
    %v698 = vmax.f32 %v666, 0.0
    %v699 = vmax.f32 %v667, 0.0
    %v700 = vmax.f32 %v668, 0.0
    %v701 = vmax.f32 %v669, 0.0
    %v702 = vmax.f32 %v670, 0.0
    %v703 = vmax.f32 %v671, 0.0
    %v704 = vmax.f32 %v672, 0.0
    %v705 = vmax.f32 %v673, 0.0
    %v706 = vmax.f32 %v674, 0.0
    %v707 = vmax.f32 %v675, 0.0
    %v708 = vmax.f32 %v676, 0.0
    %v709 = vmax.f32 %v677, 0.0
    %v710 = vmax.f32 %v678, 0.0
    %v711 = vmax.f32 %v679, 0.0
    %v712 = vmax.f32 %v680, 0.0
    %v713 = vmax.f32 %v681, 0.0
    %v714 = vmax.f32 %v682, 0.0
    %v715 = vmax.f32 %v683, 0.0
    %v716 = vmax.f32 %v684, 0.0
    %v717 = vmax.f32 %v685, 0.0
    %v718 = vmax.f32 %v686, 0.0
    %v719 = vmax.f32 %v687, 0.0
    %v720 = vmax.f32 %v688, 0.0
    %v721 = vmax.f32 %v689, 0.0
    %v722 = vmax.f32 %v690, 0.0
    %v723 = vmax.f32 %v691, 0.0
    %v724 = vmax.f32 %v692, 0.0
    %v725 = vmax.f32 %v693, 0.0
    %v726 = vmax.f32 %v694, 0.0
    %v727 = vmax.f32 %v695, 0.0
    %v728 = vld [vmem:[%s3] sm:$0xff]
    %v729 = vld [vmem:[%s3 + $0x8] sm:$0xff]
    %v730 = vld [vmem:[%s3 + $0x10] sm:$0xff]
    %v731 = vld [vmem:[%s3 + $0x18] sm:$0xff]
    %v732 = vld [vmem:[%s3 + $0x20] sm:$0xff]
    %v733 = vld [vmem:[%s3 + $0x28] sm:$0xff]
    %v734 = vld [vmem:[%s3 + $0x30] sm:$0xff]
    %v735 = vld [vmem:[%s3 + $0x38] sm:$0xff]
    %v736 = vld [vmem:[%s3 + $0x40] sm:$0xff]
    %v737 = vld [vmem:[%s3 + $0x48] sm:$0xff]
    %v738 = vld [vmem:[%s3 + $0x50] sm:$0xff]
    %v739 = vld [vmem:[%s3 + $0x58] sm:$0xff]
    %v740 = vld [vmem:[%s3 + $0x60] sm:$0xff]
    %v741 = vld [vmem:[%s3 + $0x68] sm:$0xff]
    %v742 = vld [vmem:[%s3 + $0x70] sm:$0xff]
    %v743 = vld [vmem:[%s3 + $0x78] sm:$0xff]
    %v744 = vld [vmem:[%s3 + $0x80] sm:$0xff]
    %v745 = vld [vmem:[%s3 + $0x88] sm:$0xff]
    %v746 = vld [vmem:[%s3 + $0x90] sm:$0xff]
    %v747 = vld [vmem:[%s3 + $0x98] sm:$0xff]
    %v748 = vld [vmem:[%s3 + $0xa0] sm:$0xff]
    %v749 = vld [vmem:[%s3 + $0xa8] sm:$0xff]
    %v750 = vld [vmem:[%s3 + $0xb0] sm:$0xff]
    %v751 = vld [vmem:[%s3 + $0xb8] sm:$0xff]
    %v752 = vld [vmem:[%s3 + $0xc0] sm:$0xff]
    %v753 = vld [vmem:[%s3 + $0xc8] sm:$0xff]
    %v754 = vld [vmem:[%s3 + $0xd0] sm:$0xff]
    %v755 = vld [vmem:[%s3 + $0xd8] sm:$0xff]
    %v756 = vld [vmem:[%s3 + $0xe0] sm:$0xff]
    %v757 = vld [vmem:[%s3 + $0xe8] sm:$0xff]
    %v758 = vld [vmem:[%s3 + $0xf0] sm:$0xff]
    %v759 = vld [vmem:[%s3 + $0xf8] sm:$0xff]
    %760 = vmatprep.subr.mxu0 %v729
    %761 = vmatpush1.msra.mxu0 %v728
    %762 = vmatprep.subr.mxu0 %v731
    %763 = vmatpush1.msra.mxu0 %v730
    %764 = vmatprep.subr.mxu0 %v733
    %765 = vmatpush1.msra.mxu0 %v732
    %766 = vmatprep.subr.mxu0 %v735
    %767 = vmatpush1.msra.mxu0 %v734
    %768 = vmatprep.subr.mxu0 %v737
    %769 = vmatpush1.msra.mxu0 %v736
    %770 = vmatprep.subr.mxu0 %v739
    %771 = vmatpush1.msra.mxu0 %v738
    %772 = vmatprep.subr.mxu0 %v741
    %773 = vmatpush1.msra.mxu0 %v740
    %774 = vmatprep.subr.mxu0 %v743
    %775 = vmatpush1.msra.mxu0 %v742
    %776 = vmatprep.subr.mxu0 %v745
    %777 = vmatpush1.msra.mxu0 %v744
    %778 = vmatprep.subr.mxu0 %v747
    %779 = vmatpush1.msra.mxu0 %v746
    %780 = vmatprep.subr.mxu0 %v749
    %781 = vmatpush1.msra.mxu0 %v748
    %782 = vmatprep.subr.mxu0 %v751
    %783 = vmatpush1.msra.mxu0 %v750
    %784 = vmatprep.subr.mxu0 %v753
    %785 = vmatpush1.msra.mxu0 %v752
    %786 = vmatprep.subr.mxu0 %v755
    %787 = vmatpush1.msra.mxu0 %v754
    %788 = vmatprep.subr.mxu0 %v757
    %789 = vmatpush1.msra.mxu0 %v756
    %790 = vmatprep.subr.mxu0 %v759
    %791 = vmatpush1.msra.mxu0 %v758
    %792 = vmatprep.subr.mxu0 0.0
    %793 = vmatpush1.msra.mxu0 0.0
    %794 = vmatprep.subr.mxu0 0.0
    %795 = vmatpush1.msra.mxu0 0.0
    %796 = vmatprep.subr.mxu0 0.0
    %797 = vmatpush1.msra.mxu0 0.0
    %798 = vmatprep.subr.mxu0 0.0
    %799 = vmatpush1.msra.mxu0 0.0
    %800 = vmatprep.subr.mxu0 0.0
    %801 = vmatpush1.msra.mxu0 0.0
    %802 = vmatprep.subr.mxu0 0.0
    %803 = vmatpush1.msra.mxu0 0.0
    %804 = vmatprep.subr.mxu0 0.0
    %805 = vmatpush1.msra.mxu0 0.0
    %806 = vmatprep.subr.mxu0 0.0
    %807 = vmatpush1.msra.mxu0 0.0
    %808 = vmatprep.subr.mxu0 0.0
    %809 = vmatpush1.msra.mxu0 0.0
    %810 = vmatprep.subr.mxu0 0.0
    %811 = vmatpush1.msra.mxu0 0.0
    %812 = vmatprep.subr.mxu0 0.0
    %813 = vmatpush1.msra.mxu0 0.0
    %814 = vmatprep.subr.mxu0 0.0
    %815 = vmatpush1.msra.mxu0 0.0
    %816 = vmatprep.subr.mxu0 0.0
    %817 = vmatpush1.msra.mxu0 0.0
    %818 = vmatprep.subr.mxu0 0.0
    %819 = vmatpush1.msra.mxu0 0.0
    %820 = vmatprep.subr.mxu0 0.0
    %821 = vmatpush1.msra.mxu0 0.0
    %822 = vmatprep.subr.mxu0 0.0
    %823 = vmatpush1.msra.mxu0 0.0
    %824 = vmatprep.mubr.f32.mxu0 0.0
    %825 = vmatmul.mubr.f32.gmra.mrb[0].mxu0 %v696
    %v826 = vpop.f32.mrb[0].mxu0
    %v827 = vadd.f32 0.0, %v826
    %v828 = vpop.f32.mrb[0].mxu0
    %v829 = vadd.f32 0.0, %v828
    %830 = vmatprep.mubr.f32.mxu0 0.0
    %831 = vmatmul.mubr.f32.gmra.mrb[0].mxu0 %v697
    %v832 = vpop.f32.mrb[0].mxu0
    %v833 = vadd.f32 0.0, %v832
    %v834 = vpop.f32.mrb[0].mxu0
    %v835 = vadd.f32 0.0, %v834
    %836 = vmatprep.mubr.f32.mxu0 0.0
    %837 = vmatmul.mubr.f32.gmra.mrb[0].mxu0 %v698
    %v838 = vpop.f32.mrb[0].mxu0
    %v839 = vadd.f32 0.0, %v838
    %v840 = vpop.f32.mrb[0].mxu0
    %v841 = vadd.f32 0.0, %v840
    %842 = vmatprep.mubr.f32.mxu0 0.0
    %843 = vmatmul.mubr.f32.gmra.mrb[0].mxu0 %v699
    %v844 = vpop.f32.mrb[0].mxu0
    %v845 = vadd.f32 0.0, %v844
    %v846 = vpop.f32.mrb[0].mxu0
    %v847 = vadd.f32 0.0, %v846
    %848 = vmatprep.mubr.f32.mxu0 0.0
    %849 = vmatmul.mubr.f32.gmra.mrb[0].mxu0 %v700
    %v850 = vpop.f32.mrb[0].mxu0
    %v851 = vadd.f32 0.0, %v850
    %v852 = vpop.f32.mrb[0].mxu0
    %v853 = vadd.f32 0.0, %v852
    %854 = vmatprep.mubr.f32.mxu0 0.0
    %855 = vmatmul.mubr.f32.gmra.mrb[0].mxu0 %v701
    %v856 = vpop.f32.mrb[0].mxu0
    %v857 = vadd.f32 0.0, %v856
    %v858 = vpop.f32.mrb[0].mxu0
    %v859 = vadd.f32 0.0, %v858
    %860 = vmatprep.mubr.f32.mxu0 0.0
    %861 = vmatmul.mubr.f32.gmra.mrb[0].mxu0 %v702
    %v862 = vpop.f32.mrb[0].mxu0
    %v863 = vadd.f32 0.0, %v862
    %v864 = vpop.f32.mrb[0].mxu0
    %v865 = vadd.f32 0.0, %v864
    %866 = vmatprep.mubr.f32.mxu0 0.0
    %867 = vmatmul.mubr.f32.gmra.mrb[0].mxu0 %v703
    %v868 = vpop.f32.mrb[0].mxu0
    %v869 = vadd.f32 0.0, %v868
    %v870 = vpop.f32.mrb[0].mxu0
    %v871 = vadd.f32 0.0, %v870
    %872 = vmatprep.mubr.f32.mxu0 0.0
    %873 = vmatmul.mubr.f32.gmra.mrb[0].mxu0 %v704
    %v874 = vpop.f32.mrb[0].mxu0
    %v875 = vadd.f32 0.0, %v874
    %v876 = vpop.f32.mrb[0].mxu0
    %v877 = vadd.f32 0.0, %v876
    %878 = vmatprep.mubr.f32.mxu0 0.0
    %879 = vmatmul.mubr.f32.gmra.mrb[0].mxu0 %v705
    %v880 = vpop.f32.mrb[0].mxu0
    %v881 = vadd.f32 0.0, %v880
    %v882 = vpop.f32.mrb[0].mxu0
    %v883 = vadd.f32 0.0, %v882
    %884 = vmatprep.mubr.f32.mxu0 0.0
    %885 = vmatmul.mubr.f32.gmra.mrb[0].mxu0 %v706
    %v886 = vpop.f32.mrb[0].mxu0
    %v887 = vadd.f32 0.0, %v886
    %v888 = vpop.f32.mrb[0].mxu0
    %v889 = vadd.f32 0.0, %v888
    %890 = vmatprep.mubr.f32.mxu0 0.0
    %891 = vmatmul.mubr.f32.gmra.mrb[0].mxu0 %v707
    %v892 = vpop.f32.mrb[0].mxu0
    %v893 = vadd.f32 0.0, %v892
    %v894 = vpop.f32.mrb[0].mxu0
    %v895 = vadd.f32 0.0, %v894
    %896 = vmatprep.mubr.f32.mxu0 0.0
    %897 = vmatmul.mubr.f32.gmra.mrb[0].mxu0 %v708
    %v898 = vpop.f32.mrb[0].mxu0
    %v899 = vadd.f32 0.0, %v898
    %v900 = vpop.f32.mrb[0].mxu0
    %v901 = vadd.f32 0.0, %v900
    %902 = vmatprep.mubr.f32.mxu0 0.0
    %903 = vmatmul.mubr.f32.gmra.mrb[0].mxu0 %v709
    %v904 = vpop.f32.mrb[0].mxu0
    %v905 = vadd.f32 0.0, %v904
    %v906 = vpop.f32.mrb[0].mxu0
    %v907 = vadd.f32 0.0, %v906
    %908 = vmatprep.mubr.f32.mxu0 0.0
    %909 = vmatmul.mubr.f32.gmra.mrb[0].mxu0 %v710
    %v910 = vpop.f32.mrb[0].mxu0
    %v911 = vadd.f32 0.0, %v910
    %v912 = vpop.f32.mrb[0].mxu0
    %v913 = vadd.f32 0.0, %v912
    %914 = vmatprep.mubr.f32.mxu0 0.0
    %915 = vmatmul.mubr.f32.gmra.mrb[0].mxu0 %v711
    %v916 = vpop.f32.mrb[0].mxu0
    %v917 = vadd.f32 0.0, %v916
    %v918 = vpop.f32.mrb[0].mxu0
    %v919 = vadd.f32 0.0, %v918
    %920 = vmatprep.mubr.f32.mxu0 0.0
    %921 = vmatmul.mubr.f32.gmra.mrb[0].mxu0 %v712
    %v922 = vpop.f32.mrb[0].mxu0
    %v923 = vadd.f32 0.0, %v922
    %v924 = vpop.f32.mrb[0].mxu0
    %v925 = vadd.f32 0.0, %v924
    %926 = vmatprep.mubr.f32.mxu0 0.0
    %927 = vmatmul.mubr.f32.gmra.mrb[0].mxu0 %v713
    %v928 = vpop.f32.mrb[0].mxu0
    %v929 = vadd.f32 0.0, %v928
    %v930 = vpop.f32.mrb[0].mxu0
    %v931 = vadd.f32 0.0, %v930
    %932 = vmatprep.mubr.f32.mxu0 0.0
    %933 = vmatmul.mubr.f32.gmra.mrb[0].mxu0 %v714
    %v934 = vpop.f32.mrb[0].mxu0
    %v935 = vadd.f32 0.0, %v934
    %v936 = vpop.f32.mrb[0].mxu0
    %v937 = vadd.f32 0.0, %v936
    %938 = vmatprep.mubr.f32.mxu0 0.0
    %939 = vmatmul.mubr.f32.gmra.mrb[0].mxu0 %v715
    %v940 = vpop.f32.mrb[0].mxu0
    %v941 = vadd.f32 0.0, %v940
    %v942 = vpop.f32.mrb[0].mxu0
    %v943 = vadd.f32 0.0, %v942
    %944 = vmatprep.mubr.f32.mxu0 0.0
    %945 = vmatmul.mubr.f32.gmra.mrb[0].mxu0 %v716
    %v946 = vpop.f32.mrb[0].mxu0
    %v947 = vadd.f32 0.0, %v946
    %v948 = vpop.f32.mrb[0].mxu0
    %v949 = vadd.f32 0.0, %v948
    %950 = vmatprep.mubr.f32.mxu0 0.0
    %951 = vmatmul.mubr.f32.gmra.mrb[0].mxu0 %v717
    %v952 = vpop.f32.mrb[0].mxu0
    %v953 = vadd.f32 0.0, %v952
    %v954 = vpop.f32.mrb[0].mxu0
    %v955 = vadd.f32 0.0, %v954
    %956 = vmatprep.mubr.f32.mxu0 0.0
    %957 = vmatmul.mubr.f32.gmra.mrb[0].mxu0 %v718
    %v958 = vpop.f32.mrb[0].mxu0
    %v959 = vadd.f32 0.0, %v958
    %v960 = vpop.f32.mrb[0].mxu0
    %v961 = vadd.f32 0.0, %v960
    %962 = vmatprep.mubr.f32.mxu0 0.0
    %963 = vmatmul.mubr.f32.gmra.mrb[0].mxu0 %v719
    %v964 = vpop.f32.mrb[0].mxu0
    %v965 = vadd.f32 0.0, %v964
    %v966 = vpop.f32.mrb[0].mxu0
    %v967 = vadd.f32 0.0, %v966
    %968 = vmatprep.mubr.f32.mxu0 0.0
    %969 = vmatmul.mubr.f32.gmra.mrb[0].mxu0 %v720
    %v970 = vpop.f32.mrb[0].mxu0
    %v971 = vadd.f32 0.0, %v970
    %v972 = vpop.f32.mrb[0].mxu0
    %v973 = vadd.f32 0.0, %v972
    %974 = vmatprep.mubr.f32.mxu0 0.0
    %975 = vmatmul.mubr.f32.gmra.mrb[0].mxu0 %v721
    %v976 = vpop.f32.mrb[0].mxu0
    %v977 = vadd.f32 0.0, %v976
    %v978 = vpop.f32.mrb[0].mxu0
    %v979 = vadd.f32 0.0, %v978
    %980 = vmatprep.mubr.f32.mxu0 0.0
    %981 = vmatmul.mubr.f32.gmra.mrb[0].mxu0 %v722
    %v982 = vpop.f32.mrb[0].mxu0
    %v983 = vadd.f32 0.0, %v982
    %v984 = vpop.f32.mrb[0].mxu0
    %v985 = vadd.f32 0.0, %v984
    %986 = vmatprep.mubr.f32.mxu0 0.0
    %987 = vmatmul.mubr.f32.gmra.mrb[0].mxu0 %v723
    %v988 = vpop.f32.mrb[0].mxu0
    %v989 = vadd.f32 0.0, %v988
    %v990 = vpop.f32.mrb[0].mxu0
    %v991 = vadd.f32 0.0, %v990
    %992 = vmatprep.mubr.f32.mxu0 0.0
    %993 = vmatmul.mubr.f32.gmra.mrb[0].mxu0 %v724
    %v994 = vpop.f32.mrb[0].mxu0
    %v995 = vadd.f32 0.0, %v994
    %v996 = vpop.f32.mrb[0].mxu0
    %v997 = vadd.f32 0.0, %v996
    %998 = vmatprep.mubr.f32.mxu0 0.0
    %999 = vmatmul.mubr.f32.gmra.mrb[0].mxu0 %v725
    %v1000 = vpop.f32.mrb[0].mxu0
    %v1001 = vadd.f32 0.0, %v1000
    %v1002 = vpop.f32.mrb[0].mxu0
    %v1003 = vadd.f32 0.0, %v1002
    %1004 = vmatprep.mubr.f32.mxu0 0.0
    %1005 = vmatmul.mubr.f32.gmra.mrb[0].mxu0 %v726
    %v1006 = vpop.f32.mrb[0].mxu0
    %v1007 = vadd.f32 0.0, %v1006
    %v1008 = vpop.f32.mrb[0].mxu0
    %v1009 = vadd.f32 0.0, %v1008
    %1010 = vmatprep.mubr.f32.mxu0 0.0
    %1011 = vmatmul.mubr.f32.gmra.mrb[0].mxu0 %v727
    %v1012 = vpop.f32.mrb[0].mxu0
    %v1013 = vadd.f32 0.0, %v1012
    %v1014 = vpop.f32.mrb[0].mxu0
    %v1015 = vadd.f32 0.0, %v1014
    %1016 = vdwg.mxu0
    %1017 = vst [vmem:[%s4] sm:$0xff] %v827
    %1018 = vst [vmem:[%s4 + $0x8] sm:$0xff] %v829
    %1019 = vst [vmem:[%s4 + $0x10] sm:$0xff] %v833
    %1020 = vst [vmem:[%s4 + $0x18] sm:$0xff] %v835
    %1021 = vst [vmem:[%s4 + $0x20] sm:$0xff] %v839
    %1022 = vst [vmem:[%s4 + $0x28] sm:$0xff] %v841
    %1023 = vst [vmem:[%s4 + $0x30] sm:$0xff] %v845
    %1024 = vst [vmem:[%s4 + $0x38] sm:$0xff] %v847
    %1025 = vst [vmem:[%s4 + $0x40] sm:$0xff] %v851
    %1026 = vst [vmem:[%s4 + $0x48] sm:$0xff] %v853
    %1027 = vst [vmem:[%s4 + $0x50] sm:$0xff] %v857
    %1028 = vst [vmem:[%s4 + $0x58] sm:$0xff] %v859
    %1029 = vst [vmem:[%s4 + $0x60] sm:$0xff] %v863
    %1030 = vst [vmem:[%s4 + $0x68] sm:$0xff] %v865
    %1031 = vst [vmem:[%s4 + $0x70] sm:$0xff] %v869
    %1032 = vst [vmem:[%s4 + $0x78] sm:$0xff] %v871
    %1033 = vst [vmem:[%s4 + $0x80] sm:$0xff] %v875
    %1034 = vst [vmem:[%s4 + $0x88] sm:$0xff] %v877
    %1035 = vst [vmem:[%s4 + $0x90] sm:$0xff] %v881
    %1036 = vst [vmem:[%s4 + $0x98] sm:$0xff] %v883
    %1037 = vst [vmem:[%s4 + $0xa0] sm:$0xff] %v887
    %1038 = vst [vmem:[%s4 + $0xa8] sm:$0xff] %v889
    %1039 = vst [vmem:[%s4 + $0xb0] sm:$0xff] %v893
    %1040 = vst [vmem:[%s4 + $0xb8] sm:$0xff] %v895
    %1041 = vst [vmem:[%s4 + $0xc0] sm:$0xff] %v899
    %1042 = vst [vmem:[%s4 + $0xc8] sm:$0xff] %v901
    %1043 = vst [vmem:[%s4 + $0xd0] sm:$0xff] %v905
    %1044 = vst [vmem:[%s4 + $0xd8] sm:$0xff] %v907
    %1045 = vst [vmem:[%s4 + $0xe0] sm:$0xff] %v911
    %1046 = vst [vmem:[%s4 + $0xe8] sm:$0xff] %v913
    %1047 = vst [vmem:[%s4 + $0xf0] sm:$0xff] %v917
    %1048 = vst [vmem:[%s4 + $0xf8] sm:$0xff] %v919
    %1049 = vst [vmem:[%s4 + $0x100] sm:$0xff] %v923
    %1050 = vst [vmem:[%s4 + $0x108] sm:$0xff] %v925
    %1051 = vst [vmem:[%s4 + $0x110] sm:$0xff] %v929
    %1052 = vst [vmem:[%s4 + $0x118] sm:$0xff] %v931
    %1053 = vst [vmem:[%s4 + $0x120] sm:$0xff] %v935
    %1054 = vst [vmem:[%s4 + $0x128] sm:$0xff] %v937
    %1055 = vst [vmem:[%s4 + $0x130] sm:$0xff] %v941
    %1056 = vst [vmem:[%s4 + $0x138] sm:$0xff] %v943
    %1057 = vst [vmem:[%s4 + $0x140] sm:$0xff] %v947
    %1058 = vst [vmem:[%s4 + $0x148] sm:$0xff] %v949
    %1059 = vst [vmem:[%s4 + $0x150] sm:$0xff] %v953
    %1060 = vst [vmem:[%s4 + $0x158] sm:$0xff] %v955
    %1061 = vst [vmem:[%s4 + $0x160] sm:$0xff] %v959
    %1062 = vst [vmem:[%s4 + $0x168] sm:$0xff] %v961
    %1063 = vst [vmem:[%s4 + $0x170] sm:$0xff] %v965
    %1064 = vst [vmem:[%s4 + $0x178] sm:$0xff] %v967
    %1065 = vst [vmem:[%s4 + $0x180] sm:$0xff] %v971
    %1066 = vst [vmem:[%s4 + $0x188] sm:$0xff] %v973
    %1067 = vst [vmem:[%s4 + $0x190] sm:$0xff] %v977
    %1068 = vst [vmem:[%s4 + $0x198] sm:$0xff] %v979
    %1069 = vst [vmem:[%s4 + $0x1a0] sm:$0xff] %v983
    %1070 = vst [vmem:[%s4 + $0x1a8] sm:$0xff] %v985
    %1071 = vst [vmem:[%s4 + $0x1b0] sm:$0xff] %v989
    %1072 = vst [vmem:[%s4 + $0x1b8] sm:$0xff] %v991
    %1073 = vst [vmem:[%s4 + $0x1c0] sm:$0xff] %v995
    %1074 = vst [vmem:[%s4 + $0x1c8] sm:$0xff] %v997
    %1075 = vst [vmem:[%s4 + $0x1d0] sm:$0xff] %v1001
    %1076 = vst [vmem:[%s4 + $0x1d8] sm:$0xff] %v1003
    %1077 = vst [vmem:[%s4 + $0x1e0] sm:$0xff] %v1007
    %1078 = vst [vmem:[%s4 + $0x1e8] sm:$0xff] %v1009
    %1079 = vst [vmem:[%s4 + $0x1f0] sm:$0xff] %v1013
    %1080 = vst [vmem:[%s4 + $0x1f8] sm:$0xff] %v1015
  $region25: #{vbgae_forward.7} parent=0 // pred_fallthru
    _
  // Predicated region
  $region26: #{vbgae_forward.7} parent=0 // pred_check
    _
  $region27: #{vbgae_forward.7} parent=0 // pred_check_branch
    %1082 = sbr.rel (0) target = $region29
  $region28: #{vbgae_forward.7} parent=0 // pred_region
    _
  $region29: #{vbgae_forward.7} parent=0 // pred_fallthru
    _
  // Predicated region
  $region30: #{vbgae_forward.7} parent=0 // pred_check
    _
  $region31: #{vbgae_forward.7} parent=0 // pred_check_branch
    %1084 = sbr.rel (0) target = $region33
  $region32: #{vbgae_forward.7} parent=0 // pred_region
    _
  $region33: #{vbgae_forward.7} parent=0 // pred_fallthru
    _

// kernel: vbgae_forward.9
$region0: #{vbgae_forward.9}
  #allocation0 [shape = 'u32[]', space=smem, size = 0x4, offset = 0x4, fixed_abs, tag = 'smem constant byte address 0x4 - core index']
  #allocation1 [shape = 'u32[144,128]{1,0:T(1,128)}', space=vmem, size = 0x12000, scoped, tag = 'internal scratch']
  %s0 = inlined_call_operand.vmem [shape: f32[256,128], index: 0, kind: input, shape index: {}]
  %s1 = inlined_call_operand.vmem [shape: f32[128,128], index: 1, kind: input, shape index: {}]
  %s2 = inlined_call_operand.hbm [shape: f32[256,128], index: 2, kind: output, shape index: {}]
  %s3 = sld [smem:[#allocation0]]
  $region18: #{vbgae_forward.9} parent=0
    _
  %s5 = ssub.s32 1, %s3
  %s6 = scalar_select 0, %s5, %s3
  $region1: #{vbgae_forward.9} parent=0
    #allocation2 [shape = 'u8[131072]{0}', space=vmem, size = 0x20000, scoped, tag = 'output window, operand 0, single buffered']
    #allocation3 [shape = 's32[1]{0}', space=sflag, size = 0x4, scoped, tag = 'scoped memory for vbgae_forward.9']
    %7 = vsyncpa [#allocation3], 0
    // Predicated region
    $region2: #{vbgae_forward.9} parent=1 // pred_check
      _
    $region3: #{vbgae_forward.9} parent=1 // pred_check_branch
      %9 = sbr.rel (0) target = $region5
    $region4: #{vbgae_forward.9} parent=1 // pred_region
      _
    $region5: #{vbgae_forward.9} parent=1 // pred_fallthru
      _
    // Predicated region
    $region6: #{vbgae_forward.9} parent=1 // pred_check
      _
    $region7: #{vbgae_forward.9} parent=1 // pred_check_branch
      %11 = sbr.rel (0) target = $region9
    $region8: #{vbgae_forward.9} parent=1 // pred_region
      _
    $region9: #{vbgae_forward.9} parent=1 // pred_fallthru
      _
    %v12 = vld [vmem:[%s0] sm:$0xff]
    %v13 = vld [vmem:[%s0 + $0x8] sm:$0xff]
    %v14 = vld [vmem:[%s0 + $0x10] sm:$0xff]
    %v15 = vld [vmem:[%s0 + $0x18] sm:$0xff]
    %v16 = vld [vmem:[%s0 + $0x20] sm:$0xff]
    %v17 = vld [vmem:[%s0 + $0x28] sm:$0xff]
    %v18 = vld [vmem:[%s0 + $0x30] sm:$0xff]
    %v19 = vld [vmem:[%s0 + $0x38] sm:$0xff]
    %v20 = vld [vmem:[%s0 + $0x40] sm:$0xff]
    %v21 = vld [vmem:[%s0 + $0x48] sm:$0xff]
    %v22 = vld [vmem:[%s0 + $0x50] sm:$0xff]
    %v23 = vld [vmem:[%s0 + $0x58] sm:$0xff]
    %v24 = vld [vmem:[%s0 + $0x60] sm:$0xff]
    %v25 = vld [vmem:[%s0 + $0x68] sm:$0xff]
    %v26 = vld [vmem:[%s0 + $0x70] sm:$0xff]
    %v27 = vld [vmem:[%s0 + $0x78] sm:$0xff]
    %v28 = vld [vmem:[%s0 + $0x80] sm:$0xff]
    %v29 = vld [vmem:[%s0 + $0x88] sm:$0xff]
    %v30 = vld [vmem:[%s0 + $0x90] sm:$0xff]
    %v31 = vld [vmem:[%s0 + $0x98] sm:$0xff]
    %v32 = vld [vmem:[%s0 + $0xa0] sm:$0xff]
    %v33 = vld [vmem:[%s0 + $0xa8] sm:$0xff]
    %v34 = vld [vmem:[%s0 + $0xb0] sm:$0xff]
    %v35 = vld [vmem:[%s0 + $0xb8] sm:$0xff]
    %v36 = vld [vmem:[%s0 + $0xc0] sm:$0xff]
    %v37 = vld [vmem:[%s0 + $0xc8] sm:$0xff]
    %v38 = vld [vmem:[%s0 + $0xd0] sm:$0xff]
    %v39 = vld [vmem:[%s0 + $0xd8] sm:$0xff]
    %v40 = vld [vmem:[%s0 + $0xe0] sm:$0xff]
    %v41 = vld [vmem:[%s0 + $0xe8] sm:$0xff]
    %v42 = vld [vmem:[%s0 + $0xf0] sm:$0xff]
    %v43 = vld [vmem:[%s0 + $0xf8] sm:$0xff]
    %v44 = vld [vmem:[%s1] sm:$0xff]
    %v45 = vld [vmem:[%s1 + $0x8] sm:$0xff]
    %v46 = vld [vmem:[%s1 + $0x10] sm:$0xff]
    %v47 = vld [vmem:[%s1 + $0x18] sm:$0xff]
    %v48 = vld [vmem:[%s1 + $0x20] sm:$0xff]
    %v49 = vld [vmem:[%s1 + $0x28] sm:$0xff]
    %v50 = vld [vmem:[%s1 + $0x30] sm:$0xff]
    %v51 = vld [vmem:[%s1 + $0x38] sm:$0xff]
    %v52 = vld [vmem:[%s1 + $0x40] sm:$0xff]
    %v53 = vld [vmem:[%s1 + $0x48] sm:$0xff]
    %v54 = vld [vmem:[%s1 + $0x50] sm:$0xff]
    %v55 = vld [vmem:[%s1 + $0x58] sm:$0xff]
    %v56 = vld [vmem:[%s1 + $0x60] sm:$0xff]
    %v57 = vld [vmem:[%s1 + $0x68] sm:$0xff]
    %v58 = vld [vmem:[%s1 + $0x70] sm:$0xff]
    %v59 = vld [vmem:[%s1 + $0x78] sm:$0xff]
    %60 = vmatprep.subr.mxu0 0.0
    %61 = vmatpush1.xpose.msra.mxu0 %v44
    %62 = vmatprep.subr.mxu0 0.0
    %63 = vmatpush1.xpose.msra.mxu0 %v45
    %64 = vmatprep.subr.mxu0 0.0
    %65 = vmatpush1.xpose.msra.mxu0 %v46
    %66 = vmatprep.subr.mxu0 0.0
    %67 = vmatpush1.xpose.msra.mxu0 %v47
    %68 = vmatprep.subr.mxu0 0.0
    %69 = vmatpush1.xpose.msra.mxu0 %v48
    %70 = vmatprep.subr.mxu0 0.0
    %71 = vmatpush1.xpose.msra.mxu0 %v49
    %72 = vmatprep.subr.mxu0 0.0
    %73 = vmatpush1.xpose.msra.mxu0 %v50
    %74 = vmatprep.subr.mxu0 0.0
    %75 = vmatpush1.xpose.msra.mxu0 %v51
    %76 = vmatprep.subr.mxu0 0.0
    %77 = vmatpush1.xpose.msra.mxu0 %v52
    %78 = vmatprep.subr.mxu0 0.0
    %79 = vmatpush1.xpose.msra.mxu0 %v53
    %80 = vmatprep.subr.mxu0 0.0
    %81 = vmatpush1.xpose.msra.mxu0 %v54
    %82 = vmatprep.subr.mxu0 0.0
    %83 = vmatpush1.xpose.msra.mxu0 %v55
    %84 = vmatprep.subr.mxu0 0.0
    %85 = vmatpush1.xpose.msra.mxu0 %v56
    %86 = vmatprep.subr.mxu0 0.0
    %87 = vmatpush1.xpose.msra.mxu0 %v57
    %88 = vmatprep.subr.mxu0 0.0
    %89 = vmatpush1.xpose.msra.mxu0 %v58
    %90 = vmatprep.subr.mxu0 0.0
    %91 = vmatpush1.xpose.msra.mxu0 %v59
    %92 = vmatprep.subr.mxu0 0.0
    %93 = vmatpush1.xpose.msra.mxu0 0.0
    %94 = vmatprep.subr.mxu0 0.0
    %95 = vmatpush1.xpose.msra.mxu0 0.0
    %96 = vmatprep.subr.mxu0 0.0
    %97 = vmatpush1.xpose.msra.mxu0 0.0
    %98 = vmatprep.subr.mxu0 0.0
    %99 = vmatpush1.xpose.msra.mxu0 0.0
    %100 = vmatprep.subr.mxu0 0.0
    %101 = vmatpush1.xpose.msra.mxu0 0.0
    %102 = vmatprep.subr.mxu0 0.0
    %103 = vmatpush1.xpose.msra.mxu0 0.0
    %104 = vmatprep.subr.mxu0 0.0
    %105 = vmatpush1.xpose.msra.mxu0 0.0
    %106 = vmatprep.subr.mxu0 0.0
    %107 = vmatpush1.xpose.msra.mxu0 0.0
    %108 = vmatprep.subr.mxu0 0.0
    %109 = vmatpush1.xpose.msra.mxu0 0.0
    %110 = vmatprep.subr.mxu0 0.0
    %111 = vmatpush1.xpose.msra.mxu0 0.0
    %112 = vmatprep.subr.mxu0 0.0
    %113 = vmatpush1.xpose.msra.mxu0 0.0
    %114 = vmatprep.subr.mxu0 0.0
    %115 = vmatpush1.xpose.msra.mxu0 0.0
    %116 = vmatprep.subr.mxu0 0.0
    %117 = vmatpush1.xpose.msra.mxu0 0.0
    %118 = vmatprep.subr.mxu0 0.0
    %119 = vmatpush1.xpose.msra.mxu0 0.0
    %120 = vmatprep.subr.mxu0 0.0
    %121 = vmatpush1.xpose.msra.mxu0 0.0
    %122 = vmatprep.subr.mxu0 0.0
    %123 = vmatpush1.xpose.msra.mxu0 0.0
    %124 = vmatprep.mubr.f32.mxu0 0.0
    %125 = vmatmul.mubr.f32.gmra.mrb[0].mxu0 %v12
    %v126 = vpop.f32.mrb[0].mxu0
    %v127 = vadd.f32 0.0, %v126
    %v128 = vpop.f32.mrb[0].mxu0
    %129 = vmatprep.mubr.f32.mxu0 0.0
    %130 = vmatmul.mubr.f32.gmra.mrb[0].mxu0 %v13
    %v131 = vpop.f32.mrb[0].mxu0
    %v132 = vadd.f32 0.0, %v131
    %v133 = vpop.f32.mrb[0].mxu0
    %134 = vmatprep.mubr.f32.mxu0 0.0
    %135 = vmatmul.mubr.f32.gmra.mrb[0].mxu0 %v14
    %v136 = vpop.f32.mrb[0].mxu0
    %v137 = vadd.f32 0.0, %v136
    %v138 = vpop.f32.mrb[0].mxu0
    %139 = vmatprep.mubr.f32.mxu0 0.0
    %140 = vmatmul.mubr.f32.gmra.mrb[0].mxu0 %v15
    %v141 = vpop.f32.mrb[0].mxu0
    %v142 = vadd.f32 0.0, %v141
    %v143 = vpop.f32.mrb[0].mxu0
    %144 = vmatprep.mubr.f32.mxu0 0.0
    %145 = vmatmul.mubr.f32.gmra.mrb[0].mxu0 %v16
    %v146 = vpop.f32.mrb[0].mxu0
    %v147 = vadd.f32 0.0, %v146
    %v148 = vpop.f32.mrb[0].mxu0
    %149 = vmatprep.mubr.f32.mxu0 0.0
    %150 = vmatmul.mubr.f32.gmra.mrb[0].mxu0 %v17
    %v151 = vpop.f32.mrb[0].mxu0
    %v152 = vadd.f32 0.0, %v151
    %v153 = vpop.f32.mrb[0].mxu0
    %154 = vmatprep.mubr.f32.mxu0 0.0
    %155 = vmatmul.mubr.f32.gmra.mrb[0].mxu0 %v18
    %v156 = vpop.f32.mrb[0].mxu0
    %v157 = vadd.f32 0.0, %v156
    %v158 = vpop.f32.mrb[0].mxu0
    %159 = vmatprep.mubr.f32.mxu0 0.0
    %160 = vmatmul.mubr.f32.gmra.mrb[0].mxu0 %v19
    %v161 = vpop.f32.mrb[0].mxu0
    %v162 = vadd.f32 0.0, %v161
    %v163 = vpop.f32.mrb[0].mxu0
    %164 = vmatprep.mubr.f32.mxu0 0.0
    %165 = vmatmul.mubr.f32.gmra.mrb[0].mxu0 %v20
    %v166 = vpop.f32.mrb[0].mxu0
    %v167 = vadd.f32 0.0, %v166
    %v168 = vpop.f32.mrb[0].mxu0
    %169 = vmatprep.mubr.f32.mxu0 0.0
    %170 = vmatmul.mubr.f32.gmra.mrb[0].mxu0 %v21
    %v171 = vpop.f32.mrb[0].mxu0
    %v172 = vadd.f32 0.0, %v171
    %v173 = vpop.f32.mrb[0].mxu0
    %174 = vmatprep.mubr.f32.mxu0 0.0
    %175 = vmatmul.mubr.f32.gmra.mrb[0].mxu0 %v22
    %v176 = vpop.f32.mrb[0].mxu0
    %v177 = vadd.f32 0.0, %v176
    %v178 = vpop.f32.mrb[0].mxu0
    %179 = vmatprep.mubr.f32.mxu0 0.0
    %180 = vmatmul.mubr.f32.gmra.mrb[0].mxu0 %v23
    %v181 = vpop.f32.mrb[0].mxu0
    %v182 = vadd.f32 0.0, %v181
    %v183 = vpop.f32.mrb[0].mxu0
    %184 = vmatprep.mubr.f32.mxu0 0.0
    %185 = vmatmul.mubr.f32.gmra.mrb[0].mxu0 %v24
    %v186 = vpop.f32.mrb[0].mxu0
    %v187 = vadd.f32 0.0, %v186
    %v188 = vpop.f32.mrb[0].mxu0
    %189 = vmatprep.mubr.f32.mxu0 0.0
    %190 = vmatmul.mubr.f32.gmra.mrb[0].mxu0 %v25
    %v191 = vpop.f32.mrb[0].mxu0
    %v192 = vadd.f32 0.0, %v191
    %v193 = vpop.f32.mrb[0].mxu0
    %194 = vmatprep.mubr.f32.mxu0 0.0
    %195 = vmatmul.mubr.f32.gmra.mrb[0].mxu0 %v26
    %v196 = vpop.f32.mrb[0].mxu0
    %v197 = vadd.f32 0.0, %v196
    %v198 = vpop.f32.mrb[0].mxu0
    %199 = vmatprep.mubr.f32.mxu0 0.0
    %200 = vmatmul.mubr.f32.gmra.mrb[0].mxu0 %v27
    %v201 = vpop.f32.mrb[0].mxu0
    %v202 = vadd.f32 0.0, %v201
    %v203 = vpop.f32.mrb[0].mxu0
    %204 = vmatprep.mubr.f32.mxu0 0.0
    %205 = vmatmul.mubr.f32.gmra.mrb[0].mxu0 %v28
    %v206 = vpop.f32.mrb[0].mxu0
    %v207 = vadd.f32 0.0, %v206
    %v208 = vpop.f32.mrb[0].mxu0
    %209 = vmatprep.mubr.f32.mxu0 0.0
    %210 = vmatmul.mubr.f32.gmra.mrb[0].mxu0 %v29
    %v211 = vpop.f32.mrb[0].mxu0
    %v212 = vadd.f32 0.0, %v211
    %v213 = vpop.f32.mrb[0].mxu0
    %214 = vmatprep.mubr.f32.mxu0 0.0
    %215 = vmatmul.mubr.f32.gmra.mrb[0].mxu0 %v30
    %v216 = vpop.f32.mrb[0].mxu0
    %v217 = vadd.f32 0.0, %v216
    %v218 = vpop.f32.mrb[0].mxu0
    %219 = vmatprep.mubr.f32.mxu0 0.0
    %220 = vmatmul.mubr.f32.gmra.mrb[0].mxu0 %v31
    %v221 = vpop.f32.mrb[0].mxu0
    %v222 = vadd.f32 0.0, %v221
    %v223 = vpop.f32.mrb[0].mxu0
    %224 = vmatprep.mubr.f32.mxu0 0.0
    %225 = vmatmul.mubr.f32.gmra.mrb[0].mxu0 %v32
    %v226 = vpop.f32.mrb[0].mxu0
    %v227 = vadd.f32 0.0, %v226
    %v228 = vpop.f32.mrb[0].mxu0
    %229 = vmatprep.mubr.f32.mxu0 0.0
    %230 = vmatmul.mubr.f32.gmra.mrb[0].mxu0 %v33
    %v231 = vpop.f32.mrb[0].mxu0
    %v232 = vadd.f32 0.0, %v231
    %v233 = vpop.f32.mrb[0].mxu0
    %234 = vmatprep.mubr.f32.mxu0 0.0
    %235 = vmatmul.mubr.f32.gmra.mrb[0].mxu0 %v34
    %v236 = vpop.f32.mrb[0].mxu0
    %v237 = vadd.f32 0.0, %v236
    %v238 = vpop.f32.mrb[0].mxu0
    %239 = vmatprep.mubr.f32.mxu0 0.0
    %240 = vmatmul.mubr.f32.gmra.mrb[0].mxu0 %v35
    %v241 = vpop.f32.mrb[0].mxu0
    %v242 = vadd.f32 0.0, %v241
    %v243 = vpop.f32.mrb[0].mxu0
    %244 = vmatprep.mubr.f32.mxu0 0.0
    %245 = vmatmul.mubr.f32.gmra.mrb[0].mxu0 %v36
    %v246 = vpop.f32.mrb[0].mxu0
    %v247 = vadd.f32 0.0, %v246
    %v248 = vpop.f32.mrb[0].mxu0
    %249 = vmatprep.mubr.f32.mxu0 0.0
    %250 = vmatmul.mubr.f32.gmra.mrb[0].mxu0 %v37
    %v251 = vpop.f32.mrb[0].mxu0
    %v252 = vadd.f32 0.0, %v251
    %v253 = vpop.f32.mrb[0].mxu0
    %254 = vmatprep.mubr.f32.mxu0 0.0
    %255 = vmatmul.mubr.f32.gmra.mrb[0].mxu0 %v38
    %v256 = vpop.f32.mrb[0].mxu0
    %v257 = vadd.f32 0.0, %v256
    %v258 = vpop.f32.mrb[0].mxu0
    %259 = vmatprep.mubr.f32.mxu0 0.0
    %260 = vmatmul.mubr.f32.gmra.mrb[0].mxu0 %v39
    %v261 = vpop.f32.mrb[0].mxu0
    %v262 = vadd.f32 0.0, %v261
    %v263 = vpop.f32.mrb[0].mxu0
    %264 = vmatprep.mubr.f32.mxu0 0.0
    %265 = vmatmul.mubr.f32.gmra.mrb[0].mxu0 %v40
    %v266 = vpop.f32.mrb[0].mxu0
    %v267 = vadd.f32 0.0, %v266
    %v268 = vpop.f32.mrb[0].mxu0
    %269 = vmatprep.mubr.f32.mxu0 0.0
    %270 = vmatmul.mubr.f32.gmra.mrb[0].mxu0 %v41
    %v271 = vpop.f32.mrb[0].mxu0
    %v272 = vadd.f32 0.0, %v271
    %v273 = vpop.f32.mrb[0].mxu0
    %274 = vmatprep.mubr.f32.mxu0 0.0
    %275 = vmatmul.mubr.f32.gmra.mrb[0].mxu0 %v42
    %v276 = vpop.f32.mrb[0].mxu0
    %v277 = vadd.f32 0.0, %v276
    %v278 = vpop.f32.mrb[0].mxu0
    %279 = vmatprep.mubr.f32.mxu0 0.0
    %280 = vmatmul.mubr.f32.gmra.mrb[0].mxu0 %v43
    %v281 = vpop.f32.mrb[0].mxu0
    %v282 = vadd.f32 0.0, %v281
    %v283 = vpop.f32.mrb[0].mxu0
    %284 = vdwg.mxu0
    %v285 = vmul.f32 %v12, %v12
    %v286 = vmul.f32 %v13, %v13
    %v287 = vmul.f32 %v14, %v14
    %v288 = vmul.f32 %v15, %v15
    %v289 = vmul.f32 %v16, %v16
    %v290 = vmul.f32 %v17, %v17
    %v291 = vmul.f32 %v18, %v18
    %v292 = vmul.f32 %v19, %v19
    %v293 = vmul.f32 %v20, %v20
    %v294 = vmul.f32 %v21, %v21
    %v295 = vmul.f32 %v22, %v22
    %v296 = vmul.f32 %v23, %v23
    %v297 = vmul.f32 %v24, %v24
    %v298 = vmul.f32 %v25, %v25
    %v299 = vmul.f32 %v26, %v26
    %v300 = vmul.f32 %v27, %v27
    %v301 = vmul.f32 %v28, %v28
    %v302 = vmul.f32 %v29, %v29
    %v303 = vmul.f32 %v30, %v30
    %v304 = vmul.f32 %v31, %v31
    %v305 = vmul.f32 %v32, %v32
    %v306 = vmul.f32 %v33, %v33
    %v307 = vmul.f32 %v34, %v34
    %v308 = vmul.f32 %v35, %v35
    %v309 = vmul.f32 %v36, %v36
    %v310 = vmul.f32 %v37, %v37
    %v311 = vmul.f32 %v38, %v38
    %v312 = vmul.f32 %v39, %v39
    %v313 = vmul.f32 %v40, %v40
    %v314 = vmul.f32 %v41, %v41
    %v315 = vmul.f32 %v42, %v42
    %v316 = vmul.f32 %v43, %v43
    %317 = vadd.xlane.f32.xlu0 %v285
    %v318 = vpop.xlane.xlu0 %317
    %319 = vadd.xlane.f32.xlu0 %v286
    %v320 = vpop.xlane.xlu0 %319
    %321 = vadd.xlane.f32.xlu0 %v287
    %v322 = vpop.xlane.xlu0 %321
    %323 = vadd.xlane.f32.xlu0 %v288
    %v324 = vpop.xlane.xlu0 %323
    %325 = vadd.xlane.f32.xlu0 %v289
    %v326 = vpop.xlane.xlu0 %325
    %327 = vadd.xlane.f32.xlu0 %v290
    %v328 = vpop.xlane.xlu0 %327
    %329 = vadd.xlane.f32.xlu0 %v291
    %v330 = vpop.xlane.xlu0 %329
    %331 = vadd.xlane.f32.xlu0 %v292
    %v332 = vpop.xlane.xlu0 %331
    %333 = vadd.xlane.f32.xlu0 %v293
    %v334 = vpop.xlane.xlu0 %333
    %335 = vadd.xlane.f32.xlu0 %v294
    %v336 = vpop.xlane.xlu0 %335
    %337 = vadd.xlane.f32.xlu0 %v295
    %v338 = vpop.xlane.xlu0 %337
    %339 = vadd.xlane.f32.xlu0 %v296
    %v340 = vpop.xlane.xlu0 %339
    %341 = vadd.xlane.f32.xlu0 %v297
    %v342 = vpop.xlane.xlu0 %341
    %343 = vadd.xlane.f32.xlu0 %v298
    %v344 = vpop.xlane.xlu0 %343
    %345 = vadd.xlane.f32.xlu0 %v299
    %v346 = vpop.xlane.xlu0 %345
    %347 = vadd.xlane.f32.xlu0 %v300
    %v348 = vpop.xlane.xlu0 %347
    %349 = vadd.xlane.f32.xlu0 %v301
    %v350 = vpop.xlane.xlu0 %349
    %351 = vadd.xlane.f32.xlu0 %v302
    %v352 = vpop.xlane.xlu0 %351
    %353 = vadd.xlane.f32.xlu0 %v303
    %v354 = vpop.xlane.xlu0 %353
    %355 = vadd.xlane.f32.xlu0 %v304
    %v356 = vpop.xlane.xlu0 %355
    %357 = vadd.xlane.f32.xlu0 %v305
    %v358 = vpop.xlane.xlu0 %357
    %359 = vadd.xlane.f32.xlu0 %v306
    %v360 = vpop.xlane.xlu0 %359
    %361 = vadd.xlane.f32.xlu0 %v307
    %v362 = vpop.xlane.xlu0 %361
    %363 = vadd.xlane.f32.xlu0 %v308
    %v364 = vpop.xlane.xlu0 %363
    %365 = vadd.xlane.f32.xlu0 %v309
    %v366 = vpop.xlane.xlu0 %365
    %367 = vadd.xlane.f32.xlu0 %v310
    %v368 = vpop.xlane.xlu0 %367
    %369 = vadd.xlane.f32.xlu0 %v311
    %v370 = vpop.xlane.xlu0 %369
    %371 = vadd.xlane.f32.xlu0 %v312
    %v372 = vpop.xlane.xlu0 %371
    %373 = vadd.xlane.f32.xlu0 %v313
    %v374 = vpop.xlane.xlu0 %373
    %375 = vadd.xlane.f32.xlu0 %v314
    %v376 = vpop.xlane.xlu0 %375
    %377 = vadd.xlane.f32.xlu0 %v315
    %v378 = vpop.xlane.xlu0 %377
    %379 = vadd.xlane.f32.xlu0 %v316
    %v380 = vpop.xlane.xlu0 %379
    %v381 = vmul.f32 %v44, %v44
    %v382 = vmul.f32 %v45, %v45
    %v383 = vmul.f32 %v46, %v46
    %v384 = vmul.f32 %v47, %v47
    %v385 = vmul.f32 %v48, %v48
    %v386 = vmul.f32 %v49, %v49
    %v387 = vmul.f32 %v50, %v50
    %v388 = vmul.f32 %v51, %v51
    %v389 = vmul.f32 %v52, %v52
    %v390 = vmul.f32 %v53, %v53
    %v391 = vmul.f32 %v54, %v54
    %v392 = vmul.f32 %v55, %v55
    %v393 = vmul.f32 %v56, %v56
    %v394 = vmul.f32 %v57, %v57
    %v395 = vmul.f32 %v58, %v58
    %v396 = vmul.f32 %v59, %v59
    %397 = vadd.xlane.f32.xlu0 %v381
    %v398 = vpop.xlane.xlu0 %397
    %399 = vadd.xlane.f32.xlu0 %v382
    %v400 = vpop.xlane.xlu0 %399
    %401 = vadd.xlane.f32.xlu0 %v383
    %v402 = vpop.xlane.xlu0 %401
    %403 = vadd.xlane.f32.xlu0 %v384
    %v404 = vpop.xlane.xlu0 %403
    %405 = vadd.xlane.f32.xlu0 %v385
    %v406 = vpop.xlane.xlu0 %405
    %407 = vadd.xlane.f32.xlu0 %v386
    %v408 = vpop.xlane.xlu0 %407
    %409 = vadd.xlane.f32.xlu0 %v387
    %v410 = vpop.xlane.xlu0 %409
    %411 = vadd.xlane.f32.xlu0 %v388
    %v412 = vpop.xlane.xlu0 %411
    %413 = vadd.xlane.f32.xlu0 %v389
    %v414 = vpop.xlane.xlu0 %413
    %415 = vadd.xlane.f32.xlu0 %v390
    %v416 = vpop.xlane.xlu0 %415
    %417 = vadd.xlane.f32.xlu0 %v391
    %v418 = vpop.xlane.xlu0 %417
    %419 = vadd.xlane.f32.xlu0 %v392
    %v420 = vpop.xlane.xlu0 %419
    %421 = vadd.xlane.f32.xlu0 %v393
    %v422 = vpop.xlane.xlu0 %421
    %423 = vadd.xlane.f32.xlu0 %v394
    %v424 = vpop.xlane.xlu0 %423
    %425 = vadd.xlane.f32.xlu0 %v395
    %v426 = vpop.xlane.xlu0 %425
    %427 = vadd.xlane.f32.xlu0 %v396
    %v428 = vpop.xlane.xlu0 %427
    %v445 = vlaneseq
    %v446 = vand.u32 %v445, 127
    %v447 = vlaneseq
    %v448 = vshrl.u32 %v447, 7
    %v449 = vsub.s32 %v446, %v448
    %v450 = vrot.slane %v398, %v449
    %v451 = vadd.s32 %v446, 4294967288
    %v452 = vlaneseq
    %v453 = vshrl.u32 %v452, 7
    %v454 = vsub.s32 %v451, %v453
    %v455 = vrot.slane %v400, %v454
    %vm456 = vcmask 130112
    %v457 = vsel %vm456, %v455, %v450
    %v458 = vadd.s32 %v446, 4294967280
    %v459 = vlaneseq
    %v460 = vshrl.u32 %v459, 7
    %v461 = vsub.s32 %v458, %v460
    %v462 = vrot.slane %v402, %v461
    %vm463 = vcmask 195712
    %v464 = vsel %vm463, %v462, %v457
    %v465 = vadd.s32 %v446, 4294967272
    %v466 = vlaneseq
    %v467 = vshrl.u32 %v466, 7
    %v468 = vsub.s32 %v465, %v467
    %v469 = vrot.slane %v404, %v468
    %vm470 = vcmask 261312
    %v471 = vsel %vm470, %v469, %v464
    %v472 = vadd.s32 %v446, 4294967264
    %v473 = vlaneseq
    %v474 = vshrl.u32 %v473, 7
    %v475 = vsub.s32 %v472, %v474
    %v476 = vrot.slane %v406, %v475
    %vm477 = vcmask 326912
    %v478 = vsel %vm477, %v476, %v471
    %v479 = vadd.s32 %v446, 4294967256
    %v480 = vlaneseq
    %v481 = vshrl.u32 %v480, 7
    %v482 = vsub.s32 %v479, %v481
    %v483 = vrot.slane %v408, %v482
    %vm484 = vcmask 392512
    %v485 = vsel %vm484, %v483, %v478
    %v486 = vadd.s32 %v446, 4294967248
    %v487 = vlaneseq
    %v488 = vshrl.u32 %v487, 7
    %v489 = vsub.s32 %v486, %v488
    %v490 = vrot.slane %v410, %v489
    %vm491 = vcmask 458112
    %v492 = vsel %vm491, %v490, %v485
    %v493 = vadd.s32 %v446, 4294967240
    %v494 = vlaneseq
    %v495 = vshrl.u32 %v494, 7
    %v496 = vsub.s32 %v493, %v495
    %v497 = vrot.slane %v412, %v496
    %vm498 = vcmask 523712
    %v499 = vsel %vm498, %v497, %v492
    %v500 = vadd.s32 %v446, 4294967232
    %v501 = vlaneseq
    %v502 = vshrl.u32 %v501, 7
    %v503 = vsub.s32 %v500, %v502
    %v504 = vrot.slane %v414, %v503
    %vm505 = vcmask 589312
    %v506 = vsel %vm505, %v504, %v499
    %v507 = vadd.s32 %v446, 4294967224
    %v508 = vlaneseq
    %v509 = vshrl.u32 %v508, 7
    %v510 = vsub.s32 %v507, %v509
    %v511 = vrot.slane %v416, %v510
    %vm512 = vcmask 654912
    %v513 = vsel %vm512, %v511, %v506
    %v514 = vadd.s32 %v446, 4294967216
    %v515 = vlaneseq
    %v516 = vshrl.u32 %v515, 7
    %v517 = vsub.s32 %v514, %v516
    %v518 = vrot.slane %v418, %v517
    %vm519 = vcmask 720512
    %v520 = vsel %vm519, %v518, %v513
    %v521 = vadd.s32 %v446, 4294967208
    %v522 = vlaneseq
    %v523 = vshrl.u32 %v522, 7
    %v524 = vsub.s32 %v521, %v523
    %v525 = vrot.slane %v420, %v524
    %vm526 = vcmask 786112
    %v527 = vsel %vm526, %v525, %v520
    %v528 = vadd.s32 %v446, 4294967200
    %v529 = vlaneseq
    %v530 = vshrl.u32 %v529, 7
    %v531 = vsub.s32 %v528, %v530
    %v532 = vrot.slane %v422, %v531
    %vm533 = vcmask 851712
    %v534 = vsel %vm533, %v532, %v527
    %v535 = vadd.s32 %v446, 4294967192
    %v536 = vlaneseq
    %v537 = vshrl.u32 %v536, 7
    %v538 = vsub.s32 %v535, %v537
    %v539 = vrot.slane %v424, %v538
    %vm540 = vcmask 917312
    %v541 = vsel %vm540, %v539, %v534
    %v542 = vadd.s32 %v446, 4294967184
    %v543 = vlaneseq
    %v544 = vshrl.u32 %v543, 7
    %v545 = vsub.s32 %v542, %v544
    %v546 = vrot.slane %v426, %v545
    %vm547 = vcmask 982912
    %v548 = vsel %vm547, %v546, %v541
    %v549 = vadd.s32 %v446, 4294967176
    %v550 = vlaneseq
    %v551 = vshrl.u32 %v550, 7
    %v552 = vsub.s32 %v549, %v551
    %v553 = vrot.slane %v428, %v552
    %vm554 = vcmask 1048512
    %v555 = vsel %vm554, %v553, %v548
    %vm556 = vcmask 1042434
    %v557 = vsel %vm556, %v555, %v555
    %vm558 = vcmask 1043459
    %v559 = vsel %vm558, %v555, %v557
    %vm560 = vcmask 1044484
    %v561 = vsel %vm560, %v555, %v559
    %vm562 = vcmask 1045509
    %v563 = vsel %vm562, %v555, %v561
    %vm564 = vcmask 1046534
    %v565 = vsel %vm564, %v555, %v563
    %vm566 = vcmask 1047559
    %v567 = vsel %vm566, %v555, %v565
    %v569 = vadd.f32 %v318, %v567
    %v570 = vadd.f32 %v320, %v567
    %v571 = vadd.f32 %v322, %v567
    %v572 = vadd.f32 %v324, %v567
    %v573 = vadd.f32 %v326, %v567
    %v574 = vadd.f32 %v328, %v567
    %v575 = vadd.f32 %v330, %v567
    %v576 = vadd.f32 %v332, %v567
    %v577 = vadd.f32 %v334, %v567
    %v578 = vadd.f32 %v336, %v567
    %v579 = vadd.f32 %v338, %v567
    %v580 = vadd.f32 %v340, %v567
    %v581 = vadd.f32 %v342, %v567
    %v582 = vadd.f32 %v344, %v567
    %v583 = vadd.f32 %v346, %v567
    %v584 = vadd.f32 %v348, %v567
    %v585 = vadd.f32 %v350, %v567
    %v586 = vadd.f32 %v352, %v567
    %v587 = vadd.f32 %v354, %v567
    %v588 = vadd.f32 %v356, %v567
    %v589 = vadd.f32 %v358, %v567
    %v590 = vadd.f32 %v360, %v567
    %v591 = vadd.f32 %v362, %v567
    %v592 = vadd.f32 %v364, %v567
    %v593 = vadd.f32 %v366, %v567
    %v594 = vadd.f32 %v368, %v567
    %v595 = vadd.f32 %v370, %v567
    %v596 = vadd.f32 %v372, %v567
    %v597 = vadd.f32 %v374, %v567
    %v598 = vadd.f32 %v376, %v567
    %v599 = vadd.f32 %v378, %v567
    %v600 = vadd.f32 %v380, %v567
    %v601 = vmul.f32 %v127, 2.0
    %v602 = vmul.f32 %v132, 2.0
    %v603 = vmul.f32 %v137, 2.0
    %v604 = vmul.f32 %v142, 2.0
    %v605 = vmul.f32 %v147, 2.0
    %v606 = vmul.f32 %v152, 2.0
    %v607 = vmul.f32 %v157, 2.0
    %v608 = vmul.f32 %v162, 2.0
    %v609 = vmul.f32 %v167, 2.0
    %v610 = vmul.f32 %v172, 2.0
    %v611 = vmul.f32 %v177, 2.0
    %v612 = vmul.f32 %v182, 2.0
    %v613 = vmul.f32 %v187, 2.0
    %v614 = vmul.f32 %v192, 2.0
    %v615 = vmul.f32 %v197, 2.0
    %v616 = vmul.f32 %v202, 2.0
    %v617 = vmul.f32 %v207, 2.0
    %v618 = vmul.f32 %v212, 2.0
    %v619 = vmul.f32 %v217, 2.0
    %v620 = vmul.f32 %v222, 2.0
    %v621 = vmul.f32 %v227, 2.0
    %v622 = vmul.f32 %v232, 2.0
    %v623 = vmul.f32 %v237, 2.0
    %v624 = vmul.f32 %v242, 2.0
    %v625 = vmul.f32 %v247, 2.0
    %v626 = vmul.f32 %v252, 2.0
    %v627 = vmul.f32 %v257, 2.0
    %v628 = vmul.f32 %v262, 2.0
    %v629 = vmul.f32 %v267, 2.0
    %v630 = vmul.f32 %v272, 2.0
    %v631 = vmul.f32 %v277, 2.0
    %v632 = vmul.f32 %v282, 2.0
    %v633 = vsub.f32 %v569, %v601
    %v634 = vsub.f32 %v570, %v602
    %v635 = vsub.f32 %v571, %v603
    %v636 = vsub.f32 %v572, %v604
    %v637 = vsub.f32 %v573, %v605
    %v638 = vsub.f32 %v574, %v606
    %v639 = vsub.f32 %v575, %v607
    %v640 = vsub.f32 %v576, %v608
    %v641 = vsub.f32 %v577, %v609
    %v642 = vsub.f32 %v578, %v610
    %v643 = vsub.f32 %v579, %v611
    %v644 = vsub.f32 %v580, %v612
    %v645 = vsub.f32 %v581, %v613
    %v646 = vsub.f32 %v582, %v614
    %v647 = vsub.f32 %v583, %v615
    %v648 = vsub.f32 %v584, %v616
    %v649 = vsub.f32 %v585, %v617
    %v650 = vsub.f32 %v586, %v618
    %v651 = vsub.f32 %v587, %v619
    %v652 = vsub.f32 %v588, %v620
    %v653 = vsub.f32 %v589, %v621
    %v654 = vsub.f32 %v590, %v622
    %v655 = vsub.f32 %v591, %v623
    %v656 = vsub.f32 %v592, %v624
    %v657 = vsub.f32 %v593, %v625
    %v658 = vsub.f32 %v594, %v626
    %v659 = vsub.f32 %v595, %v627
    %v660 = vsub.f32 %v596, %v628
    %v661 = vsub.f32 %v597, %v629
    %v662 = vsub.f32 %v598, %v630
    %v663 = vsub.f32 %v599, %v631
    %v664 = vsub.f32 %v600, %v632
    %v665 = vmax.f32 %v633, 0.0
    %v666 = vmax.f32 %v634, 0.0
    %v667 = vmax.f32 %v635, 0.0
    %v668 = vmax.f32 %v636, 0.0
    %v669 = vmax.f32 %v637, 0.0
    %v670 = vmax.f32 %v638, 0.0
    %v671 = vmax.f32 %v639, 0.0
    %v672 = vmax.f32 %v640, 0.0
    %v673 = vmax.f32 %v641, 0.0
    %v674 = vmax.f32 %v642, 0.0
    %v675 = vmax.f32 %v643, 0.0
    %v676 = vmax.f32 %v644, 0.0
    %v677 = vmax.f32 %v645, 0.0
    %v678 = vmax.f32 %v646, 0.0
    %v679 = vmax.f32 %v647, 0.0
    %v680 = vmax.f32 %v648, 0.0
    %v681 = vmax.f32 %v649, 0.0
    %v682 = vmax.f32 %v650, 0.0
    %v683 = vmax.f32 %v651, 0.0
    %v684 = vmax.f32 %v652, 0.0
    %v685 = vmax.f32 %v653, 0.0
    %v686 = vmax.f32 %v654, 0.0
    %v687 = vmax.f32 %v655, 0.0
    %v688 = vmax.f32 %v656, 0.0
    %v689 = vmax.f32 %v657, 0.0
    %v690 = vmax.f32 %v658, 0.0
    %v691 = vmax.f32 %v659, 0.0
    %v692 = vmax.f32 %v660, 0.0
    %v693 = vmax.f32 %v661, 0.0
    %v694 = vmax.f32 %v662, 0.0
    %v695 = vmax.f32 %v663, 0.0
    %v696 = vmax.f32 %v664, 0.0
    %v697 = vmul.f32 %v665, -0.005
    %v698 = vmul.f32 %v666, -0.005
    %v699 = vmul.f32 %v667, -0.005
    %v700 = vmul.f32 %v668, -0.005
    %v701 = vmul.f32 %v669, -0.005
    %v702 = vmul.f32 %v670, -0.005
    %v703 = vmul.f32 %v671, -0.005
    %v704 = vmul.f32 %v672, -0.005
    %v705 = vmul.f32 %v673, -0.005
    %v706 = vmul.f32 %v674, -0.005
    %v707 = vmul.f32 %v675, -0.005
    %v708 = vmul.f32 %v676, -0.005
    %v709 = vmul.f32 %v677, -0.005
    %v710 = vmul.f32 %v678, -0.005
    %v711 = vmul.f32 %v679, -0.005
    %v712 = vmul.f32 %v680, -0.005
    %v713 = vmul.f32 %v681, -0.005
    %v714 = vmul.f32 %v682, -0.005
    %v715 = vmul.f32 %v683, -0.005
    %v716 = vmul.f32 %v684, -0.005
    %v717 = vmul.f32 %v685, -0.005
    %v718 = vmul.f32 %v686, -0.005
    %v719 = vmul.f32 %v687, -0.005
    %v720 = vmul.f32 %v688, -0.005
    %v721 = vmul.f32 %v689, -0.005
    %v722 = vmul.f32 %v690, -0.005
    %v723 = vmul.f32 %v691, -0.005
    %v724 = vmul.f32 %v692, -0.005
    %v725 = vmul.f32 %v693, -0.005
    %v726 = vmul.f32 %v694, -0.005
    %v727 = vmul.f32 %v695, -0.005
    %v728 = vmul.f32 %v696, -0.005
    %v729 = vmul.f32 %v697, 1.442695
    %v730 = vpow.pop %v729
    %v731 = vmul.f32 %v698, 1.442695
    %v732 = vpow.pop %v731
    %v733 = vmul.f32 %v699, 1.442695
    %v734 = vpow.pop %v733
    %v735 = vmul.f32 %v700, 1.442695
    %v736 = vpow.pop %v735
    %v737 = vmul.f32 %v701, 1.442695
    %v738 = vpow.pop %v737
    %v739 = vmul.f32 %v702, 1.442695
    %v740 = vpow.pop %v739
    %v741 = vmul.f32 %v703, 1.442695
    %v742 = vpow.pop %v741
    %v743 = vmul.f32 %v704, 1.442695
    %v744 = vpow.pop %v743
    %v745 = vmul.f32 %v705, 1.442695
    %v746 = vpow.pop %v745
    %v747 = vmul.f32 %v706, 1.442695
    %v748 = vpow.pop %v747
    %v749 = vmul.f32 %v707, 1.442695
    %v750 = vpow.pop %v749
    %v751 = vmul.f32 %v708, 1.442695
    %v752 = vpow.pop %v751
    %v753 = vmul.f32 %v709, 1.442695
    %v754 = vpow.pop %v753
    %v755 = vmul.f32 %v710, 1.442695
    %v756 = vpow.pop %v755
    %v757 = vmul.f32 %v711, 1.442695
    %v758 = vpow.pop %v757
    %v759 = vmul.f32 %v712, 1.442695
    %v760 = vpow.pop %v759
    %v761 = vmul.f32 %v713, 1.442695
    %v762 = vpow.pop %v761
    %v763 = vmul.f32 %v714, 1.442695
    %v764 = vpow.pop %v763
    %v765 = vmul.f32 %v715, 1.442695
    %v766 = vpow.pop %v765
    %v767 = vmul.f32 %v716, 1.442695
    %v768 = vpow.pop %v767
    %v769 = vmul.f32 %v717, 1.442695
    %v770 = vpow.pop %v769
    %v771 = vmul.f32 %v718, 1.442695
    %v772 = vpow.pop %v771
    %v773 = vmul.f32 %v719, 1.442695
    %v774 = vpow.pop %v773
    %v775 = vmul.f32 %v720, 1.442695
    %v776 = vpow.pop %v775
    %v777 = vmul.f32 %v721, 1.442695
    %v778 = vpow.pop %v777
    %v779 = vmul.f32 %v722, 1.442695
    %v780 = vpow.pop %v779
    %v781 = vmul.f32 %v723, 1.442695
    %v782 = vpow.pop %v781
    %v783 = vmul.f32 %v724, 1.442695
    %v784 = vpow.pop %v783
    %v785 = vmul.f32 %v725, 1.442695
    %v786 = vpow.pop %v785
    %v787 = vmul.f32 %v726, 1.442695
    %v788 = vpow.pop %v787
    %v789 = vmul.f32 %v727, 1.442695
    %v790 = vpow.pop %v789
    %v791 = vmul.f32 %v728, 1.442695
    %v792 = vpow.pop %v791
    %793 = vst [vmem:[#allocation2] sm:$0xff] %v730
    %794 = vst [vmem:[#allocation2 + $0x8] sm:$0xff] %v732
    %795 = vst [vmem:[#allocation2 + $0x10] sm:$0xff] %v734
    %796 = vst [vmem:[#allocation2 + $0x18] sm:$0xff] %v736
    %797 = vst [vmem:[#allocation2 + $0x20] sm:$0xff] %v738
    %798 = vst [vmem:[#allocation2 + $0x28] sm:$0xff] %v740
    %799 = vst [vmem:[#allocation2 + $0x30] sm:$0xff] %v742
    %800 = vst [vmem:[#allocation2 + $0x38] sm:$0xff] %v744
    %801 = vst [vmem:[#allocation2 + $0x40] sm:$0xff] %v746
    %802 = vst [vmem:[#allocation2 + $0x48] sm:$0xff] %v748
    %803 = vst [vmem:[#allocation2 + $0x50] sm:$0xff] %v750
    %804 = vst [vmem:[#allocation2 + $0x58] sm:$0xff] %v752
    %805 = vst [vmem:[#allocation2 + $0x60] sm:$0xff] %v754
    %806 = vst [vmem:[#allocation2 + $0x68] sm:$0xff] %v756
    %807 = vst [vmem:[#allocation2 + $0x70] sm:$0xff] %v758
    %808 = vst [vmem:[#allocation2 + $0x78] sm:$0xff] %v760
    %809 = vst [vmem:[#allocation2 + $0x80] sm:$0xff] %v762
    %810 = vst [vmem:[#allocation2 + $0x88] sm:$0xff] %v764
    %811 = vst [vmem:[#allocation2 + $0x90] sm:$0xff] %v766
    %812 = vst [vmem:[#allocation2 + $0x98] sm:$0xff] %v768
    %813 = vst [vmem:[#allocation2 + $0xa0] sm:$0xff] %v770
    %814 = vst [vmem:[#allocation2 + $0xa8] sm:$0xff] %v772
    %815 = vst [vmem:[#allocation2 + $0xb0] sm:$0xff] %v774
    %816 = vst [vmem:[#allocation2 + $0xb8] sm:$0xff] %v776
    %817 = vst [vmem:[#allocation2 + $0xc0] sm:$0xff] %v778
    %818 = vst [vmem:[#allocation2 + $0xc8] sm:$0xff] %v780
    %819 = vst [vmem:[#allocation2 + $0xd0] sm:$0xff] %v782
    %820 = vst [vmem:[#allocation2 + $0xd8] sm:$0xff] %v784
    %821 = vst [vmem:[#allocation2 + $0xe0] sm:$0xff] %v786
    %822 = vst [vmem:[#allocation2 + $0xe8] sm:$0xff] %v788
    %823 = vst [vmem:[#allocation2 + $0xf0] sm:$0xff] %v790
    %824 = vst [vmem:[#allocation2 + $0xf8] sm:$0xff] %v792
    // Predicated region
    $region10: #{vbgae_forward.9} parent=1 // pred_check
      _
    $region11: #{vbgae_forward.9} parent=1 // pred_check_branch
      %826 = sbr.rel (0) target = $region13
    $region12: #{vbgae_forward.9} parent=1 // pred_region
      %s828 = ssub.s32 4096, 4096
      %829 = vsyncadd [#allocation3], %s828
      %s830 = sshll.u32 [#allocation2], 4
      %s831 = int_to_ptr.vmem [resolvable:$true] %s830
      %836 = dma.vmem_to_hbm [thread:$0]  %s831, 4096, %s2, [#allocation3], 128, 128, 8
    $region13: #{vbgae_forward.9} parent=1 // pred_fallthru
      _
    // Predicated region
    $region14: #{vbgae_forward.9} parent=1 // pred_check
      _
    $region15: #{vbgae_forward.9} parent=1 // pred_check_branch
      %838 = sbr.rel (0) target = $region17
    $region16: #{vbgae_forward.9} parent=1 // pred_region
      %839 = dma.done [#allocation3], 4096
    $region17: #{vbgae_forward.9} parent=1 // pred_fallthru
      _
    %840 = vsyncpa [#allocation3], 1

</llo_original>
